<compile_context>
chip_gen: v7x
topology: tpu7x:2x2x1
jax: 0.10.0
libtpu: 0.0.40
codegen_flags: <defaults>
</compile_context>

<pallas_src>
import jax
import jax.numpy as jnp
from jax import lax
from jax.experimental import pallas as pl
from jax.experimental.pallas import tpu as pltpu


# ---------------------------------------------------------------------------
# Fused kernel: 2-layer GRU (time-major) + Conv1d(k=1) projection + loss
# ---------------------------------------------------------------------------
def cm_recurrent_kernel(x_ref,                                   # (T, B, Cin)
                        y_ref,                                   # (T, B, Cout)
                        wih0_ref, whh0_ref, bih0_ref, bhh0_ref,  # layer 0 (gate-padded)
                        wih1_ref, whh1_ref, bih1_ref, bhh1_ref,  # layer 1 (gate-padded)
                        wout_ref, bout_ref,                      # (Hp, Cout), (1, Cout)
                        yhat_ref,                                # (T, B, Cout)
                        loss_ref,                                # (T, B)
                        gi0_ref,                                 # scratch (T, B, 3*Hp)
                        hseq_ref):                               # scratch (T, B, Hp)
    T, B, Cin = x_ref.shape
    Hp = hseq_ref.shape[2]
    G = 3 * Hp
    Cout = yhat_ref.shape[2]

    # Hoisted layer-0 input projection: one (T*B, Cin) @ (Cin, 3*Hp) matmul
    # instead of T tiny matmuls on the serial critical path.
    x_flat = x_ref[...].reshape(T * B, Cin)
    gi0_ref[...] = (
        jnp.dot(x_flat, wih0_ref[...], preferred_element_type=jnp.float32)
        + bih0_ref[...]).reshape(T, B, G)

    whh0 = whh0_ref[...]
    bhh0 = bhh0_ref[...]
    wih1 = wih1_ref[...]
    bih1 = bih1_ref[...]
    whh1 = whh1_ref[...]
    bhh1 = bhh1_ref[...]

    def cell(gi, gh, h):
        # PyTorch gate order [r, z, n]; each gate occupies its own 128-lane
        # block, so these slices are lane-aligned and free.
        r = jax.nn.sigmoid(gi[:, 0:Hp] + gh[:, 0:Hp])
        z = jax.nn.sigmoid(gi[:, Hp:2 * Hp] + gh[:, Hp:2 * Hp])
        n = jnp.tanh(gi[:, 2 * Hp:3 * Hp] + r * gh[:, 2 * Hp:3 * Hp])
        return (1.0 - z) * n + z * h

    def step(t, carry):
        h0, h1 = carry
        gi0 = gi0_ref[t]                                   # precomputed, leading-axis index
        gh0 = jnp.dot(h0, whh0, preferred_element_type=jnp.float32) + bhh0
        h0n = cell(gi0, gh0, h0)
        gi1 = jnp.dot(h0n, wih1, preferred_element_type=jnp.float32) + bih1
        gh1 = jnp.dot(h1, whh1, preferred_element_type=jnp.float32) + bhh1
        h1n = cell(gi1, gh1, h1)
        hseq_ref[t] = h1n                                  # stays in VMEM
        return (h0n, h1n)

    h_init = jnp.zeros((B, Hp), jnp.float32)   # nn.GRU default h0 = zeros
    # Fully unroll short sequences so the LLO scheduler sees the whole chain.
    lax.fori_loop(0, T, step, (h_init, h_init), unroll=(T <= 16))

    # Fused output projection (Conv1d k=1) + per-position squared-error loss.
    # GRU features never leave VMEM.
    h_flat = hseq_ref[...].reshape(T * B, Hp)
    yh = (jnp.dot(h_flat, wout_ref[...], preferred_element_type=jnp.float32)
          + bout_ref[...]).reshape(T, B, Cout)
    yhat_ref[...] = yh
    d = yh - y_ref[...]
    loss_ref[...] = jnp.sum(d * d, axis=-1)


# ---------------------------------------------------------------------------
# Wrapper
# ---------------------------------------------------------------------------
def cm_baseline_recurrent_forward(x, y, p):
    """x: (B, T, Cin), y: (B, T, Cout) -> (y_hat (B, T, Cout), loss (B, T))."""
    B, T, Cin = x.shape
    Hp = p["whh0"].shape[0]
    Cout = p["w_out"].shape[1]

    # Time-major layout for clean leading-axis indexing inside the kernel.
    x_t = jnp.transpose(x, (1, 0, 2))   # (T, B, Cin)
    y_t = jnp.transpose(y, (1, 0, 2))   # (T, B, Cout)

    yhat_t, loss_t = pl.pallas_call(
        cm_recurrent_kernel,
        out_shape=[jax.ShapeDtypeStruct((T, B, Cout), jnp.float32),
                   jax.ShapeDtypeStruct((T, B), jnp.float32)],
        in_specs=[pl.BlockSpec(memory_space=pltpu.MemorySpace.VMEM)] * 12,
        out_specs=[pl.BlockSpec(memory_space=pltpu.MemorySpace.VMEM)] * 2,
        scratch_shapes=[pltpu.VMEM((T, B, 3 * Hp), jnp.float32),
                        pltpu.VMEM((T, B, Hp), jnp.float32)],
    )(x_t, y_t,
      p["wih0"], p["whh0"], p["bih0"], p["bhh0"],
      p["wih1"], p["whh1"], p["bih1"], p["bhh1"],
      p["w_out"], p["b_out"])

    y_hat = jnp.transpose(yhat_t, (1, 0, 2))   # (B, T, Cout)
    loss = jnp.transpose(loss_t, (1, 0))       # (B, T)
    return y_hat, loss


# ---------------------------------------------------------------------------
# Synthetic parameters (pre-transposed for x @ W; gates padded to 128 lanes)
# ---------------------------------------------------------------------------
def init_params(key, Cin, Cout, H, Hp=128):
    keys = iter(jax.random.split(key, 16))

    def mat(fan_in, shape):
        return jax.random.normal(next(keys), shape, jnp.float32) / jnp.sqrt(float(fan_in))

    def vec(shape):
        return 0.01 * jax.random.normal(next(keys), shape, jnp.float32)

    def pad_gate_cols(w):   # (in, 3H) -> (in, 3Hp): each gate in its own 128-lane block
        out = jnp.zeros((w.shape[0], 3 * Hp), jnp.float32)
        for g in range(3):
            out = out.at[:, g * Hp:g * Hp + H].set(w[:, g * H:(g + 1) * H])
        return out

    def pad_rows(w):        # (H, X) -> (Hp, X): zero rows for the padded hidden lanes
        return jnp.zeros((Hp,) + w.shape[1:], w.dtype).at[:H].set(w)

    # GRU weights in x @ W orientation, PyTorch gate order [r, z, n]
    wih0, whh0 = mat(Cin, (Cin, 3 * H)), mat(H, (H, 3 * H))
    bih0, bhh0 = vec((1, 3 * H)), vec((1, 3 * H))
    wih1, whh1 = mat(H, (H, 3 * H)), mat(H, (H, 3 * H))
    bih1, bhh1 = vec((1, 3 * H)), vec((1, 3 * H))
    # rnn_out: Conv1d(H, Cout, 1)  ==  h @ (H, Cout) + bias
    w_out, b_out = mat(H, (H, Cout)), vec((1, Cout))

    return {
        "wih0": pad_gate_cols(wih0),
        "whh0": pad_rows(pad_gate_cols(whh0)),
        "bih0": pad_gate_cols(bih0),
        "bhh0": pad_gate_cols(bhh0),
        "wih1": pad_rows(pad_gate_cols(wih1)),
        "whh1": pad_rows(pad_gate_cols(whh1)),
        "bih1": pad_gate_cols(bih1),
        "bhh1": pad_gate_cols(bhh1),
        "w_out": pad_rows(w_out),
        "b_out": b_out,
    }


# ---------------------------------------------------------------------------
# Pure-JAX reference (same padded params; padded lanes provably stay zero)
# ---------------------------------------------------------------------------
def reference_forward(x, y, p):
    B, T, _ = x.shape
    Hp = p["whh0"].shape[0]

    def gru_layer(inp, wih, whh, bih, bhh):
        def step(h, xt):
            gi = jnp.dot(xt, wih, precision=lax.Precision.HIGHEST) + bih[0]
            gh = jnp.dot(h, whh, precision=lax.Precision.HIGHEST) + bhh[0]
            r = jax.nn.sigmoid(gi[:, :Hp] + gh[:, :Hp])
            z = jax.nn.sigmoid(gi[:, Hp:2 * Hp] + gh[:, Hp:2 * Hp])
            n = jnp.tanh(gi[:, 2 * Hp:] + r * gh[:, 2 * Hp:])
            hn = (1.0 - z) * n + z * h
            return hn, hn

        h0 = jnp.zeros((B, Hp), jnp.float32)
        _, hs = lax.scan(step, h0, jnp.transpose(inp, (1, 0, 2)))
        return jnp.transpose(hs, (1, 0, 2))

    h1 = gru_layer(x, p["wih0"], p["whh0"], p["bih0"], p["bhh0"])
    h2 = gru_layer(h1, p["wih1"], p["whh1"], p["bih1"], p["bhh1"])
    y_hat = jnp.dot(h2, p["w_out"], precision=lax.Precision.HIGHEST) + p["b_out"][0]
    loss = jnp.sum((y - y_hat) ** 2, axis=-1)
    return y_hat, loss


if __name__ == "__main__":
    # Small shapes consistent with the module: batch=2, seq=8, feat=4, hidden=32
    B, T, Cin, Cout, H = 2, 8, 4, 4, 32
    key = jax.random.PRNGKey(0)
    kx, ky, kp = jax.random.split(key, 3)
    x = jax.random.normal(kx, (B, T, Cin), jnp.float32)
    y = jax.random.normal(ky, (B, T, Cout), jnp.float32)
    params = init_params(kp, Cin, Cout, H)

    fwd = jax.jit(cm_baseline_recurrent_forward)
    y_hat, loss = fwd(x, y, params)
    jax.block_until_ready((y_hat, loss))

    assert y_hat.shape == (B, T, Cout)
    assert loss.shape == (B, T)
    assert bool(jnp.all(jnp.isfinite(y_hat))) and bool(jnp.all(jnp.isfinite(loss)))

    y_hat_ref, loss_ref = reference_forward(x, y, params)
    assert bool(jnp.allclose(y_hat, y_hat_ref, atol=2e-2, rtol=2e-2))
    assert bool(jnp.allclose(loss, loss_ref, atol=2e-2, rtol=2e-2))

    print("KERNEL_OK")
</pallas_src>

<mosaic_0001>
module attributes {stable_mosaic.version = 11 : i64} {
  func.func @cm_recurrent_kernel(%arg0: memref<8x2x4xf32, #tpu.memory_space<vmem>>, %arg1: memref<8x2x4xf32, #tpu.memory_space<vmem>>, %arg2: memref<4x384xf32, #tpu.memory_space<vmem>>, %arg3: memref<128x384xf32, #tpu.memory_space<vmem>>, %arg4: memref<1x384xf32, #tpu.memory_space<vmem>>, %arg5: memref<1x384xf32, #tpu.memory_space<vmem>>, %arg6: memref<128x384xf32, #tpu.memory_space<vmem>>, %arg7: memref<128x384xf32, #tpu.memory_space<vmem>>, %arg8: memref<1x384xf32, #tpu.memory_space<vmem>>, %arg9: memref<1x384xf32, #tpu.memory_space<vmem>>, %arg10: memref<128x4xf32, #tpu.memory_space<vmem>>, %arg11: memref<1x4xf32, #tpu.memory_space<vmem>>, %arg12: memref<8x2x4xf32, #tpu.memory_space<vmem>>, %arg13: memref<8x2xf32, #tpu.memory_space<vmem>>, %arg14: memref<8x2x384xf32, #tpu.memory_space<vmem>>, %arg15: memref<8x2x128xf32, #tpu.memory_space<vmem>>) attributes {dimension_semantics = [], scalar_prefetch = 0 : i64, scratch_operands = 2 : i64, tpu.core_type = #tpu.core_type<tc>} {
    %c0 = arith.constant 0 : index
    %c0_0 = arith.constant 0 : index
    %c0_1 = arith.constant 0 : index
    %0 = vector.load %arg0[%c0, %c0_0, %c0_1] : memref<8x2x4xf32, #tpu.memory_space<vmem>>, vector<8x2x4xf32>
    %1 = vector.shape_cast %0 : vector<8x2x4xf32> to vector<16x4xf32>
    %c0_2 = arith.constant 0 : index
    %c0_3 = arith.constant 0 : index
    %2 = vector.load %arg2[%c0_2, %c0_3] : memref<4x384xf32, #tpu.memory_space<vmem>>, vector<4x384xf32>
    %cst = arith.constant dense<0.000000e+00> : vector<16x384xf32>
    %3 = tpu.matmul %1, %2, %cst {dimension_numbers = #tpu.dot_dimension_numbers<[1], [0], [0], [1], [0, 0, 1, 1], [], []>} : vector<16x4xf32>, vector<4x384xf32>, vector<16x384xf32> -> vector<16x384xf32>
    %c0_4 = arith.constant 0 : index
    %c0_5 = arith.constant 0 : index
    %4 = vector.load %arg4[%c0_4, %c0_5] : memref<1x384xf32, #tpu.memory_space<vmem>>, vector<1x384xf32>
    %5 = vector.broadcast %4 : vector<1x384xf32> to vector<16x384xf32>
    %6 = arith.addf %3, %5 : vector<16x384xf32>
    %7 = vector.shape_cast %6 : vector<16x384xf32> to vector<8x2x384xf32>
    %c0_6 = arith.constant 0 : index
    %c0_7 = arith.constant 0 : index
    %c0_8 = arith.constant 0 : index
    %8 = vector.load %arg14[%c0_6, %c0_7, %c0_8] : memref<8x2x384xf32, #tpu.memory_space<vmem>>, vector<8x2x384xf32>
    tpu.vector_store %arg14[%c0_6, %c0_7, %c0_8], %7 {strides = array<i32>} : memref<8x2x384xf32, #tpu.memory_space<vmem>>, vector<8x2x384xf32>,
    %c0_9 = arith.constant 0 : index
    %c0_10 = arith.constant 0 : index
    %9 = vector.load %arg3[%c0_9, %c0_10] : memref<128x384xf32, #tpu.memory_space<vmem>>, vector<128x384xf32>
    %c0_11 = arith.constant 0 : index
    %c0_12 = arith.constant 0 : index
    %10 = vector.load %arg5[%c0_11, %c0_12] : memref<1x384xf32, #tpu.memory_space<vmem>>, vector<1x384xf32>
    %c0_13 = arith.constant 0 : index
    %c0_14 = arith.constant 0 : index
    %11 = vector.load %arg6[%c0_13, %c0_14] : memref<128x384xf32, #tpu.memory_space<vmem>>, vector<128x384xf32>
    %c0_15 = arith.constant 0 : index
    %c0_16 = arith.constant 0 : index
    %12 = vector.load %arg8[%c0_15, %c0_16] : memref<1x384xf32, #tpu.memory_space<vmem>>, vector<1x384xf32>
    %c0_17 = arith.constant 0 : index
    %c0_18 = arith.constant 0 : index
    %13 = vector.load %arg7[%c0_17, %c0_18] : memref<128x384xf32, #tpu.memory_space<vmem>>, vector<128x384xf32>
    %c0_19 = arith.constant 0 : index
    %c0_20 = arith.constant 0 : index
    %14 = vector.load %arg9[%c0_19, %c0_20] : memref<1x384xf32, #tpu.memory_space<vmem>>, vector<1x384xf32>
    %cst_21 = arith.constant 0.000000e+00 : f32
    %15 = vector.broadcast %cst_21 : f32 to vector<2x128xf32>
    %c0_i32 = arith.constant 0 : i32
    %16 = arith.index_cast %c0_i32 : i32 to index
    %c0_22 = arith.constant 0 : index
    %c0_23 = arith.constant 0 : index
    %17 = vector.load %arg14[%16, %c0_22, %c0_23] : memref<8x2x384xf32, #tpu.memory_space<vmem>>, vector<1x2x384xf32>
    %18 = vector.shape_cast %17 : vector<1x2x384xf32> to vector<2x384xf32>
    %cst_24 = arith.constant dense<0.000000e+00> : vector<2x384xf32>
    %19 = tpu.matmul %15, %9, %cst_24 {dimension_numbers = #tpu.dot_dimension_numbers<[1], [0], [0], [1], [0, 0, 1, 1], [], []>} : vector<2x128xf32>, vector<128x384xf32>, vector<2x384xf32> -> vector<2x384xf32>
    %20 = vector.broadcast %10 : vector<1x384xf32> to vector<2x384xf32>
    %21 = arith.addf %19, %20 : vector<2x384xf32>
    %22 = vector.extract_strided_slice %18 {offsets = [0, 0], sizes = [2, 128], strides = [1, 1]} : vector<2x384xf32> to vector<2x128xf32>
    %23 = vector.extract_strided_slice %21 {offsets = [0, 0], sizes = [2, 128], strides = [1, 1]} : vector<2x384xf32> to vector<2x128xf32>
    %24 = arith.addf %22, %23 : vector<2x128xf32>
    %25 = arith.negf %24 : vector<2x128xf32>
    %26 = math.exp %25 : vector<2x128xf32>
    %cst_25 = arith.constant 1.000000e+00 : f32
    %27 = vector.broadcast %cst_25 : f32 to vector<2x128xf32>
    %28 = arith.addf %27, %26 : vector<2x128xf32>
    %29 = arith.divf %27, %28 : vector<2x128xf32>
    %30 = vector.extract_strided_slice %18 {offsets = [0, 128], sizes = [2, 128], strides = [1, 1]} : vector<2x384xf32> to vector<2x128xf32>
    %31 = vector.extract_strided_slice %21 {offsets = [0, 128], sizes = [2, 128], strides = [1, 1]} : vector<2x384xf32> to vector<2x128xf32>
    %32 = arith.addf %30, %31 : vector<2x128xf32>
    %33 = arith.negf %32 : vector<2x128xf32>
    %34 = math.exp %33 : vector<2x128xf32>
    %cst_26 = arith.constant 1.000000e+00 : f32
    %35 = vector.broadcast %cst_26 : f32 to vector<2x128xf32>
    %36 = arith.addf %35, %34 : vector<2x128xf32>
    %37 = arith.divf %35, %36 : vector<2x128xf32>
    %38 = vector.extract_strided_slice %18 {offsets = [0, 256], sizes = [2, 128], strides = [1, 1]} : vector<2x384xf32> to vector<2x128xf32>
    %39 = vector.extract_strided_slice %21 {offsets = [0, 256], sizes = [2, 128], strides = [1, 1]} : vector<2x384xf32> to vector<2x128xf32>
    %40 = arith.mulf %29, %39 : vector<2x128xf32>
    %41 = arith.addf %38, %40 : vector<2x128xf32>
    %42 = math.tanh %41 : vector<2x128xf32>
    %cst_27 = arith.constant 1.000000e+00 : f32
    %43 = vector.broadcast %cst_27 : f32 to vector<2x128xf32>
    %44 = arith.subf %43, %37 : vector<2x128xf32>
    %45 = arith.mulf %44, %42 : vector<2x128xf32>
    %46 = arith.mulf %37, %15 : vector<2x128xf32>
    %47 = arith.addf %45, %46 : vector<2x128xf32>
    %cst_28 = arith.constant dense<0.000000e+00> : vector<2x384xf32>
    %48 = tpu.matmul %47, %11, %cst_28 {dimension_numbers = #tpu.dot_dimension_numbers<[1], [0], [0], [1], [0, 0, 1, 1], [], []>} : vector<2x128xf32>, vector<128x384xf32>, vector<2x384xf32> -> vector<2x384xf32>
    %49 = vector.broadcast %12 : vector<1x384xf32> to vector<2x384xf32>
    %50 = arith.addf %48, %49 : vector<2x384xf32>
    %cst_29 = arith.constant dense<0.000000e+00> : vector<2x384xf32>
    %51 = tpu.matmul %15, %13, %cst_29 {dimension_numbers = #tpu.dot_dimension_numbers<[1], [0], [0], [1], [0, 0, 1, 1], [], []>} : vector<2x128xf32>, vector<128x384xf32>, vector<2x384xf32> -> vector<2x384xf32>
    %52 = vector.broadcast %14 : vector<1x384xf32> to vector<2x384xf32>
    %53 = arith.addf %51, %52 : vector<2x384xf32>
    %54 = vector.extract_strided_slice %50 {offsets = [0, 0], sizes = [2, 128], strides = [1, 1]} : vector<2x384xf32> to vector<2x128xf32>
    %55 = vector.extract_strided_slice %53 {offsets = [0, 0], sizes = [2, 128], strides = [1, 1]} : vector<2x384xf32> to vector<2x128xf32>
    %56 = arith.addf %54, %55 : vector<2x128xf32>
    %57 = arith.negf %56 : vector<2x128xf32>
    %58 = math.exp %57 : vector<2x128xf32>
    %cst_30 = arith.constant 1.000000e+00 : f32
    %59 = vector.broadcast %cst_30 : f32 to vector<2x128xf32>
    %60 = arith.addf %59, %58 : vector<2x128xf32>
    %61 = arith.divf %59, %60 : vector<2x128xf32>
    %62 = vector.extract_strided_slice %50 {offsets = [0, 128], sizes = [2, 128], strides = [1, 1]} : vector<2x384xf32> to vector<2x128xf32>
    %63 = vector.extract_strided_slice %53 {offsets = [0, 128], sizes = [2, 128], strides = [1, 1]} : vector<2x384xf32> to vector<2x128xf32>
    %64 = arith.addf %62, %63 : vector<2x128xf32>
    %65 = arith.negf %64 : vector<2x128xf32>
    %66 = math.exp %65 : vector<2x128xf32>
    %cst_31 = arith.constant 1.000000e+00 : f32
    %67 = vector.broadcast %cst_31 : f32 to vector<2x128xf32>
    %68 = arith.addf %67, %66 : vector<2x128xf32>
    %69 = arith.divf %67, %68 : vector<2x128xf32>
    %70 = vector.extract_strided_slice %50 {offsets = [0, 256], sizes = [2, 128], strides = [1, 1]} : vector<2x384xf32> to vector<2x128xf32>
    %71 = vector.extract_strided_slice %53 {offsets = [0, 256], sizes = [2, 128], strides = [1, 1]} : vector<2x384xf32> to vector<2x128xf32>
    %72 = arith.mulf %61, %71 : vector<2x128xf32>
    %73 = arith.addf %70, %72 : vector<2x128xf32>
    %74 = math.tanh %73 : vector<2x128xf32>
    %cst_32 = arith.constant 1.000000e+00 : f32
    %75 = vector.broadcast %cst_32 : f32 to vector<2x128xf32>
    %76 = arith.subf %75, %69 : vector<2x128xf32>
    %77 = arith.mulf %76, %74 : vector<2x128xf32>
    %78 = arith.mulf %69, %15 : vector<2x128xf32>
    %79 = arith.addf %77, %78 : vector<2x128xf32>
    %80 = arith.index_cast %c0_i32 : i32 to index
    %c0_33 = arith.constant 0 : index
    %c0_34 = arith.constant 0 : index
    %81 = vector.load %arg15[%80, %c0_33, %c0_34] : memref<8x2x128xf32, #tpu.memory_space<vmem>>, vector<1x2x128xf32>
    %82 = vector.shape_cast %81 : vector<1x2x128xf32> to vector<2x128xf32>
    %83 = vector.shape_cast %79 : vector<2x128xf32> to vector<1x2x128xf32>
    tpu.vector_store %arg15[%80, %c0_33, %c0_34], %83 {strides = array<i32>} : memref<8x2x128xf32, #tpu.memory_space<vmem>>, vector<1x2x128xf32>,
    %c1_i32 = arith.constant 1 : i32
    %84 = arith.index_cast %c1_i32 : i32 to index
    %c0_35 = arith.constant 0 : index
    %c0_36 = arith.constant 0 : index
    %85 = vector.load %arg14[%84, %c0_35, %c0_36] : memref<8x2x384xf32, #tpu.memory_space<vmem>>, vector<1x2x384xf32>
    %86 = vector.shape_cast %85 : vector<1x2x384xf32> to vector<2x384xf32>
    %cst_37 = arith.constant dense<0.000000e+00> : vector<2x384xf32>
    %87 = tpu.matmul %47, %9, %cst_37 {dimension_numbers = #tpu.dot_dimension_numbers<[1], [0], [0], [1], [0, 0, 1, 1], [], []>} : vector<2x128xf32>, vector<128x384xf32>, vector<2x384xf32> -> vector<2x384xf32>
    %88 = vector.broadcast %10 : vector<1x384xf32> to vector<2x384xf32>
    %89 = arith.addf %87, %88 : vector<2x384xf32>
    %90 = vector.extract_strided_slice %86 {offsets = [0, 0], sizes = [2, 128], strides = [1, 1]} : vector<2x384xf32> to vector<2x128xf32>
    %91 = vector.extract_strided_slice %89 {offsets = [0, 0], sizes = [2, 128], strides = [1, 1]} : vector<2x384xf32> to vector<2x128xf32>
    %92 = arith.addf %90, %91 : vector<2x128xf32>
    %93 = arith.negf %92 : vector<2x128xf32>
    %94 = math.exp %93 : vector<2x128xf32>
    %cst_38 = arith.constant 1.000000e+00 : f32
    %95 = vector.broadcast %cst_38 : f32 to vector<2x128xf32>
    %96 = arith.addf %95, %94 : vector<2x128xf32>
    %97 = arith.divf %95, %96 : vector<2x128xf32>
    %98 = vector.extract_strided_slice %86 {offsets = [0, 128], sizes = [2, 128], strides = [1, 1]} : vector<2x384xf32> to vector<2x128xf32>
    %99 = vector.extract_strided_slice %89 {offsets = [0, 128], sizes = [2, 128], strides = [1, 1]} : vector<2x384xf32> to vector<2x128xf32>
    %100 = arith.addf %98, %99 : vector<2x128xf32>
    %101 = arith.negf %100 : vector<2x128xf32>
    %102 = math.exp %101 : vector<2x128xf32>
    %cst_39 = arith.constant 1.000000e+00 : f32
    %103 = vector.broadcast %cst_39 : f32 to vector<2x128xf32>
    %104 = arith.addf %103, %102 : vector<2x128xf32>
    %105 = arith.divf %103, %104 : vector<2x128xf32>
    %106 = vector.extract_strided_slice %86 {offsets = [0, 256], sizes = [2, 128], strides = [1, 1]} : vector<2x384xf32> to vector<2x128xf32>
    %107 = vector.extract_strided_slice %89 {offsets = [0, 256], sizes = [2, 128], strides = [1, 1]} : vector<2x384xf32> to vector<2x128xf32>
    %108 = arith.mulf %97, %107 : vector<2x128xf32>
    %109 = arith.addf %106, %108 : vector<2x128xf32>
    %110 = math.tanh %109 : vector<2x128xf32>
    %cst_40 = arith.constant 1.000000e+00 : f32
    %111 = vector.broadcast %cst_40 : f32 to vector<2x128xf32>
    %112 = arith.subf %111, %105 : vector<2x128xf32>
    %113 = arith.mulf %112, %110 : vector<2x128xf32>
    %114 = arith.mulf %105, %47 : vector<2x128xf32>
    %115 = arith.addf %113, %114 : vector<2x128xf32>
    %cst_41 = arith.constant dense<0.000000e+00> : vector<2x384xf32>
    %116 = tpu.matmul %115, %11, %cst_41 {dimension_numbers = #tpu.dot_dimension_numbers<[1], [0], [0], [1], [0, 0, 1, 1], [], []>} : vector<2x128xf32>, vector<128x384xf32>, vector<2x384xf32> -> vector<2x384xf32>
    %117 = vector.broadcast %12 : vector<1x384xf32> to vector<2x384xf32>
    %118 = arith.addf %116, %117 : vector<2x384xf32>
    %cst_42 = arith.constant dense<0.000000e+00> : vector<2x384xf32>
    %119 = tpu.matmul %79, %13, %cst_42 {dimension_numbers = #tpu.dot_dimension_numbers<[1], [0], [0], [1], [0, 0, 1, 1], [], []>} : vector<2x128xf32>, vector<128x384xf32>, vector<2x384xf32> -> vector<2x384xf32>
    %120 = vector.broadcast %14 : vector<1x384xf32> to vector<2x384xf32>
    %121 = arith.addf %119, %120 : vector<2x384xf32>
    %122 = vector.extract_strided_slice %118 {offsets = [0, 0], sizes = [2, 128], strides = [1, 1]} : vector<2x384xf32> to vector<2x128xf32>
    %123 = vector.extract_strided_slice %121 {offsets = [0, 0], sizes = [2, 128], strides = [1, 1]} : vector<2x384xf32> to vector<2x128xf32>
    %124 = arith.addf %122, %123 : vector<2x128xf32>
    %125 = arith.negf %124 : vector<2x128xf32>
    %126 = math.exp %125 : vector<2x128xf32>
    %cst_43 = arith.constant 1.000000e+00 : f32
    %127 = vector.broadcast %cst_43 : f32 to vector<2x128xf32>
    %128 = arith.addf %127, %126 : vector<2x128xf32>
    %129 = arith.divf %127, %128 : vector<2x128xf32>
    %130 = vector.extract_strided_slice %118 {offsets = [0, 128], sizes = [2, 128], strides = [1, 1]} : vector<2x384xf32> to vector<2x128xf32>
    %131 = vector.extract_strided_slice %121 {offsets = [0, 128], sizes = [2, 128], strides = [1, 1]} : vector<2x384xf32> to vector<2x128xf32>
    %132 = arith.addf %130, %131 : vector<2x128xf32>
    %133 = arith.negf %132 : vector<2x128xf32>
    %134 = math.exp %133 : vector<2x128xf32>
    %cst_44 = arith.constant 1.000000e+00 : f32
    %135 = vector.broadcast %cst_44 : f32 to vector<2x128xf32>
    %136 = arith.addf %135, %134 : vector<2x128xf32>
    %137 = arith.divf %135, %136 : vector<2x128xf32>
    %138 = vector.extract_strided_slice %118 {offsets = [0, 256], sizes = [2, 128], strides = [1, 1]} : vector<2x384xf32> to vector<2x128xf32>
    %139 = vector.extract_strided_slice %121 {offsets = [0, 256], sizes = [2, 128], strides = [1, 1]} : vector<2x384xf32> to vector<2x128xf32>
    %140 = arith.mulf %129, %139 : vector<2x128xf32>
    %141 = arith.addf %138, %140 : vector<2x128xf32>
    %142 = math.tanh %141 : vector<2x128xf32>
    %cst_45 = arith.constant 1.000000e+00 : f32
    %143 = vector.broadcast %cst_45 : f32 to vector<2x128xf32>
    %144 = arith.subf %143, %137 : vector<2x128xf32>
    %145 = arith.mulf %144, %142 : vector<2x128xf32>
    %146 = arith.mulf %137, %79 : vector<2x128xf32>
    %147 = arith.addf %145, %146 : vector<2x128xf32>
    %148 = arith.index_cast %c1_i32 : i32 to index
    %c0_46 = arith.constant 0 : index
    %c0_47 = arith.constant 0 : index
    %149 = vector.load %arg15[%148, %c0_46, %c0_47] : memref<8x2x128xf32, #tpu.memory_space<vmem>>, vector<1x2x128xf32>
    %150 = vector.shape_cast %149 : vector<1x2x128xf32> to vector<2x128xf32>
    %151 = vector.shape_cast %147 : vector<2x128xf32> to vector<1x2x128xf32>
    tpu.vector_store %arg15[%148, %c0_46, %c0_47], %151 {strides = array<i32>} : memref<8x2x128xf32, #tpu.memory_space<vmem>>, vector<1x2x128xf32>,
    %c2_i32 = arith.constant 2 : i32
    %152 = arith.index_cast %c2_i32 : i32 to index
    %c0_48 = arith.constant 0 : index
    %c0_49 = arith.constant 0 : index
    %153 = vector.load %arg14[%152, %c0_48, %c0_49] : memref<8x2x384xf32, #tpu.memory_space<vmem>>, vector<1x2x384xf32>
    %154 = vector.shape_cast %153 : vector<1x2x384xf32> to vector<2x384xf32>
    %cst_50 = arith.constant dense<0.000000e+00> : vector<2x384xf32>
    %155 = tpu.matmul %115, %9, %cst_50 {dimension_numbers = #tpu.dot_dimension_numbers<[1], [0], [0], [1], [0, 0, 1, 1], [], []>} : vector<2x128xf32>, vector<128x384xf32>, vector<2x384xf32> -> vector<2x384xf32>
    %156 = vector.broadcast %10 : vector<1x384xf32> to vector<2x384xf32>
    %157 = arith.addf %155, %156 : vector<2x384xf32>
    %158 = vector.extract_strided_slice %154 {offsets = [0, 0], sizes = [2, 128], strides = [1, 1]} : vector<2x384xf32> to vector<2x128xf32>
    %159 = vector.extract_strided_slice %157 {offsets = [0, 0], sizes = [2, 128], strides = [1, 1]} : vector<2x384xf32> to vector<2x128xf32>
    %160 = arith.addf %158, %159 : vector<2x128xf32>
    %161 = arith.negf %160 : vector<2x128xf32>
    %162 = math.exp %161 : vector<2x128xf32>
    %cst_51 = arith.constant 1.000000e+00 : f32
    %163 = vector.broadcast %cst_51 : f32 to vector<2x128xf32>
    %164 = arith.addf %163, %162 : vector<2x128xf32>
    %165 = arith.divf %163, %164 : vector<2x128xf32>
    %166 = vector.extract_strided_slice %154 {offsets = [0, 128], sizes = [2, 128], strides = [1, 1]} : vector<2x384xf32> to vector<2x128xf32>
    %167 = vector.extract_strided_slice %157 {offsets = [0, 128], sizes = [2, 128], strides = [1, 1]} : vector<2x384xf32> to vector<2x128xf32>
    %168 = arith.addf %166, %167 : vector<2x128xf32>
    %169 = arith.negf %168 : vector<2x128xf32>
    %170 = math.exp %169 : vector<2x128xf32>
    %cst_52 = arith.constant 1.000000e+00 : f32
    %171 = vector.broadcast %cst_52 : f32 to vector<2x128xf32>
    %172 = arith.addf %171, %170 : vector<2x128xf32>
    %173 = arith.divf %171, %172 : vector<2x128xf32>
    %174 = vector.extract_strided_slice %154 {offsets = [0, 256], sizes = [2, 128], strides = [1, 1]} : vector<2x384xf32> to vector<2x128xf32>
    %175 = vector.extract_strided_slice %157 {offsets = [0, 256], sizes = [2, 128], strides = [1, 1]} : vector<2x384xf32> to vector<2x128xf32>
    %176 = arith.mulf %165, %175 : vector<2x128xf32>
    %177 = arith.addf %174, %176 : vector<2x128xf32>
    %178 = math.tanh %177 : vector<2x128xf32>
    %cst_53 = arith.constant 1.000000e+00 : f32
    %179 = vector.broadcast %cst_53 : f32 to vector<2x128xf32>
    %180 = arith.subf %179, %173 : vector<2x128xf32>
    %181 = arith.mulf %180, %178 : vector<2x128xf32>
    %182 = arith.mulf %173, %115 : vector<2x128xf32>
    %183 = arith.addf %181, %182 : vector<2x128xf32>
    %cst_54 = arith.constant dense<0.000000e+00> : vector<2x384xf32>
    %184 = tpu.matmul %183, %11, %cst_54 {dimension_numbers = #tpu.dot_dimension_numbers<[1], [0], [0], [1], [0, 0, 1, 1], [], []>} : vector<2x128xf32>, vector<128x384xf32>, vector<2x384xf32> -> vector<2x384xf32>
    %185 = vector.broadcast %12 : vector<1x384xf32> to vector<2x384xf32>
    %186 = arith.addf %184, %185 : vector<2x384xf32>
    %cst_55 = arith.constant dense<0.000000e+00> : vector<2x384xf32>
    %187 = tpu.matmul %147, %13, %cst_55 {dimension_numbers = #tpu.dot_dimension_numbers<[1], [0], [0], [1], [0, 0, 1, 1], [], []>} : vector<2x128xf32>, vector<128x384xf32>, vector<2x384xf32> -> vector<2x384xf32>
    %188 = vector.broadcast %14 : vector<1x384xf32> to vector<2x384xf32>
    %189 = arith.addf %187, %188 : vector<2x384xf32>
    %190 = vector.extract_strided_slice %186 {offsets = [0, 0], sizes = [2, 128], strides = [1, 1]} : vector<2x384xf32> to vector<2x128xf32>
    %191 = vector.extract_strided_slice %189 {offsets = [0, 0], sizes = [2, 128], strides = [1, 1]} : vector<2x384xf32> to vector<2x128xf32>
    %192 = arith.addf %190, %191 : vector<2x128xf32>
    %193 = arith.negf %192 : vector<2x128xf32>
    %194 = math.exp %193 : vector<2x128xf32>
    %cst_56 = arith.constant 1.000000e+00 : f32
    %195 = vector.broadcast %cst_56 : f32 to vector<2x128xf32>
    %196 = arith.addf %195, %194 : vector<2x128xf32>
    %197 = arith.divf %195, %196 : vector<2x128xf32>
    %198 = vector.extract_strided_slice %186 {offsets = [0, 128], sizes = [2, 128], strides = [1, 1]} : vector<2x384xf32> to vector<2x128xf32>
    %199 = vector.extract_strided_slice %189 {offsets = [0, 128], sizes = [2, 128], strides = [1, 1]} : vector<2x384xf32> to vector<2x128xf32>
    %200 = arith.addf %198, %199 : vector<2x128xf32>
    %201 = arith.negf %200 : vector<2x128xf32>
    %202 = math.exp %201 : vector<2x128xf32>
    %cst_57 = arith.constant 1.000000e+00 : f32
    %203 = vector.broadcast %cst_57 : f32 to vector<2x128xf32>
    %204 = arith.addf %203, %202 : vector<2x128xf32>
    %205 = arith.divf %203, %204 : vector<2x128xf32>
    %206 = vector.extract_strided_slice %186 {offsets = [0, 256], sizes = [2, 128], strides = [1, 1]} : vector<2x384xf32> to vector<2x128xf32>
    %207 = vector.extract_strided_slice %189 {offsets = [0, 256], sizes = [2, 128], strides = [1, 1]} : vector<2x384xf32> to vector<2x128xf32>
    %208 = arith.mulf %197, %207 : vector<2x128xf32>
    %209 = arith.addf %206, %208 : vector<2x128xf32>
    %210 = math.tanh %209 : vector<2x128xf32>
    %cst_58 = arith.constant 1.000000e+00 : f32
    %211 = vector.broadcast %cst_58 : f32 to vector<2x128xf32>
    %212 = arith.subf %211, %205 : vector<2x128xf32>
    %213 = arith.mulf %212, %210 : vector<2x128xf32>
    %214 = arith.mulf %205, %147 : vector<2x128xf32>
    %215 = arith.addf %213, %214 : vector<2x128xf32>
    %216 = arith.index_cast %c2_i32 : i32 to index
    %c0_59 = arith.constant 0 : index
    %c0_60 = arith.constant 0 : index
    %217 = vector.load %arg15[%216, %c0_59, %c0_60] : memref<8x2x128xf32, #tpu.memory_space<vmem>>, vector<1x2x128xf32>
    %218 = vector.shape_cast %217 : vector<1x2x128xf32> to vector<2x128xf32>
    %219 = vector.shape_cast %215 : vector<2x128xf32> to vector<1x2x128xf32>
    tpu.vector_store %arg15[%216, %c0_59, %c0_60], %219 {strides = array<i32>} : memref<8x2x128xf32, #tpu.memory_space<vmem>>, vector<1x2x128xf32>,
    %c3_i32 = arith.constant 3 : i32
    %220 = arith.index_cast %c3_i32 : i32 to index
    %c0_61 = arith.constant 0 : index
    %c0_62 = arith.constant 0 : index
    %221 = vector.load %arg14[%220, %c0_61, %c0_62] : memref<8x2x384xf32, #tpu.memory_space<vmem>>, vector<1x2x384xf32>
    %222 = vector.shape_cast %221 : vector<1x2x384xf32> to vector<2x384xf32>
    %cst_63 = arith.constant dense<0.000000e+00> : vector<2x384xf32>
    %223 = tpu.matmul %183, %9, %cst_63 {dimension_numbers = #tpu.dot_dimension_numbers<[1], [0], [0], [1], [0, 0, 1, 1], [], []>} : vector<2x128xf32>, vector<128x384xf32>, vector<2x384xf32> -> vector<2x384xf32>
    %224 = vector.broadcast %10 : vector<1x384xf32> to vector<2x384xf32>
    %225 = arith.addf %223, %224 : vector<2x384xf32>
    %226 = vector.extract_strided_slice %222 {offsets = [0, 0], sizes = [2, 128], strides = [1, 1]} : vector<2x384xf32> to vector<2x128xf32>
    %227 = vector.extract_strided_slice %225 {offsets = [0, 0], sizes = [2, 128], strides = [1, 1]} : vector<2x384xf32> to vector<2x128xf32>
    %228 = arith.addf %226, %227 : vector<2x128xf32>
    %229 = arith.negf %228 : vector<2x128xf32>
    %230 = math.exp %229 : vector<2x128xf32>
    %cst_64 = arith.constant 1.000000e+00 : f32
    %231 = vector.broadcast %cst_64 : f32 to vector<2x128xf32>
    %232 = arith.addf %231, %230 : vector<2x128xf32>
    %233 = arith.divf %231, %232 : vector<2x128xf32>
    %234 = vector.extract_strided_slice %222 {offsets = [0, 128], sizes = [2, 128], strides = [1, 1]} : vector<2x384xf32> to vector<2x128xf32>
    %235 = vector.extract_strided_slice %225 {offsets = [0, 128], sizes = [2, 128], strides = [1, 1]} : vector<2x384xf32> to vector<2x128xf32>
    %236 = arith.addf %234, %235 : vector<2x128xf32>
    %237 = arith.negf %236 : vector<2x128xf32>
    %238 = math.exp %237 : vector<2x128xf32>
    %cst_65 = arith.constant 1.000000e+00 : f32
    %239 = vector.broadcast %cst_65 : f32 to vector<2x128xf32>
    %240 = arith.addf %239, %238 : vector<2x128xf32>
    %241 = arith.divf %239, %240 : vector<2x128xf32>
    %242 = vector.extract_strided_slice %222 {offsets = [0, 256], sizes = [2, 128], strides = [1, 1]} : vector<2x384xf32> to vector<2x128xf32>
    %243 = vector.extract_strided_slice %225 {offsets = [0, 256], sizes = [2, 128], strides = [1, 1]} : vector<2x384xf32> to vector<2x128xf32>
    %244 = arith.mulf %233, %243 : vector<2x128xf32>
    %245 = arith.addf %242, %244 : vector<2x128xf32>
    %246 = math.tanh %245 : vector<2x128xf32>
    %cst_66 = arith.constant 1.000000e+00 : f32
    %247 = vector.broadcast %cst_66 : f32 to vector<2x128xf32>
    %248 = arith.subf %247, %241 : vector<2x128xf32>
    %249 = arith.mulf %248, %246 : vector<2x128xf32>
    %250 = arith.mulf %241, %183 : vector<2x128xf32>
    %251 = arith.addf %249, %250 : vector<2x128xf32>
    %cst_67 = arith.constant dense<0.000000e+00> : vector<2x384xf32>
    %252 = tpu.matmul %251, %11, %cst_67 {dimension_numbers = #tpu.dot_dimension_numbers<[1], [0], [0], [1], [0, 0, 1, 1], [], []>} : vector<2x128xf32>, vector<128x384xf32>, vector<2x384xf32> -> vector<2x384xf32>
    %253 = vector.broadcast %12 : vector<1x384xf32> to vector<2x384xf32>
    %254 = arith.addf %252, %253 : vector<2x384xf32>
    %cst_68 = arith.constant dense<0.000000e+00> : vector<2x384xf32>
    %255 = tpu.matmul %215, %13, %cst_68 {dimension_numbers = #tpu.dot_dimension_numbers<[1], [0], [0], [1], [0, 0, 1, 1], [], []>} : vector<2x128xf32>, vector<128x384xf32>, vector<2x384xf32> -> vector<2x384xf32>
    %256 = vector.broadcast %14 : vector<1x384xf32> to vector<2x384xf32>
    %257 = arith.addf %255, %256 : vector<2x384xf32>
    %258 = vector.extract_strided_slice %254 {offsets = [0, 0], sizes = [2, 128], strides = [1, 1]} : vector<2x384xf32> to vector<2x128xf32>
    %259 = vector.extract_strided_slice %257 {offsets = [0, 0], sizes = [2, 128], strides = [1, 1]} : vector<2x384xf32> to vector<2x128xf32>
    %260 = arith.addf %258, %259 : vector<2x128xf32>
    %261 = arith.negf %260 : vector<2x128xf32>
    %262 = math.exp %261 : vector<2x128xf32>
    %cst_69 = arith.constant 1.000000e+00 : f32
    %263 = vector.broadcast %cst_69 : f32 to vector<2x128xf32>
    %264 = arith.addf %263, %262 : vector<2x128xf32>
    %265 = arith.divf %263, %264 : vector<2x128xf32>
    %266 = vector.extract_strided_slice %254 {offsets = [0, 128], sizes = [2, 128], strides = [1, 1]} : vector<2x384xf32> to vector<2x128xf32>
    %267 = vector.extract_strided_slice %257 {offsets = [0, 128], sizes = [2, 128], strides = [1, 1]} : vector<2x384xf32> to vector<2x128xf32>
    %268 = arith.addf %266, %267 : vector<2x128xf32>
    %269 = arith.negf %268 : vector<2x128xf32>
    %270 = math.exp %269 : vector<2x128xf32>
    %cst_70 = arith.constant 1.000000e+00 : f32
    %271 = vector.broadcast %cst_70 : f32 to vector<2x128xf32>
    %272 = arith.addf %271, %270 : vector<2x128xf32>
    %273 = arith.divf %271, %272 : vector<2x128xf32>
    %274 = vector.extract_strided_slice %254 {offsets = [0, 256], sizes = [2, 128], strides = [1, 1]} : vector<2x384xf32> to vector<2x128xf32>
    %275 = vector.extract_strided_slice %257 {offsets = [0, 256], sizes = [2, 128], strides = [1, 1]} : vector<2x384xf32> to vector<2x128xf32>
    %276 = arith.mulf %265, %275 : vector<2x128xf32>
    %277 = arith.addf %274, %276 : vector<2x128xf32>
    %278 = math.tanh %277 : vector<2x128xf32>
    %cst_71 = arith.constant 1.000000e+00 : f32
    %279 = vector.broadcast %cst_71 : f32 to vector<2x128xf32>
    %280 = arith.subf %279, %273 : vector<2x128xf32>
    %281 = arith.mulf %280, %278 : vector<2x128xf32>
    %282 = arith.mulf %273, %215 : vector<2x128xf32>
    %283 = arith.addf %281, %282 : vector<2x128xf32>
    %284 = arith.index_cast %c3_i32 : i32 to index
    %c0_72 = arith.constant 0 : index
    %c0_73 = arith.constant 0 : index
    %285 = vector.load %arg15[%284, %c0_72, %c0_73] : memref<8x2x128xf32, #tpu.memory_space<vmem>>, vector<1x2x128xf32>
    %286 = vector.shape_cast %285 : vector<1x2x128xf32> to vector<2x128xf32>
    %287 = vector.shape_cast %283 : vector<2x128xf32> to vector<1x2x128xf32>
    tpu.vector_store %arg15[%284, %c0_72, %c0_73], %287 {strides = array<i32>} : memref<8x2x128xf32, #tpu.memory_space<vmem>>, vector<1x2x128xf32>,
    %c4_i32 = arith.constant 4 : i32
    %288 = arith.index_cast %c4_i32 : i32 to index
    %c0_74 = arith.constant 0 : index
    %c0_75 = arith.constant 0 : index
    %289 = vector.load %arg14[%288, %c0_74, %c0_75] : memref<8x2x384xf32, #tpu.memory_space<vmem>>, vector<1x2x384xf32>
    %290 = vector.shape_cast %289 : vector<1x2x384xf32> to vector<2x384xf32>
    %cst_76 = arith.constant dense<0.000000e+00> : vector<2x384xf32>
    %291 = tpu.matmul %251, %9, %cst_76 {dimension_numbers = #tpu.dot_dimension_numbers<[1], [0], [0], [1], [0, 0, 1, 1], [], []>} : vector<2x128xf32>, vector<128x384xf32>, vector<2x384xf32> -> vector<2x384xf32>
    %292 = vector.broadcast %10 : vector<1x384xf32> to vector<2x384xf32>
    %293 = arith.addf %291, %292 : vector<2x384xf32>
    %294 = vector.extract_strided_slice %290 {offsets = [0, 0], sizes = [2, 128], strides = [1, 1]} : vector<2x384xf32> to vector<2x128xf32>
    %295 = vector.extract_strided_slice %293 {offsets = [0, 0], sizes = [2, 128], strides = [1, 1]} : vector<2x384xf32> to vector<2x128xf32>
    %296 = arith.addf %294, %295 : vector<2x128xf32>
    %297 = arith.negf %296 : vector<2x128xf32>
    %298 = math.exp %297 : vector<2x128xf32>
    %cst_77 = arith.constant 1.000000e+00 : f32
    %299 = vector.broadcast %cst_77 : f32 to vector<2x128xf32>
    %300 = arith.addf %299, %298 : vector<2x128xf32>
    %301 = arith.divf %299, %300 : vector<2x128xf32>
    %302 = vector.extract_strided_slice %290 {offsets = [0, 128], sizes = [2, 128], strides = [1, 1]} : vector<2x384xf32> to vector<2x128xf32>
    %303 = vector.extract_strided_slice %293 {offsets = [0, 128], sizes = [2, 128], strides = [1, 1]} : vector<2x384xf32> to vector<2x128xf32>
    %304 = arith.addf %302, %303 : vector<2x128xf32>
    %305 = arith.negf %304 : vector<2x128xf32>
    %306 = math.exp %305 : vector<2x128xf32>
    %cst_78 = arith.constant 1.000000e+00 : f32
    %307 = vector.broadcast %cst_78 : f32 to vector<2x128xf32>
    %308 = arith.addf %307, %306 : vector<2x128xf32>
    %309 = arith.divf %307, %308 : vector<2x128xf32>
    %310 = vector.extract_strided_slice %290 {offsets = [0, 256], sizes = [2, 128], strides = [1, 1]} : vector<2x384xf32> to vector<2x128xf32>
    %311 = vector.extract_strided_slice %293 {offsets = [0, 256], sizes = [2, 128], strides = [1, 1]} : vector<2x384xf32> to vector<2x128xf32>
    %312 = arith.mulf %301, %311 : vector<2x128xf32>
    %313 = arith.addf %310, %312 : vector<2x128xf32>
    %314 = math.tanh %313 : vector<2x128xf32>
    %cst_79 = arith.constant 1.000000e+00 : f32
    %315 = vector.broadcast %cst_79 : f32 to vector<2x128xf32>
    %316 = arith.subf %315, %309 : vector<2x128xf32>
    %317 = arith.mulf %316, %314 : vector<2x128xf32>
    %318 = arith.mulf %309, %251 : vector<2x128xf32>
    %319 = arith.addf %317, %318 : vector<2x128xf32>
    %cst_80 = arith.constant dense<0.000000e+00> : vector<2x384xf32>
    %320 = tpu.matmul %319, %11, %cst_80 {dimension_numbers = #tpu.dot_dimension_numbers<[1], [0], [0], [1], [0, 0, 1, 1], [], []>} : vector<2x128xf32>, vector<128x384xf32>, vector<2x384xf32> -> vector<2x384xf32>
    %321 = vector.broadcast %12 : vector<1x384xf32> to vector<2x384xf32>
    %322 = arith.addf %320, %321 : vector<2x384xf32>
    %cst_81 = arith.constant dense<0.000000e+00> : vector<2x384xf32>
    %323 = tpu.matmul %283, %13, %cst_81 {dimension_numbers = #tpu.dot_dimension_numbers<[1], [0], [0], [1], [0, 0, 1, 1], [], []>} : vector<2x128xf32>, vector<128x384xf32>, vector<2x384xf32> -> vector<2x384xf32>
    %324 = vector.broadcast %14 : vector<1x384xf32> to vector<2x384xf32>
    %325 = arith.addf %323, %324 : vector<2x384xf32>
    %326 = vector.extract_strided_slice %322 {offsets = [0, 0], sizes = [2, 128], strides = [1, 1]} : vector<2x384xf32> to vector<2x128xf32>
    %327 = vector.extract_strided_slice %325 {offsets = [0, 0], sizes = [2, 128], strides = [1, 1]} : vector<2x384xf32> to vector<2x128xf32>
    %328 = arith.addf %326, %327 : vector<2x128xf32>
    %329 = arith.negf %328 : vector<2x128xf32>
    %330 = math.exp %329 : vector<2x128xf32>
    %cst_82 = arith.constant 1.000000e+00 : f32
    %331 = vector.broadcast %cst_82 : f32 to vector<2x128xf32>
    %332 = arith.addf %331, %330 : vector<2x128xf32>
    %333 = arith.divf %331, %332 : vector<2x128xf32>
    %334 = vector.extract_strided_slice %322 {offsets = [0, 128], sizes = [2, 128], strides = [1, 1]} : vector<2x384xf32> to vector<2x128xf32>
    %335 = vector.extract_strided_slice %325 {offsets = [0, 128], sizes = [2, 128], strides = [1, 1]} : vector<2x384xf32> to vector<2x128xf32>
    %336 = arith.addf %334, %335 : vector<2x128xf32>
    %337 = arith.negf %336 : vector<2x128xf32>
    %338 = math.exp %337 : vector<2x128xf32>
    %cst_83 = arith.constant 1.000000e+00 : f32
    %339 = vector.broadcast %cst_83 : f32 to vector<2x128xf32>
    %340 = arith.addf %339, %338 : vector<2x128xf32>
    %341 = arith.divf %339, %340 : vector<2x128xf32>
    %342 = vector.extract_strided_slice %322 {offsets = [0, 256], sizes = [2, 128], strides = [1, 1]} : vector<2x384xf32> to vector<2x128xf32>
    %343 = vector.extract_strided_slice %325 {offsets = [0, 256], sizes = [2, 128], strides = [1, 1]} : vector<2x384xf32> to vector<2x128xf32>
    %344 = arith.mulf %333, %343 : vector<2x128xf32>
    %345 = arith.addf %342, %344 : vector<2x128xf32>
    %346 = math.tanh %345 : vector<2x128xf32>
    %cst_84 = arith.constant 1.000000e+00 : f32
    %347 = vector.broadcast %cst_84 : f32 to vector<2x128xf32>
    %348 = arith.subf %347, %341 : vector<2x128xf32>
    %349 = arith.mulf %348, %346 : vector<2x128xf32>
    %350 = arith.mulf %341, %283 : vector<2x128xf32>
    %351 = arith.addf %349, %350 : vector<2x128xf32>
    %352 = arith.index_cast %c4_i32 : i32 to index
    %c0_85 = arith.constant 0 : index
    %c0_86 = arith.constant 0 : index
    %353 = vector.load %arg15[%352, %c0_85, %c0_86] : memref<8x2x128xf32, #tpu.memory_space<vmem>>, vector<1x2x128xf32>
    %354 = vector.shape_cast %353 : vector<1x2x128xf32> to vector<2x128xf32>
    %355 = vector.shape_cast %351 : vector<2x128xf32> to vector<1x2x128xf32>
    tpu.vector_store %arg15[%352, %c0_85, %c0_86], %355 {strides = array<i32>} : memref<8x2x128xf32, #tpu.memory_space<vmem>>, vector<1x2x128xf32>,
    %c5_i32 = arith.constant 5 : i32
    %356 = arith.index_cast %c5_i32 : i32 to index
    %c0_87 = arith.constant 0 : index
    %c0_88 = arith.constant 0 : index
    %357 = vector.load %arg14[%356, %c0_87, %c0_88] : memref<8x2x384xf32, #tpu.memory_space<vmem>>, vector<1x2x384xf32>
    %358 = vector.shape_cast %357 : vector<1x2x384xf32> to vector<2x384xf32>
    %cst_89 = arith.constant dense<0.000000e+00> : vector<2x384xf32>
    %359 = tpu.matmul %319, %9, %cst_89 {dimension_numbers = #tpu.dot_dimension_numbers<[1], [0], [0], [1], [0, 0, 1, 1], [], []>} : vector<2x128xf32>, vector<128x384xf32>, vector<2x384xf32> -> vector<2x384xf32>
    %360 = vector.broadcast %10 : vector<1x384xf32> to vector<2x384xf32>
    %361 = arith.addf %359, %360 : vector<2x384xf32>
    %362 = vector.extract_strided_slice %358 {offsets = [0, 0], sizes = [2, 128], strides = [1, 1]} : vector<2x384xf32> to vector<2x128xf32>
    %363 = vector.extract_strided_slice %361 {offsets = [0, 0], sizes = [2, 128], strides = [1, 1]} : vector<2x384xf32> to vector<2x128xf32>
    %364 = arith.addf %362, %363 : vector<2x128xf32>
    %365 = arith.negf %364 : vector<2x128xf32>
    %366 = math.exp %365 : vector<2x128xf32>
    %cst_90 = arith.constant 1.000000e+00 : f32
    %367 = vector.broadcast %cst_90 : f32 to vector<2x128xf32>
    %368 = arith.addf %367, %366 : vector<2x128xf32>
    %369 = arith.divf %367, %368 : vector<2x128xf32>
    %370 = vector.extract_strided_slice %358 {offsets = [0, 128], sizes = [2, 128], strides = [1, 1]} : vector<2x384xf32> to vector<2x128xf32>
    %371 = vector.extract_strided_slice %361 {offsets = [0, 128], sizes = [2, 128], strides = [1, 1]} : vector<2x384xf32> to vector<2x128xf32>
    %372 = arith.addf %370, %371 : vector<2x128xf32>
    %373 = arith.negf %372 : vector<2x128xf32>
    %374 = math.exp %373 : vector<2x128xf32>
    %cst_91 = arith.constant 1.000000e+00 : f32
    %375 = vector.broadcast %cst_91 : f32 to vector<2x128xf32>
    %376 = arith.addf %375, %374 : vector<2x128xf32>
    %377 = arith.divf %375, %376 : vector<2x128xf32>
    %378 = vector.extract_strided_slice %358 {offsets = [0, 256], sizes = [2, 128], strides = [1, 1]} : vector<2x384xf32> to vector<2x128xf32>
    %379 = vector.extract_strided_slice %361 {offsets = [0, 256], sizes = [2, 128], strides = [1, 1]} : vector<2x384xf32> to vector<2x128xf32>
    %380 = arith.mulf %369, %379 : vector<2x128xf32>
    %381 = arith.addf %378, %380 : vector<2x128xf32>
    %382 = math.tanh %381 : vector<2x128xf32>
    %cst_92 = arith.constant 1.000000e+00 : f32
    %383 = vector.broadcast %cst_92 : f32 to vector<2x128xf32>
    %384 = arith.subf %383, %377 : vector<2x128xf32>
    %385 = arith.mulf %384, %382 : vector<2x128xf32>
    %386 = arith.mulf %377, %319 : vector<2x128xf32>
    %387 = arith.addf %385, %386 : vector<2x128xf32>
    %cst_93 = arith.constant dense<0.000000e+00> : vector<2x384xf32>
    %388 = tpu.matmul %387, %11, %cst_93 {dimension_numbers = #tpu.dot_dimension_numbers<[1], [0], [0], [1], [0, 0, 1, 1], [], []>} : vector<2x128xf32>, vector<128x384xf32>, vector<2x384xf32> -> vector<2x384xf32>
    %389 = vector.broadcast %12 : vector<1x384xf32> to vector<2x384xf32>
    %390 = arith.addf %388, %389 : vector<2x384xf32>
    %cst_94 = arith.constant dense<0.000000e+00> : vector<2x384xf32>
    %391 = tpu.matmul %351, %13, %cst_94 {dimension_numbers = #tpu.dot_dimension_numbers<[1], [0], [0], [1], [0, 0, 1, 1], [], []>} : vector<2x128xf32>, vector<128x384xf32>, vector<2x384xf32> -> vector<2x384xf32>
    %392 = vector.broadcast %14 : vector<1x384xf32> to vector<2x384xf32>
    %393 = arith.addf %391, %392 : vector<2x384xf32>
    %394 = vector.extract_strided_slice %390 {offsets = [0, 0], sizes = [2, 128], strides = [1, 1]} : vector<2x384xf32> to vector<2x128xf32>
    %395 = vector.extract_strided_slice %393 {offsets = [0, 0], sizes = [2, 128], strides = [1, 1]} : vector<2x384xf32> to vector<2x128xf32>
    %396 = arith.addf %394, %395 : vector<2x128xf32>
    %397 = arith.negf %396 : vector<2x128xf32>
    %398 = math.exp %397 : vector<2x128xf32>
    %cst_95 = arith.constant 1.000000e+00 : f32
    %399 = vector.broadcast %cst_95 : f32 to vector<2x128xf32>
    %400 = arith.addf %399, %398 : vector<2x128xf32>
    %401 = arith.divf %399, %400 : vector<2x128xf32>
    %402 = vector.extract_strided_slice %390 {offsets = [0, 128], sizes = [2, 128], strides = [1, 1]} : vector<2x384xf32> to vector<2x128xf32>
    %403 = vector.extract_strided_slice %393 {offsets = [0, 128], sizes = [2, 128], strides = [1, 1]} : vector<2x384xf32> to vector<2x128xf32>
    %404 = arith.addf %402, %403 : vector<2x128xf32>
    %405 = arith.negf %404 : vector<2x128xf32>
    %406 = math.exp %405 : vector<2x128xf32>
    %cst_96 = arith.constant 1.000000e+00 : f32
    %407 = vector.broadcast %cst_96 : f32 to vector<2x128xf32>
    %408 = arith.addf %407, %406 : vector<2x128xf32>
    %409 = arith.divf %407, %408 : vector<2x128xf32>
    %410 = vector.extract_strided_slice %390 {offsets = [0, 256], sizes = [2, 128], strides = [1, 1]} : vector<2x384xf32> to vector<2x128xf32>
    %411 = vector.extract_strided_slice %393 {offsets = [0, 256], sizes = [2, 128], strides = [1, 1]} : vector<2x384xf32> to vector<2x128xf32>
    %412 = arith.mulf %401, %411 : vector<2x128xf32>
    %413 = arith.addf %410, %412 : vector<2x128xf32>
    %414 = math.tanh %413 : vector<2x128xf32>
    %cst_97 = arith.constant 1.000000e+00 : f32
    %415 = vector.broadcast %cst_97 : f32 to vector<2x128xf32>
    %416 = arith.subf %415, %409 : vector<2x128xf32>
    %417 = arith.mulf %416, %414 : vector<2x128xf32>
    %418 = arith.mulf %409, %351 : vector<2x128xf32>
    %419 = arith.addf %417, %418 : vector<2x128xf32>
    %420 = arith.index_cast %c5_i32 : i32 to index
    %c0_98 = arith.constant 0 : index
    %c0_99 = arith.constant 0 : index
    %421 = vector.load %arg15[%420, %c0_98, %c0_99] : memref<8x2x128xf32, #tpu.memory_space<vmem>>, vector<1x2x128xf32>
    %422 = vector.shape_cast %421 : vector<1x2x128xf32> to vector<2x128xf32>
    %423 = vector.shape_cast %419 : vector<2x128xf32> to vector<1x2x128xf32>
    tpu.vector_store %arg15[%420, %c0_98, %c0_99], %423 {strides = array<i32>} : memref<8x2x128xf32, #tpu.memory_space<vmem>>, vector<1x2x128xf32>,
    %c6_i32 = arith.constant 6 : i32
    %424 = arith.index_cast %c6_i32 : i32 to index
    %c0_100 = arith.constant 0 : index
    %c0_101 = arith.constant 0 : index
    %425 = vector.load %arg14[%424, %c0_100, %c0_101] : memref<8x2x384xf32, #tpu.memory_space<vmem>>, vector<1x2x384xf32>
    %426 = vector.shape_cast %425 : vector<1x2x384xf32> to vector<2x384xf32>
    %cst_102 = arith.constant dense<0.000000e+00> : vector<2x384xf32>
    %427 = tpu.matmul %387, %9, %cst_102 {dimension_numbers = #tpu.dot_dimension_numbers<[1], [0], [0], [1], [0, 0, 1, 1], [], []>} : vector<2x128xf32>, vector<128x384xf32>, vector<2x384xf32> -> vector<2x384xf32>
    %428 = vector.broadcast %10 : vector<1x384xf32> to vector<2x384xf32>
    %429 = arith.addf %427, %428 : vector<2x384xf32>
    %430 = vector.extract_strided_slice %426 {offsets = [0, 0], sizes = [2, 128], strides = [1, 1]} : vector<2x384xf32> to vector<2x128xf32>
    %431 = vector.extract_strided_slice %429 {offsets = [0, 0], sizes = [2, 128], strides = [1, 1]} : vector<2x384xf32> to vector<2x128xf32>
    %432 = arith.addf %430, %431 : vector<2x128xf32>
    %433 = arith.negf %432 : vector<2x128xf32>
    %434 = math.exp %433 : vector<2x128xf32>
    %cst_103 = arith.constant 1.000000e+00 : f32
    %435 = vector.broadcast %cst_103 : f32 to vector<2x128xf32>
    %436 = arith.addf %435, %434 : vector<2x128xf32>
    %437 = arith.divf %435, %436 : vector<2x128xf32>
    %438 = vector.extract_strided_slice %426 {offsets = [0, 128], sizes = [2, 128], strides = [1, 1]} : vector<2x384xf32> to vector<2x128xf32>
    %439 = vector.extract_strided_slice %429 {offsets = [0, 128], sizes = [2, 128], strides = [1, 1]} : vector<2x384xf32> to vector<2x128xf32>
    %440 = arith.addf %438, %439 : vector<2x128xf32>
    %441 = arith.negf %440 : vector<2x128xf32>
    %442 = math.exp %441 : vector<2x128xf32>
    %cst_104 = arith.constant 1.000000e+00 : f32
    %443 = vector.broadcast %cst_104 : f32 to vector<2x128xf32>
    %444 = arith.addf %443, %442 : vector<2x128xf32>
    %445 = arith.divf %443, %444 : vector<2x128xf32>
    %446 = vector.extract_strided_slice %426 {offsets = [0, 256], sizes = [2, 128], strides = [1, 1]} : vector<2x384xf32> to vector<2x128xf32>
    %447 = vector.extract_strided_slice %429 {offsets = [0, 256], sizes = [2, 128], strides = [1, 1]} : vector<2x384xf32> to vector<2x128xf32>
    %448 = arith.mulf %437, %447 : vector<2x128xf32>
    %449 = arith.addf %446, %448 : vector<2x128xf32>
    %450 = math.tanh %449 : vector<2x128xf32>
    %cst_105 = arith.constant 1.000000e+00 : f32
    %451 = vector.broadcast %cst_105 : f32 to vector<2x128xf32>
    %452 = arith.subf %451, %445 : vector<2x128xf32>
    %453 = arith.mulf %452, %450 : vector<2x128xf32>
    %454 = arith.mulf %445, %387 : vector<2x128xf32>
    %455 = arith.addf %453, %454 : vector<2x128xf32>
    %cst_106 = arith.constant dense<0.000000e+00> : vector<2x384xf32>
    %456 = tpu.matmul %455, %11, %cst_106 {dimension_numbers = #tpu.dot_dimension_numbers<[1], [0], [0], [1], [0, 0, 1, 1], [], []>} : vector<2x128xf32>, vector<128x384xf32>, vector<2x384xf32> -> vector<2x384xf32>
    %457 = vector.broadcast %12 : vector<1x384xf32> to vector<2x384xf32>
    %458 = arith.addf %456, %457 : vector<2x384xf32>
    %cst_107 = arith.constant dense<0.000000e+00> : vector<2x384xf32>
    %459 = tpu.matmul %419, %13, %cst_107 {dimension_numbers = #tpu.dot_dimension_numbers<[1], [0], [0], [1], [0, 0, 1, 1], [], []>} : vector<2x128xf32>, vector<128x384xf32>, vector<2x384xf32> -> vector<2x384xf32>
    %460 = vector.broadcast %14 : vector<1x384xf32> to vector<2x384xf32>
    %461 = arith.addf %459, %460 : vector<2x384xf32>
    %462 = vector.extract_strided_slice %458 {offsets = [0, 0], sizes = [2, 128], strides = [1, 1]} : vector<2x384xf32> to vector<2x128xf32>
    %463 = vector.extract_strided_slice %461 {offsets = [0, 0], sizes = [2, 128], strides = [1, 1]} : vector<2x384xf32> to vector<2x128xf32>
    %464 = arith.addf %462, %463 : vector<2x128xf32>
    %465 = arith.negf %464 : vector<2x128xf32>
    %466 = math.exp %465 : vector<2x128xf32>
    %cst_108 = arith.constant 1.000000e+00 : f32
    %467 = vector.broadcast %cst_108 : f32 to vector<2x128xf32>
    %468 = arith.addf %467, %466 : vector<2x128xf32>
    %469 = arith.divf %467, %468 : vector<2x128xf32>
    %470 = vector.extract_strided_slice %458 {offsets = [0, 128], sizes = [2, 128], strides = [1, 1]} : vector<2x384xf32> to vector<2x128xf32>
    %471 = vector.extract_strided_slice %461 {offsets = [0, 128], sizes = [2, 128], strides = [1, 1]} : vector<2x384xf32> to vector<2x128xf32>
    %472 = arith.addf %470, %471 : vector<2x128xf32>
    %473 = arith.negf %472 : vector<2x128xf32>
    %474 = math.exp %473 : vector<2x128xf32>
    %cst_109 = arith.constant 1.000000e+00 : f32
    %475 = vector.broadcast %cst_109 : f32 to vector<2x128xf32>
    %476 = arith.addf %475, %474 : vector<2x128xf32>
    %477 = arith.divf %475, %476 : vector<2x128xf32>
    %478 = vector.extract_strided_slice %458 {offsets = [0, 256], sizes = [2, 128], strides = [1, 1]} : vector<2x384xf32> to vector<2x128xf32>
    %479 = vector.extract_strided_slice %461 {offsets = [0, 256], sizes = [2, 128], strides = [1, 1]} : vector<2x384xf32> to vector<2x128xf32>
    %480 = arith.mulf %469, %479 : vector<2x128xf32>
    %481 = arith.addf %478, %480 : vector<2x128xf32>
    %482 = math.tanh %481 : vector<2x128xf32>
    %cst_110 = arith.constant 1.000000e+00 : f32
    %483 = vector.broadcast %cst_110 : f32 to vector<2x128xf32>
    %484 = arith.subf %483, %477 : vector<2x128xf32>
    %485 = arith.mulf %484, %482 : vector<2x128xf32>
    %486 = arith.mulf %477, %419 : vector<2x128xf32>
    %487 = arith.addf %485, %486 : vector<2x128xf32>
    %488 = arith.index_cast %c6_i32 : i32 to index
    %c0_111 = arith.constant 0 : index
    %c0_112 = arith.constant 0 : index
    %489 = vector.load %arg15[%488, %c0_111, %c0_112] : memref<8x2x128xf32, #tpu.memory_space<vmem>>, vector<1x2x128xf32>
    %490 = vector.shape_cast %489 : vector<1x2x128xf32> to vector<2x128xf32>
    %491 = vector.shape_cast %487 : vector<2x128xf32> to vector<1x2x128xf32>
    tpu.vector_store %arg15[%488, %c0_111, %c0_112], %491 {strides = array<i32>} : memref<8x2x128xf32, #tpu.memory_space<vmem>>, vector<1x2x128xf32>,
    %c7_i32 = arith.constant 7 : i32
    %492 = arith.index_cast %c7_i32 : i32 to index
    %c0_113 = arith.constant 0 : index
    %c0_114 = arith.constant 0 : index
    %493 = vector.load %arg14[%492, %c0_113, %c0_114] : memref<8x2x384xf32, #tpu.memory_space<vmem>>, vector<1x2x384xf32>
    %494 = vector.shape_cast %493 : vector<1x2x384xf32> to vector<2x384xf32>
    %cst_115 = arith.constant dense<0.000000e+00> : vector<2x384xf32>
    %495 = tpu.matmul %455, %9, %cst_115 {dimension_numbers = #tpu.dot_dimension_numbers<[1], [0], [0], [1], [0, 0, 1, 1], [], []>} : vector<2x128xf32>, vector<128x384xf32>, vector<2x384xf32> -> vector<2x384xf32>
    %496 = vector.broadcast %10 : vector<1x384xf32> to vector<2x384xf32>
    %497 = arith.addf %495, %496 : vector<2x384xf32>
    %498 = vector.extract_strided_slice %494 {offsets = [0, 0], sizes = [2, 128], strides = [1, 1]} : vector<2x384xf32> to vector<2x128xf32>
    %499 = vector.extract_strided_slice %497 {offsets = [0, 0], sizes = [2, 128], strides = [1, 1]} : vector<2x384xf32> to vector<2x128xf32>
    %500 = arith.addf %498, %499 : vector<2x128xf32>
    %501 = arith.negf %500 : vector<2x128xf32>
    %502 = math.exp %501 : vector<2x128xf32>
    %cst_116 = arith.constant 1.000000e+00 : f32
    %503 = vector.broadcast %cst_116 : f32 to vector<2x128xf32>
    %504 = arith.addf %503, %502 : vector<2x128xf32>
    %505 = arith.divf %503, %504 : vector<2x128xf32>
    %506 = vector.extract_strided_slice %494 {offsets = [0, 128], sizes = [2, 128], strides = [1, 1]} : vector<2x384xf32> to vector<2x128xf32>
    %507 = vector.extract_strided_slice %497 {offsets = [0, 128], sizes = [2, 128], strides = [1, 1]} : vector<2x384xf32> to vector<2x128xf32>
    %508 = arith.addf %506, %507 : vector<2x128xf32>
    %509 = arith.negf %508 : vector<2x128xf32>
    %510 = math.exp %509 : vector<2x128xf32>
    %cst_117 = arith.constant 1.000000e+00 : f32
    %511 = vector.broadcast %cst_117 : f32 to vector<2x128xf32>
    %512 = arith.addf %511, %510 : vector<2x128xf32>
    %513 = arith.divf %511, %512 : vector<2x128xf32>
    %514 = vector.extract_strided_slice %494 {offsets = [0, 256], sizes = [2, 128], strides = [1, 1]} : vector<2x384xf32> to vector<2x128xf32>
    %515 = vector.extract_strided_slice %497 {offsets = [0, 256], sizes = [2, 128], strides = [1, 1]} : vector<2x384xf32> to vector<2x128xf32>
    %516 = arith.mulf %505, %515 : vector<2x128xf32>
    %517 = arith.addf %514, %516 : vector<2x128xf32>
    %518 = math.tanh %517 : vector<2x128xf32>
    %cst_118 = arith.constant 1.000000e+00 : f32
    %519 = vector.broadcast %cst_118 : f32 to vector<2x128xf32>
    %520 = arith.subf %519, %513 : vector<2x128xf32>
    %521 = arith.mulf %520, %518 : vector<2x128xf32>
    %522 = arith.mulf %513, %455 : vector<2x128xf32>
    %523 = arith.addf %521, %522 : vector<2x128xf32>
    %cst_119 = arith.constant dense<0.000000e+00> : vector<2x384xf32>
    %524 = tpu.matmul %523, %11, %cst_119 {dimension_numbers = #tpu.dot_dimension_numbers<[1], [0], [0], [1], [0, 0, 1, 1], [], []>} : vector<2x128xf32>, vector<128x384xf32>, vector<2x384xf32> -> vector<2x384xf32>
    %525 = vector.broadcast %12 : vector<1x384xf32> to vector<2x384xf32>
    %526 = arith.addf %524, %525 : vector<2x384xf32>
    %cst_120 = arith.constant dense<0.000000e+00> : vector<2x384xf32>
    %527 = tpu.matmul %487, %13, %cst_120 {dimension_numbers = #tpu.dot_dimension_numbers<[1], [0], [0], [1], [0, 0, 1, 1], [], []>} : vector<2x128xf32>, vector<128x384xf32>, vector<2x384xf32> -> vector<2x384xf32>
    %528 = vector.broadcast %14 : vector<1x384xf32> to vector<2x384xf32>
    %529 = arith.addf %527, %528 : vector<2x384xf32>
    %530 = vector.extract_strided_slice %526 {offsets = [0, 0], sizes = [2, 128], strides = [1, 1]} : vector<2x384xf32> to vector<2x128xf32>
    %531 = vector.extract_strided_slice %529 {offsets = [0, 0], sizes = [2, 128], strides = [1, 1]} : vector<2x384xf32> to vector<2x128xf32>
    %532 = arith.addf %530, %531 : vector<2x128xf32>
    %533 = arith.negf %532 : vector<2x128xf32>
    %534 = math.exp %533 : vector<2x128xf32>
    %cst_121 = arith.constant 1.000000e+00 : f32
    %535 = vector.broadcast %cst_121 : f32 to vector<2x128xf32>
    %536 = arith.addf %535, %534 : vector<2x128xf32>
    %537 = arith.divf %535, %536 : vector<2x128xf32>
    %538 = vector.extract_strided_slice %526 {offsets = [0, 128], sizes = [2, 128], strides = [1, 1]} : vector<2x384xf32> to vector<2x128xf32>
    %539 = vector.extract_strided_slice %529 {offsets = [0, 128], sizes = [2, 128], strides = [1, 1]} : vector<2x384xf32> to vector<2x128xf32>
    %540 = arith.addf %538, %539 : vector<2x128xf32>
    %541 = arith.negf %540 : vector<2x128xf32>
    %542 = math.exp %541 : vector<2x128xf32>
    %cst_122 = arith.constant 1.000000e+00 : f32
    %543 = vector.broadcast %cst_122 : f32 to vector<2x128xf32>
    %544 = arith.addf %543, %542 : vector<2x128xf32>
    %545 = arith.divf %543, %544 : vector<2x128xf32>
    %546 = vector.extract_strided_slice %526 {offsets = [0, 256], sizes = [2, 128], strides = [1, 1]} : vector<2x384xf32> to vector<2x128xf32>
    %547 = vector.extract_strided_slice %529 {offsets = [0, 256], sizes = [2, 128], strides = [1, 1]} : vector<2x384xf32> to vector<2x128xf32>
    %548 = arith.mulf %537, %547 : vector<2x128xf32>
    %549 = arith.addf %546, %548 : vector<2x128xf32>
    %550 = math.tanh %549 : vector<2x128xf32>
    %cst_123 = arith.constant 1.000000e+00 : f32
    %551 = vector.broadcast %cst_123 : f32 to vector<2x128xf32>
    %552 = arith.subf %551, %545 : vector<2x128xf32>
    %553 = arith.mulf %552, %550 : vector<2x128xf32>
    %554 = arith.mulf %545, %487 : vector<2x128xf32>
    %555 = arith.addf %553, %554 : vector<2x128xf32>
    %556 = arith.index_cast %c7_i32 : i32 to index
    %c0_124 = arith.constant 0 : index
    %c0_125 = arith.constant 0 : index
    %557 = vector.load %arg15[%556, %c0_124, %c0_125] : memref<8x2x128xf32, #tpu.memory_space<vmem>>, vector<1x2x128xf32>
    %558 = vector.shape_cast %557 : vector<1x2x128xf32> to vector<2x128xf32>
    %559 = vector.shape_cast %555 : vector<2x128xf32> to vector<1x2x128xf32>
    tpu.vector_store %arg15[%556, %c0_124, %c0_125], %559 {strides = array<i32>} : memref<8x2x128xf32, #tpu.memory_space<vmem>>, vector<1x2x128xf32>,
    %c8_i32 = arith.constant 8 : i32
    %c0_126 = arith.constant 0 : index
    %c0_127 = arith.constant 0 : index
    %c0_128 = arith.constant 0 : index
    %560 = vector.load %arg15[%c0_126, %c0_127, %c0_128] : memref<8x2x128xf32, #tpu.memory_space<vmem>>, vector<8x2x128xf32>
    %561 = vector.shape_cast %560 : vector<8x2x128xf32> to vector<16x128xf32>
    %c0_129 = arith.constant 0 : index
    %c0_130 = arith.constant 0 : index
    %562 = vector.load %arg10[%c0_129, %c0_130] : memref<128x4xf32, #tpu.memory_space<vmem>>, vector<128x4xf32>
    %cst_131 = arith.constant dense<0.000000e+00> : vector<16x4xf32>
    %563 = tpu.matmul %561, %562, %cst_131 {dimension_numbers = #tpu.dot_dimension_numbers<[1], [0], [0], [1], [0, 0, 1, 1], [], []>} : vector<16x128xf32>, vector<128x4xf32>, vector<16x4xf32> -> vector<16x4xf32>
    %c0_132 = arith.constant 0 : index
    %c0_133 = arith.constant 0 : index
    %564 = vector.load %arg11[%c0_132, %c0_133] : memref<1x4xf32, #tpu.memory_space<vmem>>, vector<1x4xf32>
    %565 = vector.broadcast %564 : vector<1x4xf32> to vector<16x4xf32>
    %566 = arith.addf %563, %565 : vector<16x4xf32>
    %567 = vector.shape_cast %566 : vector<16x4xf32> to vector<8x2x4xf32>
    %c0_134 = arith.constant 0 : index
    %c0_135 = arith.constant 0 : index
    %c0_136 = arith.constant 0 : index
    %568 = vector.load %arg12[%c0_134, %c0_135, %c0_136] : memref<8x2x4xf32, #tpu.memory_space<vmem>>, vector<8x2x4xf32>
    tpu.vector_store %arg12[%c0_134, %c0_135, %c0_136], %567 {strides = array<i32>} : memref<8x2x4xf32, #tpu.memory_space<vmem>>, vector<8x2x4xf32>,
    %c0_137 = arith.constant 0 : index
    %c0_138 = arith.constant 0 : index
    %c0_139 = arith.constant 0 : index
    %569 = vector.load %arg1[%c0_137, %c0_138, %c0_139] : memref<8x2x4xf32, #tpu.memory_space<vmem>>, vector<8x2x4xf32>
    %570 = arith.subf %567, %569 : vector<8x2x4xf32>
    %571 = arith.mulf %570, %570 : vector<8x2x4xf32>
    %cst_140 = arith.constant dense<0.000000e+00> : vector<8x2xf32>
    %572 = vector.multi_reduction <add>, %571, %cst_140 [2] : vector<8x2x4xf32> to vector<8x2xf32>
    %c0_141 = arith.constant 0 : index
    %c0_142 = arith.constant 0 : index
    %573 = vector.load %arg13[%c0_141, %c0_142] : memref<8x2xf32, #tpu.memory_space<vmem>>, vector<8x2xf32>
    tpu.vector_store %arg13[%c0_141, %c0_142], %572 {strides = array<i32>} : memref<8x2xf32, #tpu.memory_space<vmem>>, vector<8x2xf32>,
    return
  }
}

</mosaic_0001>

<llo_original>
// kernel: cm_baseline_recurrent_forward.1
$region0: #{cm_baseline_recurrent_forward.1}
  #allocation0 [shape = 'u32[]', space=smem, size = 0x4, offset = 0x4, fixed_abs, tag = 'smem constant byte address 0x4 - core index']
  #allocation1 [shape = 'u32[144,128]{1,0:T(1,128)}', space=vmem, size = 0x12000, scoped, tag = 'internal scratch']
  #allocation2 [shape = 'f32[8,2,384]{2,1,0:T(2,128)}', space=vmem, size = 0x6000, scoped, tag = 'scratch operand']
  #allocation3 [shape = 'f32[8,2,128]{2,1,0:T(2,128)}', space=vmem, size = 0x2000, scoped, tag = 'scratch operand']
  %s0 = inlined_call_operand.vmem [shape: f32[8,2,4], index: 0, kind: input, shape index: {}]
  %s1 = inlined_call_operand.vmem [shape: f32[8,2,4], index: 1, kind: input, shape index: {}]
  %s2 = inlined_call_operand.vmem [shape: f32[4,384], index: 2, kind: input, shape index: {}]
  %s3 = inlined_call_operand.hbm [shape: f32[128,384], index: 3, kind: input, shape index: {}]
  %s4 = inlined_call_operand.vmem [shape: f32[1,384], index: 4, kind: input, shape index: {}]
  %s5 = inlined_call_operand.vmem [shape: f32[1,384], index: 5, kind: input, shape index: {}]
  %s6 = inlined_call_operand.hbm [shape: f32[128,384], index: 6, kind: input, shape index: {}]
  %s7 = inlined_call_operand.hbm [shape: f32[128,384], index: 7, kind: input, shape index: {}]
  %s8 = inlined_call_operand.vmem [shape: f32[1,384], index: 8, kind: input, shape index: {}]
  %s9 = inlined_call_operand.vmem [shape: f32[1,384], index: 9, kind: input, shape index: {}]
  %s10 = inlined_call_operand.vmem [shape: f32[128,4], index: 10, kind: input, shape index: {}]
  %s11 = inlined_call_operand.vmem [shape: f32[1,4], index: 11, kind: input, shape index: {}]
  %s12 = inlined_call_operand.vmem [shape: f32[8,2,4], index: 12, kind: output, shape index: {0}]
  %s13 = inlined_call_operand.vmem [shape: f32[8,2], index: 13, kind: output, shape index: {1}]
  %14 = xla_tuple %s12, %s13
  %s15 = sld [smem:[#allocation0]]
  $region78: #{cm_baseline_recurrent_forward.1} parent=0
    _
  %s17 = ssub.s32 1, %s15
  %s18 = scalar_select 0, %s17, %s15
  $region1: #{cm_baseline_recurrent_forward.1} parent=0
    #allocation4 [shape = 'u8[196608]{0}', space=vmem, size = 0x30000, scoped, tag = 'input window, operand 3, single buffered']
    #allocation5 [shape = 's32[1]{0}', space=sflag, size = 0x4, scoped, tag = 'scoped memory for cm_baseline_recurrent_forward.1']
    #allocation6 [shape = 'u8[196608]{0}', space=vmem, size = 0x30000, scoped, tag = 'input window, operand 6, single buffered']
    #allocation7 [shape = 's32[1]{0}', space=sflag, size = 0x4, scoped, tag = 'scoped memory for cm_baseline_recurrent_forward.1']
    #allocation8 [shape = 'u8[196608]{0}', space=vmem, size = 0x30000, scoped, tag = 'input window, operand 7, single buffered']
    %19 = vsyncpa [#allocation5], 0
    %20 = vsyncpa [#allocation7], 0
    // Predicated region
    $region2: #{cm_baseline_recurrent_forward.1} parent=1 // pred_check
      _
    $region3: #{cm_baseline_recurrent_forward.1} parent=1 // pred_check_branch
      %22 = sbr.rel (0) target = $region5
    $region4: #{cm_baseline_recurrent_forward.1} parent=1 // pred_region
      _
    $region5: #{cm_baseline_recurrent_forward.1} parent=1 // pred_fallthru
      _
    // Predicated region
    $region6: #{cm_baseline_recurrent_forward.1} parent=1 // pred_check
      _
    $region7: #{cm_baseline_recurrent_forward.1} parent=1 // pred_check_branch
      %24 = sbr.rel (0) target = $region9
    $region8: #{cm_baseline_recurrent_forward.1} parent=1 // pred_region
      _
    $region9: #{cm_baseline_recurrent_forward.1} parent=1 // pred_fallthru
      _
    // Predicated region
    $region10: #{cm_baseline_recurrent_forward.1} parent=1 // pred_check
      _
    $region11: #{cm_baseline_recurrent_forward.1} parent=1 // pred_check_branch
      %26 = sbr.rel (0) target = $region13
    $region12: #{cm_baseline_recurrent_forward.1} parent=1 // pred_region
      _
    $region13: #{cm_baseline_recurrent_forward.1} parent=1 // pred_fallthru
      _
    // Predicated region
    $region14: #{cm_baseline_recurrent_forward.1} parent=1 // pred_check
      _
    $region15: #{cm_baseline_recurrent_forward.1} parent=1 // pred_check_branch
      %28 = sbr.rel (0) target = $region17
    $region16: #{cm_baseline_recurrent_forward.1} parent=1 // pred_region
      %s30 = ssub.s32 6144, 6144
      %31 = vsyncadd [#allocation5], %s30
      %s32 = sshll.u32 [#allocation4], 4
      %s33 = int_to_ptr.vmem [resolvable:$true] %s32
      %38 = dma.hbm_to_vmem [thread:$0]  %s3, 6144, %s33, [#allocation5], 384, 384, 24
    $region17: #{cm_baseline_recurrent_forward.1} parent=1 // pred_fallthru
      _
    // Predicated region
    $region18: #{cm_baseline_recurrent_forward.1} parent=1 // pred_check
      _
    $region19: #{cm_baseline_recurrent_forward.1} parent=1 // pred_check_branch
      %40 = sbr.rel (0) target = $region21
    $region20: #{cm_baseline_recurrent_forward.1} parent=1 // pred_region
      _
    $region21: #{cm_baseline_recurrent_forward.1} parent=1 // pred_fallthru
      _
    // Predicated region
    $region22: #{cm_baseline_recurrent_forward.1} parent=1 // pred_check
      _
    $region23: #{cm_baseline_recurrent_forward.1} parent=1 // pred_check_branch
      %42 = sbr.rel (0) target = $region25
    $region24: #{cm_baseline_recurrent_forward.1} parent=1 // pred_region
      _
    $region25: #{cm_baseline_recurrent_forward.1} parent=1 // pred_fallthru
      _
    // Predicated region
    $region26: #{cm_baseline_recurrent_forward.1} parent=1 // pred_check
      _
    $region27: #{cm_baseline_recurrent_forward.1} parent=1 // pred_check_branch
      %44 = sbr.rel (0) target = $region29
    $region28: #{cm_baseline_recurrent_forward.1} parent=1 // pred_region
      %s46 = ssub.s32 6144, 6144
      %47 = vsyncadd [#allocation7], %s46
      %s48 = sshll.u32 [#allocation6], 4
      %s49 = int_to_ptr.vmem [resolvable:$true] %s48
      %54 = dma.hbm_to_vmem [thread:$0]  %s6, 6144, %s49, [#allocation7], 384, 384, 24
    $region29: #{cm_baseline_recurrent_forward.1} parent=1 // pred_fallthru
      _
    // Predicated region
    $region30: #{cm_baseline_recurrent_forward.1} parent=1 // pred_check
      _
    $region31: #{cm_baseline_recurrent_forward.1} parent=1 // pred_check_branch
      %56 = sbr.rel (0) target = $region33
    $region32: #{cm_baseline_recurrent_forward.1} parent=1 // pred_region
      %s58 = ssub.s32 6144, 6144
      %59 = vsyncadd [#allocation7], %s58
      %s60 = sshll.u32 [#allocation8], 4
      %s61 = int_to_ptr.vmem [resolvable:$true] %s60
      %66 = dma.hbm_to_vmem [thread:$0]  %s7, 6144, %s61, [#allocation7], 384, 384, 24
    $region33: #{cm_baseline_recurrent_forward.1} parent=1 // pred_fallthru
      _
    // Predicated region
    $region34: #{cm_baseline_recurrent_forward.1} parent=1 // pred_check
      _
    $region35: #{cm_baseline_recurrent_forward.1} parent=1 // pred_check_branch
      %68 = sbr.rel (0) target = $region37
    $region36: #{cm_baseline_recurrent_forward.1} parent=1 // pred_region
      _
    $region37: #{cm_baseline_recurrent_forward.1} parent=1 // pred_fallthru
      _
    // Predicated region
    $region38: #{cm_baseline_recurrent_forward.1} parent=1 // pred_check
      _
    $region39: #{cm_baseline_recurrent_forward.1} parent=1 // pred_check_branch
      %70 = sbr.rel (0) target = $region41
    $region40: #{cm_baseline_recurrent_forward.1} parent=1 // pred_region
      _
    $region41: #{cm_baseline_recurrent_forward.1} parent=1 // pred_fallthru
      _
    // Predicated region
    $region42: #{cm_baseline_recurrent_forward.1} parent=1 // pred_check
      _
    $region43: #{cm_baseline_recurrent_forward.1} parent=1 // pred_check_branch
      %72 = sbr.rel (0) target = $region45
    $region44: #{cm_baseline_recurrent_forward.1} parent=1 // pred_region
      _
    $region45: #{cm_baseline_recurrent_forward.1} parent=1 // pred_fallthru
      _
    // Predicated region
    $region46: #{cm_baseline_recurrent_forward.1} parent=1 // pred_check
      _
    $region47: #{cm_baseline_recurrent_forward.1} parent=1 // pred_check_branch
      %74 = sbr.rel (0) target = $region49
    $region48: #{cm_baseline_recurrent_forward.1} parent=1 // pred_region
      _
    $region49: #{cm_baseline_recurrent_forward.1} parent=1 // pred_fallthru
      _
    // Predicated region
    $region50: #{cm_baseline_recurrent_forward.1} parent=1 // pred_check
      _
    $region51: #{cm_baseline_recurrent_forward.1} parent=1 // pred_check_branch
      %76 = sbr.rel (0) target = $region53
    $region52: #{cm_baseline_recurrent_forward.1} parent=1 // pred_region
      %77 = dma.done [#allocation5], 6144
    $region53: #{cm_baseline_recurrent_forward.1} parent=1 // pred_fallthru
      _
    // Predicated region
    $region54: #{cm_baseline_recurrent_forward.1} parent=1 // pred_check
      _
    $region55: #{cm_baseline_recurrent_forward.1} parent=1 // pred_check_branch
      %79 = sbr.rel (0) target = $region57
    $region56: #{cm_baseline_recurrent_forward.1} parent=1 // pred_region
      %80 = dma.done [#allocation7], 6144
    $region57: #{cm_baseline_recurrent_forward.1} parent=1 // pred_fallthru
      _
    // Predicated region
    $region58: #{cm_baseline_recurrent_forward.1} parent=1 // pred_check
      _
    $region59: #{cm_baseline_recurrent_forward.1} parent=1 // pred_check_branch
      %82 = sbr.rel (0) target = $region61
    $region60: #{cm_baseline_recurrent_forward.1} parent=1 // pred_region
      %83 = dma.done [#allocation7], 6144
    $region61: #{cm_baseline_recurrent_forward.1} parent=1 // pred_fallthru
      _
    %v84 = vld [vmem:[%s0] sm:$0x3]
    %v85 = vld [vmem:[%s0 + $0x2] sm:$0x3]
    %v86 = vld [vmem:[%s0 + $0x4] sm:$0x3]
    %v87 = vld [vmem:[%s0 + $0x6] sm:$0x3]
    %v88 = vld [vmem:[%s0 + $0x8] sm:$0x3]
    %v89 = vld [vmem:[%s0 + $0xa] sm:$0x3]
    %v90 = vld [vmem:[%s0 + $0xc] sm:$0x3]
    %v91 = vld [vmem:[%s0 + $0xe] sm:$0x3]
    %v92 = vld [vmem:[%s2] sm:$0xff]
    %v93 = vld [vmem:[%s2 + $0x8] sm:$0xf]
    %v94 = vld [vmem:[%s4] sm:$0x7]
    %v96 = vlaneseq
    %v97 = vshrl.u32 %v96, 7
    %v98 = vsub.s32 0, %v97
    %v99 = vrot.slane %v94, %v98
    %v100 = vlaneseq
    %v101 = vshrl.u32 %v100, 7
    %v102 = vsub.s32 1, %v101
    %v103 = vrot.slane %v94, %v102
    %v104 = vlaneseq
    %v105 = vshrl.u32 %v104, 7
    %v106 = vsub.s32 2, %v105
    %v107 = vrot.slane %v94, %v106
    %v119 = vcombine.low %v84, %v85
    %v120 = vcombine.low %v86, %v87
    %v122 = vunpack.c.l.s4 1983009808
    %v123 = vunpack.c.0.s8 %v122
    %v124 = vlaneseq
    %v125 = vshrl.u32 %v124, 7
    %v126 = vsub.s32 %v123, %v125
    %v127 = vrot.slane %v119, %v126
    %v129 = vunpack.c.l.s4 1983009808
    %v130 = vunpack.c.0.s8 %v129
    %v131 = vlaneseq
    %v132 = vshrl.u32 %v131, 7
    %v133 = vsub.s32 %v130, %v132
    %v134 = vrot.slane %v120, %v133
    %v135 = vcombine.low %v127, %v134
    %v136 = vcombine.low %v88, %v89
    %v137 = vcombine.low %v90, %v91
    %v139 = vunpack.c.l.s4 1983009808
    %v140 = vunpack.c.0.s8 %v139
    %v141 = vlaneseq
    %v142 = vshrl.u32 %v141, 7
    %v143 = vsub.s32 %v140, %v142
    %v144 = vrot.slane %v136, %v143
    %v146 = vunpack.c.l.s4 1983009808
    %v147 = vunpack.c.0.s8 %v146
    %v148 = vlaneseq
    %v149 = vshrl.u32 %v148, 7
    %v150 = vsub.s32 %v147, %v149
    %v151 = vrot.slane %v137, %v150
    %v152 = vcombine.low %v144, %v151
    %v155 = vcombine.high %v92, %v92
    %vm156 = vcmask 31744
    %v157 = vsel %vm156, %v135, 0
    %v159 = vsel %vm156, %v152, 0
    %vm161 = vcmask 1043456
    %v162 = vsel %vm161, %v92, 0
    %v164 = vsel %vm161, %v155, 0
    %v166 = vsel %vm161, %v93, 0
    %168 = vmatprep.subr.mxu0 %v164
    %169 = vmatpush1.msra.mxu0 %v162
    %170 = vmatprep.subr.mxu0 0.0
    %171 = vmatpush1.msra.mxu0 0.0
    %172 = vmatprep.subr.mxu0 0.0
    %173 = vmatpush1.msra.mxu0 0.0
    %174 = vmatprep.subr.mxu0 0.0
    %175 = vmatpush1.msra.mxu0 0.0
    %176 = vmatprep.subr.mxu0 0.0
    %177 = vmatpush1.msra.mxu0 0.0
    %178 = vmatprep.subr.mxu0 0.0
    %179 = vmatpush1.msra.mxu0 0.0
    %180 = vmatprep.subr.mxu0 0.0
    %181 = vmatpush1.msra.mxu0 0.0
    %182 = vmatprep.subr.mxu0 0.0
    %183 = vmatpush1.msra.mxu0 0.0
    %184 = vmatprep.subr.mxu0 0.0
    %185 = vmatpush1.msra.mxu0 0.0
    %186 = vmatprep.subr.mxu0 0.0
    %187 = vmatpush1.msra.mxu0 0.0
    %188 = vmatprep.subr.mxu0 0.0
    %189 = vmatpush1.msra.mxu0 0.0
    %190 = vmatprep.subr.mxu0 0.0
    %191 = vmatpush1.msra.mxu0 0.0
    %192 = vmatprep.subr.mxu0 0.0
    %193 = vmatpush1.msra.mxu0 0.0
    %194 = vmatprep.subr.mxu0 0.0
    %195 = vmatpush1.msra.mxu0 0.0
    %196 = vmatprep.subr.mxu0 0.0
    %197 = vmatpush1.msra.mxu0 0.0
    %198 = vmatprep.subr.mxu0 0.0
    %199 = vmatpush1.msra.mxu0 0.0
    %200 = vmatprep.subr.mxu0 0.0
    %201 = vmatpush1.msra.mxu0 0.0
    %202 = vmatprep.subr.mxu0 0.0
    %203 = vmatpush1.msra.mxu0 0.0
    %204 = vmatprep.subr.mxu0 0.0
    %205 = vmatpush1.msra.mxu0 0.0
    %206 = vmatprep.subr.mxu0 0.0
    %207 = vmatpush1.msra.mxu0 0.0
    %208 = vmatprep.subr.mxu0 0.0
    %209 = vmatpush1.msra.mxu0 0.0
    %210 = vmatprep.subr.mxu0 0.0
    %211 = vmatpush1.msra.mxu0 0.0
    %212 = vmatprep.subr.mxu0 0.0
    %213 = vmatpush1.msra.mxu0 0.0
    %214 = vmatprep.subr.mxu0 0.0
    %215 = vmatpush1.msra.mxu0 0.0
    %216 = vmatprep.subr.mxu0 0.0
    %217 = vmatpush1.msra.mxu0 0.0
    %218 = vmatprep.subr.mxu0 0.0
    %219 = vmatpush1.msra.mxu0 0.0
    %220 = vmatprep.subr.mxu0 0.0
    %221 = vmatpush1.msra.mxu0 0.0
    %222 = vmatprep.subr.mxu0 0.0
    %223 = vmatpush1.msra.mxu0 0.0
    %224 = vmatprep.subr.mxu0 0.0
    %225 = vmatpush1.msra.mxu0 0.0
    %226 = vmatprep.subr.mxu0 0.0
    %227 = vmatpush1.msra.mxu0 0.0
    %228 = vmatprep.subr.mxu0 0.0
    %229 = vmatpush1.msra.mxu0 0.0
    %230 = vmatprep.subr.mxu0 0.0
    %231 = vmatpush1.msra.mxu0 0.0
    %232 = vmatprep.mubr.f32.mxu0 0.0
    %233 = vmatmul.mubr.f32.gmra.mrb[0].mxu0 %v157
    %v234 = vpop.f32.mrb[0].mxu0
    %v235 = vadd.f32 %v99, %v234
    %v236 = vpop.f32.mrb[0].mxu0
    %v237 = vadd.f32 %v103, %v236
    %238 = vmatprep.mubr.f32.mxu0 0.0
    %239 = vmatmul.mubr.f32.gmra.mrb[0].mxu0 %v159
    %v240 = vpop.f32.mrb[0].mxu0
    %v241 = vadd.f32 %v99, %v240
    %v242 = vpop.f32.mrb[0].mxu0
    %v243 = vadd.f32 %v103, %v242
    %244 = vdwg.mxu0
    %245 = vmatprep.subr.mxu0 0.0
    %246 = vmatpush1.msra.mxu0 %v166
    %247 = vmatprep.subr.mxu0 0.0
    %248 = vmatpush1.msra.mxu0 0.0
    %249 = vmatprep.subr.mxu0 0.0
    %250 = vmatpush1.msra.mxu0 0.0
    %251 = vmatprep.subr.mxu0 0.0
    %252 = vmatpush1.msra.mxu0 0.0
    %253 = vmatprep.subr.mxu0 0.0
    %254 = vmatpush1.msra.mxu0 0.0
    %255 = vmatprep.subr.mxu0 0.0
    %256 = vmatpush1.msra.mxu0 0.0
    %257 = vmatprep.subr.mxu0 0.0
    %258 = vmatpush1.msra.mxu0 0.0
    %259 = vmatprep.subr.mxu0 0.0
    %260 = vmatpush1.msra.mxu0 0.0
    %261 = vmatprep.subr.mxu0 0.0
    %262 = vmatpush1.msra.mxu0 0.0
    %263 = vmatprep.subr.mxu0 0.0
    %264 = vmatpush1.msra.mxu0 0.0
    %265 = vmatprep.subr.mxu0 0.0
    %266 = vmatpush1.msra.mxu0 0.0
    %267 = vmatprep.subr.mxu0 0.0
    %268 = vmatpush1.msra.mxu0 0.0
    %269 = vmatprep.subr.mxu0 0.0
    %270 = vmatpush1.msra.mxu0 0.0
    %271 = vmatprep.subr.mxu0 0.0
    %272 = vmatpush1.msra.mxu0 0.0
    %273 = vmatprep.subr.mxu0 0.0
    %274 = vmatpush1.msra.mxu0 0.0
    %275 = vmatprep.subr.mxu0 0.0
    %276 = vmatpush1.msra.mxu0 0.0
    %277 = vmatprep.subr.mxu0 0.0
    %278 = vmatpush1.msra.mxu0 0.0
    %279 = vmatprep.subr.mxu0 0.0
    %280 = vmatpush1.msra.mxu0 0.0
    %281 = vmatprep.subr.mxu0 0.0
    %282 = vmatpush1.msra.mxu0 0.0
    %283 = vmatprep.subr.mxu0 0.0
    %284 = vmatpush1.msra.mxu0 0.0
    %285 = vmatprep.subr.mxu0 0.0
    %286 = vmatpush1.msra.mxu0 0.0
    %287 = vmatprep.subr.mxu0 0.0
    %288 = vmatpush1.msra.mxu0 0.0
    %289 = vmatprep.subr.mxu0 0.0
    %290 = vmatpush1.msra.mxu0 0.0
    %291 = vmatprep.subr.mxu0 0.0
    %292 = vmatpush1.msra.mxu0 0.0
    %293 = vmatprep.subr.mxu0 0.0
    %294 = vmatpush1.msra.mxu0 0.0
    %295 = vmatprep.subr.mxu0 0.0
    %296 = vmatpush1.msra.mxu0 0.0
    %297 = vmatprep.subr.mxu0 0.0
    %298 = vmatpush1.msra.mxu0 0.0
    %299 = vmatprep.subr.mxu0 0.0
    %300 = vmatpush1.msra.mxu0 0.0
    %301 = vmatprep.subr.mxu0 0.0
    %302 = vmatpush1.msra.mxu0 0.0
    %303 = vmatprep.subr.mxu0 0.0
    %304 = vmatpush1.msra.mxu0 0.0
    %305 = vmatprep.subr.mxu0 0.0
    %306 = vmatpush1.msra.mxu0 0.0
    %307 = vmatprep.subr.mxu0 0.0
    %308 = vmatpush1.msra.mxu0 0.0
    %309 = vmatprep.mubr.f32.mxu0 0.0
    %310 = vmatmul.mubr.f32.gmra.mrb[0].mxu0 %v157
    %v311 = vpop.f32.mrb[0].mxu0
    %v312 = vadd.f32 %v107, %v311
    %v313 = vpop.f32.mrb[0].mxu0
    %314 = vmatprep.mubr.f32.mxu0 0.0
    %315 = vmatmul.mubr.f32.gmra.mrb[0].mxu0 %v159
    %v316 = vpop.f32.mrb[0].mxu0
    %v317 = vadd.f32 %v107, %v316
    %v318 = vpop.f32.mrb[0].mxu0
    %319 = vdwg.mxu0
    %v326 = vcombine.low %v235, %v237
    %v327 = vcombine.high %v235, %v237
    %v328 = vcombine.high %v312, %v312
    %v330 = vunpack.c.l.s4 1983009808
    %v331 = vunpack.c.0.s8 %v330
    %v332 = vlaneseq
    %v333 = vshrl.u32 %v332, 7
    %v334 = vsub.s32 %v331, %v333
    %v335 = vrot.slane %v326, %v334
    %v337 = vunpack.c.l.s4 1983009808
    %v338 = vunpack.c.0.s8 %v337
    %v339 = vlaneseq
    %v340 = vshrl.u32 %v339, 7
    %v341 = vsub.s32 %v338, %v340
    %v342 = vrot.slane %v327, %v341
    %v344 = vunpack.c.l.s4 1983009808
    %v345 = vunpack.c.0.s8 %v344
    %v346 = vlaneseq
    %v347 = vshrl.u32 %v346, 7
    %v348 = vsub.s32 %v345, %v347
    %v349 = vrot.slane %v312, %v348
    %v351 = vunpack.c.l.s4 1983009808
    %v352 = vunpack.c.0.s8 %v351
    %v353 = vlaneseq
    %v354 = vshrl.u32 %v353, 7
    %v355 = vsub.s32 %v352, %v354
    %v356 = vrot.slane %v328, %v355
    %v357 = vcombine.low %v335, %v349
    %v358 = vcombine.high %v335, %v349
    %v359 = vcombine.low %v342, %v356
    %v360 = vcombine.high %v342, %v356
    %v361 = vcombine.low %v241, %v243
    %v362 = vcombine.high %v241, %v243
    %v363 = vcombine.high %v317, %v317
    %v365 = vunpack.c.l.s4 1983009808
    %v366 = vunpack.c.0.s8 %v365
    %v367 = vlaneseq
    %v368 = vshrl.u32 %v367, 7
    %v369 = vsub.s32 %v366, %v368
    %v370 = vrot.slane %v361, %v369
    %v372 = vunpack.c.l.s4 1983009808
    %v373 = vunpack.c.0.s8 %v372
    %v374 = vlaneseq
    %v375 = vshrl.u32 %v374, 7
    %v376 = vsub.s32 %v373, %v375
    %v377 = vrot.slane %v362, %v376
    %v379 = vunpack.c.l.s4 1983009808
    %v380 = vunpack.c.0.s8 %v379
    %v381 = vlaneseq
    %v382 = vshrl.u32 %v381, 7
    %v383 = vsub.s32 %v380, %v382
    %v384 = vrot.slane %v317, %v383
    %v386 = vunpack.c.l.s4 1983009808
    %v387 = vunpack.c.0.s8 %v386
    %v388 = vlaneseq
    %v389 = vshrl.u32 %v388, 7
    %v390 = vsub.s32 %v387, %v389
    %v391 = vrot.slane %v363, %v390
    %v392 = vcombine.low %v370, %v384
    %v393 = vcombine.high %v370, %v384
    %v394 = vcombine.low %v377, %v391
    %v395 = vcombine.high %v377, %v391
    %404 = vst [vmem:[#allocation2] sm:$0x3f] %v357
    %405 = vst [vmem:[#allocation2 + $0x6] sm:$0x3f] %v358
    %406 = vst [vmem:[#allocation2 + $0xc] sm:$0x3f] %v359
    %407 = vst [vmem:[#allocation2 + $0x12] sm:$0x3f] %v360
    %408 = vst [vmem:[#allocation2 + $0x18] sm:$0x3f] %v392
    %409 = vst [vmem:[#allocation2 + $0x1e] sm:$0x3f] %v393
    %410 = vst [vmem:[#allocation2 + $0x24] sm:$0x3f] %v394
    %411 = vst [vmem:[#allocation2 + $0x2a] sm:$0x3f] %v395
    %v412 = vld [vmem:[#allocation4] sm:$0xff]
    %v413 = vld [vmem:[#allocation4 + $0x8] sm:$0xff]
    %v414 = vld [vmem:[#allocation4 + $0x10] sm:$0xff]
    %v415 = vld [vmem:[#allocation4 + $0x18] sm:$0xff]
    %v416 = vld [vmem:[#allocation4 + $0x20] sm:$0xff]
    %v417 = vld [vmem:[#allocation4 + $0x28] sm:$0xff]
    %v418 = vld [vmem:[#allocation4 + $0x30] sm:$0xff]
    %v419 = vld [vmem:[#allocation4 + $0x38] sm:$0xff]
    %v420 = vld [vmem:[#allocation4 + $0x40] sm:$0xff]
    %v421 = vld [vmem:[#allocation4 + $0x48] sm:$0xff]
    %v422 = vld [vmem:[#allocation4 + $0x50] sm:$0xff]
    %v423 = vld [vmem:[#allocation4 + $0x58] sm:$0xff]
    %v424 = vld [vmem:[#allocation4 + $0x60] sm:$0xff]
    %v425 = vld [vmem:[#allocation4 + $0x68] sm:$0xff]
    %v426 = vld [vmem:[#allocation4 + $0x70] sm:$0xff]
    %v427 = vld [vmem:[#allocation4 + $0x78] sm:$0xff]
    %v428 = vld [vmem:[#allocation4 + $0x80] sm:$0xff]
    %v429 = vld [vmem:[#allocation4 + $0x88] sm:$0xff]
    %v430 = vld [vmem:[#allocation4 + $0x90] sm:$0xff]
    %v431 = vld [vmem:[#allocation4 + $0x98] sm:$0xff]
    %v432 = vld [vmem:[#allocation4 + $0xa0] sm:$0xff]
    %v433 = vld [vmem:[#allocation4 + $0xa8] sm:$0xff]
    %v434 = vld [vmem:[#allocation4 + $0xb0] sm:$0xff]
    %v435 = vld [vmem:[#allocation4 + $0xb8] sm:$0xff]
    %v436 = vld [vmem:[#allocation4 + $0xc0] sm:$0xff]
    %v437 = vld [vmem:[#allocation4 + $0xc8] sm:$0xff]
    %v438 = vld [vmem:[#allocation4 + $0xd0] sm:$0xff]
    %v439 = vld [vmem:[#allocation4 + $0xd8] sm:$0xff]
    %v440 = vld [vmem:[#allocation4 + $0xe0] sm:$0xff]
    %v441 = vld [vmem:[#allocation4 + $0xe8] sm:$0xff]
    %v442 = vld [vmem:[#allocation4 + $0xf0] sm:$0xff]
    %v443 = vld [vmem:[#allocation4 + $0xf8] sm:$0xff]
    %v444 = vld [vmem:[#allocation4 + $0x100] sm:$0xff]
    %v445 = vld [vmem:[#allocation4 + $0x108] sm:$0xff]
    %v446 = vld [vmem:[#allocation4 + $0x110] sm:$0xff]
    %v447 = vld [vmem:[#allocation4 + $0x118] sm:$0xff]
    %v448 = vld [vmem:[#allocation4 + $0x120] sm:$0xff]
    %v449 = vld [vmem:[#allocation4 + $0x128] sm:$0xff]
    %v450 = vld [vmem:[#allocation4 + $0x130] sm:$0xff]
    %v451 = vld [vmem:[#allocation4 + $0x138] sm:$0xff]
    %v452 = vld [vmem:[#allocation4 + $0x140] sm:$0xff]
    %v453 = vld [vmem:[#allocation4 + $0x148] sm:$0xff]
    %v454 = vld [vmem:[#allocation4 + $0x150] sm:$0xff]
    %v455 = vld [vmem:[#allocation4 + $0x158] sm:$0xff]
    %v456 = vld [vmem:[#allocation4 + $0x160] sm:$0xff]
    %v457 = vld [vmem:[#allocation4 + $0x168] sm:$0xff]
    %v458 = vld [vmem:[#allocation4 + $0x170] sm:$0xff]
    %v459 = vld [vmem:[#allocation4 + $0x178] sm:$0xff]
    %v460 = vld [vmem:[%s5] sm:$0x7]
    %v461 = vld [vmem:[#allocation6] sm:$0xff]
    %v462 = vld [vmem:[#allocation6 + $0x8] sm:$0xff]
    %v463 = vld [vmem:[#allocation6 + $0x10] sm:$0xff]
    %v464 = vld [vmem:[#allocation6 + $0x18] sm:$0xff]
    %v465 = vld [vmem:[#allocation6 + $0x20] sm:$0xff]
    %v466 = vld [vmem:[#allocation6 + $0x28] sm:$0xff]
    %v467 = vld [vmem:[#allocation6 + $0x30] sm:$0xff]
    %v468 = vld [vmem:[#allocation6 + $0x38] sm:$0xff]
    %v469 = vld [vmem:[#allocation6 + $0x40] sm:$0xff]
    %v470 = vld [vmem:[#allocation6 + $0x48] sm:$0xff]
    %v471 = vld [vmem:[#allocation6 + $0x50] sm:$0xff]
    %v472 = vld [vmem:[#allocation6 + $0x58] sm:$0xff]
    %v473 = vld [vmem:[#allocation6 + $0x60] sm:$0xff]
    %v474 = vld [vmem:[#allocation6 + $0x68] sm:$0xff]
    %v475 = vld [vmem:[#allocation6 + $0x70] sm:$0xff]
    %v476 = vld [vmem:[#allocation6 + $0x78] sm:$0xff]
    %v477 = vld [vmem:[#allocation6 + $0x80] sm:$0xff]
    %v478 = vld [vmem:[#allocation6 + $0x88] sm:$0xff]
    %v479 = vld [vmem:[#allocation6 + $0x90] sm:$0xff]
    %v480 = vld [vmem:[#allocation6 + $0x98] sm:$0xff]
    %v481 = vld [vmem:[#allocation6 + $0xa0] sm:$0xff]
    %v482 = vld [vmem:[#allocation6 + $0xa8] sm:$0xff]
    %v483 = vld [vmem:[#allocation6 + $0xb0] sm:$0xff]
    %v484 = vld [vmem:[#allocation6 + $0xb8] sm:$0xff]
    %v485 = vld [vmem:[#allocation6 + $0xc0] sm:$0xff]
    %v486 = vld [vmem:[#allocation6 + $0xc8] sm:$0xff]
    %v487 = vld [vmem:[#allocation6 + $0xd0] sm:$0xff]
    %v488 = vld [vmem:[#allocation6 + $0xd8] sm:$0xff]
    %v489 = vld [vmem:[#allocation6 + $0xe0] sm:$0xff]
    %v490 = vld [vmem:[#allocation6 + $0xe8] sm:$0xff]
    %v491 = vld [vmem:[#allocation6 + $0xf0] sm:$0xff]
    %v492 = vld [vmem:[#allocation6 + $0xf8] sm:$0xff]
    %v493 = vld [vmem:[#allocation6 + $0x100] sm:$0xff]
    %v494 = vld [vmem:[#allocation6 + $0x108] sm:$0xff]
    %v495 = vld [vmem:[#allocation6 + $0x110] sm:$0xff]
    %v496 = vld [vmem:[#allocation6 + $0x118] sm:$0xff]
    %v497 = vld [vmem:[#allocation6 + $0x120] sm:$0xff]
    %v498 = vld [vmem:[#allocation6 + $0x128] sm:$0xff]
    %v499 = vld [vmem:[#allocation6 + $0x130] sm:$0xff]
    %v500 = vld [vmem:[#allocation6 + $0x138] sm:$0xff]
    %v501 = vld [vmem:[#allocation6 + $0x140] sm:$0xff]
    %v502 = vld [vmem:[#allocation6 + $0x148] sm:$0xff]
    %v503 = vld [vmem:[#allocation6 + $0x150] sm:$0xff]
    %v504 = vld [vmem:[#allocation6 + $0x158] sm:$0xff]
    %v505 = vld [vmem:[#allocation6 + $0x160] sm:$0xff]
    %v506 = vld [vmem:[#allocation6 + $0x168] sm:$0xff]
    %v507 = vld [vmem:[#allocation6 + $0x170] sm:$0xff]
    %v508 = vld [vmem:[#allocation6 + $0x178] sm:$0xff]
    %v509 = vld [vmem:[%s8] sm:$0x7]
    %v510 = vld [vmem:[#allocation8] sm:$0xff]
    %v511 = vld [vmem:[#allocation8 + $0x8] sm:$0xff]
    %v512 = vld [vmem:[#allocation8 + $0x10] sm:$0xff]
    %v513 = vld [vmem:[#allocation8 + $0x18] sm:$0xff]
    %v514 = vld [vmem:[#allocation8 + $0x20] sm:$0xff]
    %v515 = vld [vmem:[#allocation8 + $0x28] sm:$0xff]
    %v516 = vld [vmem:[#allocation8 + $0x30] sm:$0xff]
    %v517 = vld [vmem:[#allocation8 + $0x38] sm:$0xff]
    %v518 = vld [vmem:[#allocation8 + $0x40] sm:$0xff]
    %v519 = vld [vmem:[#allocation8 + $0x48] sm:$0xff]
    %v520 = vld [vmem:[#allocation8 + $0x50] sm:$0xff]
    %v521 = vld [vmem:[#allocation8 + $0x58] sm:$0xff]
    %v522 = vld [vmem:[#allocation8 + $0x60] sm:$0xff]
    %v523 = vld [vmem:[#allocation8 + $0x68] sm:$0xff]
    %v524 = vld [vmem:[#allocation8 + $0x70] sm:$0xff]
    %v525 = vld [vmem:[#allocation8 + $0x78] sm:$0xff]
    %v526 = vld [vmem:[#allocation8 + $0x80] sm:$0xff]
    %v527 = vld [vmem:[#allocation8 + $0x88] sm:$0xff]
    %v528 = vld [vmem:[#allocation8 + $0x90] sm:$0xff]
    %v529 = vld [vmem:[#allocation8 + $0x98] sm:$0xff]
    %v530 = vld [vmem:[#allocation8 + $0xa0] sm:$0xff]
    %v531 = vld [vmem:[#allocation8 + $0xa8] sm:$0xff]
    %v532 = vld [vmem:[#allocation8 + $0xb0] sm:$0xff]
    %v533 = vld [vmem:[#allocation8 + $0xb8] sm:$0xff]
    %v534 = vld [vmem:[#allocation8 + $0xc0] sm:$0xff]
    %v535 = vld [vmem:[#allocation8 + $0xc8] sm:$0xff]
    %v536 = vld [vmem:[#allocation8 + $0xd0] sm:$0xff]
    %v537 = vld [vmem:[#allocation8 + $0xd8] sm:$0xff]
    %v538 = vld [vmem:[#allocation8 + $0xe0] sm:$0xff]
    %v539 = vld [vmem:[#allocation8 + $0xe8] sm:$0xff]
    %v540 = vld [vmem:[#allocation8 + $0xf0] sm:$0xff]
    %v541 = vld [vmem:[#allocation8 + $0xf8] sm:$0xff]
    %v542 = vld [vmem:[#allocation8 + $0x100] sm:$0xff]
    %v543 = vld [vmem:[#allocation8 + $0x108] sm:$0xff]
    %v544 = vld [vmem:[#allocation8 + $0x110] sm:$0xff]
    %v545 = vld [vmem:[#allocation8 + $0x118] sm:$0xff]
    %v546 = vld [vmem:[#allocation8 + $0x120] sm:$0xff]
    %v547 = vld [vmem:[#allocation8 + $0x128] sm:$0xff]
    %v548 = vld [vmem:[#allocation8 + $0x130] sm:$0xff]
    %v549 = vld [vmem:[#allocation8 + $0x138] sm:$0xff]
    %v550 = vld [vmem:[#allocation8 + $0x140] sm:$0xff]
    %v551 = vld [vmem:[#allocation8 + $0x148] sm:$0xff]
    %v552 = vld [vmem:[#allocation8 + $0x150] sm:$0xff]
    %v553 = vld [vmem:[#allocation8 + $0x158] sm:$0xff]
    %v554 = vld [vmem:[#allocation8 + $0x160] sm:$0xff]
    %v555 = vld [vmem:[#allocation8 + $0x168] sm:$0xff]
    %v556 = vld [vmem:[#allocation8 + $0x170] sm:$0xff]
    %v557 = vld [vmem:[#allocation8 + $0x178] sm:$0xff]
    %v558 = vld [vmem:[%s9] sm:$0x7]
    %v559 = vld [vmem:[#allocation2] sm:$0x3f]
    %v561 = vlaneseq
    %v562 = vshrl.u32 %v561, 7
    %v563 = vsub.s32 0, %v562
    %v564 = vrot.slane %v460, %v563
    %v565 = vlaneseq
    %v566 = vshrl.u32 %v565, 7
    %v567 = vsub.s32 1, %v566
    %v568 = vrot.slane %v460, %v567
    %v569 = vlaneseq
    %v570 = vshrl.u32 %v569, 7
    %v571 = vsub.s32 2, %v570
    %v572 = vrot.slane %v460, %v571
    %576 = vmatprep.subr.mxu0 %v413
    %577 = vmatpush1.msra.mxu0 %v412
    %578 = vmatprep.subr.mxu0 %v416
    %579 = vmatpush1.msra.mxu0 %v415
    %580 = vmatprep.subr.mxu0 %v419
    %581 = vmatpush1.msra.mxu0 %v418
    %582 = vmatprep.subr.mxu0 %v422
    %583 = vmatpush1.msra.mxu0 %v421
    %584 = vmatprep.subr.mxu0 %v425
    %585 = vmatpush1.msra.mxu0 %v424
    %586 = vmatprep.subr.mxu0 %v428
    %587 = vmatpush1.msra.mxu0 %v427
    %588 = vmatprep.subr.mxu0 %v431
    %589 = vmatpush1.msra.mxu0 %v430
    %590 = vmatprep.subr.mxu0 %v434
    %591 = vmatpush1.msra.mxu0 %v433
    %592 = vmatprep.subr.mxu0 %v437
    %593 = vmatpush1.msra.mxu0 %v436
    %594 = vmatprep.subr.mxu0 %v440
    %595 = vmatpush1.msra.mxu0 %v439
    %596 = vmatprep.subr.mxu0 %v443
    %597 = vmatpush1.msra.mxu0 %v442
    %598 = vmatprep.subr.mxu0 %v446
    %599 = vmatpush1.msra.mxu0 %v445
    %600 = vmatprep.subr.mxu0 %v449
    %601 = vmatpush1.msra.mxu0 %v448
    %602 = vmatprep.subr.mxu0 %v452
    %603 = vmatpush1.msra.mxu0 %v451
    %604 = vmatprep.subr.mxu0 %v455
    %605 = vmatpush1.msra.mxu0 %v454
    %606 = vmatprep.subr.mxu0 %v458
    %607 = vmatpush1.msra.mxu0 %v457
    %608 = vmatprep.subr.mxu0 0.0
    %609 = vmatpush1.msra.mxu0 0.0
    %610 = vmatprep.subr.mxu0 0.0
    %611 = vmatpush1.msra.mxu0 0.0
    %612 = vmatprep.subr.mxu0 0.0
    %613 = vmatpush1.msra.mxu0 0.0
    %614 = vmatprep.subr.mxu0 0.0
    %615 = vmatpush1.msra.mxu0 0.0
    %616 = vmatprep.subr.mxu0 0.0
    %617 = vmatpush1.msra.mxu0 0.0
    %618 = vmatprep.subr.mxu0 0.0
    %619 = vmatpush1.msra.mxu0 0.0
    %620 = vmatprep.subr.mxu0 0.0
    %621 = vmatpush1.msra.mxu0 0.0
    %622 = vmatprep.subr.mxu0 0.0
    %623 = vmatpush1.msra.mxu0 0.0
    %624 = vmatprep.subr.mxu0 0.0
    %625 = vmatpush1.msra.mxu0 0.0
    %626 = vmatprep.subr.mxu0 0.0
    %627 = vmatpush1.msra.mxu0 0.0
    %628 = vmatprep.subr.mxu0 0.0
    %629 = vmatpush1.msra.mxu0 0.0
    %630 = vmatprep.subr.mxu0 0.0
    %631 = vmatpush1.msra.mxu0 0.0
    %632 = vmatprep.subr.mxu0 0.0
    %633 = vmatpush1.msra.mxu0 0.0
    %634 = vmatprep.subr.mxu0 0.0
    %635 = vmatpush1.msra.mxu0 0.0
    %636 = vmatprep.subr.mxu0 0.0
    %637 = vmatpush1.msra.mxu0 0.0
    %638 = vmatprep.subr.mxu0 0.0
    %639 = vmatpush1.msra.mxu0 0.0
    %640 = vmatprep.mubr.f32.mxu0 0.0
    %641 = vmatmul.mubr.f32.gmra.mrb[0].mxu0 0.0
    %v642 = vpop.f32.mrb[0].mxu0
    %v643 = vadd.f32 %v564, %v642
    %v644 = vpop.f32.mrb[0].mxu0
    %v645 = vadd.f32 %v568, %v644
    %646 = vdwg.mxu0
    %647 = vmatprep.subr.mxu0 0.0
    %648 = vmatpush1.msra.mxu0 %v414
    %649 = vmatprep.subr.mxu0 0.0
    %650 = vmatpush1.msra.mxu0 %v417
    %651 = vmatprep.subr.mxu0 0.0
    %652 = vmatpush1.msra.mxu0 %v420
    %653 = vmatprep.subr.mxu0 0.0
    %654 = vmatpush1.msra.mxu0 %v423
    %655 = vmatprep.subr.mxu0 0.0
    %656 = vmatpush1.msra.mxu0 %v426
    %657 = vmatprep.subr.mxu0 0.0
    %658 = vmatpush1.msra.mxu0 %v429
    %659 = vmatprep.subr.mxu0 0.0
    %660 = vmatpush1.msra.mxu0 %v432
    %661 = vmatprep.subr.mxu0 0.0
    %662 = vmatpush1.msra.mxu0 %v435
    %663 = vmatprep.subr.mxu0 0.0
    %664 = vmatpush1.msra.mxu0 %v438
    %665 = vmatprep.subr.mxu0 0.0
    %666 = vmatpush1.msra.mxu0 %v441
    %667 = vmatprep.subr.mxu0 0.0
    %668 = vmatpush1.msra.mxu0 %v444
    %669 = vmatprep.subr.mxu0 0.0
    %670 = vmatpush1.msra.mxu0 %v447
    %671 = vmatprep.subr.mxu0 0.0
    %672 = vmatpush1.msra.mxu0 %v450
    %673 = vmatprep.subr.mxu0 0.0
    %674 = vmatpush1.msra.mxu0 %v453
    %675 = vmatprep.subr.mxu0 0.0
    %676 = vmatpush1.msra.mxu0 %v456
    %677 = vmatprep.subr.mxu0 0.0
    %678 = vmatpush1.msra.mxu0 %v459
    %679 = vmatprep.subr.mxu0 0.0
    %680 = vmatpush1.msra.mxu0 0.0
    %681 = vmatprep.subr.mxu0 0.0
    %682 = vmatpush1.msra.mxu0 0.0
    %683 = vmatprep.subr.mxu0 0.0
    %684 = vmatpush1.msra.mxu0 0.0
    %685 = vmatprep.subr.mxu0 0.0
    %686 = vmatpush1.msra.mxu0 0.0
    %687 = vmatprep.subr.mxu0 0.0
    %688 = vmatpush1.msra.mxu0 0.0
    %689 = vmatprep.subr.mxu0 0.0
    %690 = vmatpush1.msra.mxu0 0.0
    %691 = vmatprep.subr.mxu0 0.0
    %692 = vmatpush1.msra.mxu0 0.0
    %693 = vmatprep.subr.mxu0 0.0
    %694 = vmatpush1.msra.mxu0 0.0
    %695 = vmatprep.subr.mxu0 0.0
    %696 = vmatpush1.msra.mxu0 0.0
    %697 = vmatprep.subr.mxu0 0.0
    %698 = vmatpush1.msra.mxu0 0.0
    %699 = vmatprep.subr.mxu0 0.0
    %700 = vmatpush1.msra.mxu0 0.0
    %701 = vmatprep.subr.mxu0 0.0
    %702 = vmatpush1.msra.mxu0 0.0
    %703 = vmatprep.subr.mxu0 0.0
    %704 = vmatpush1.msra.mxu0 0.0
    %705 = vmatprep.subr.mxu0 0.0
    %706 = vmatpush1.msra.mxu0 0.0
    %707 = vmatprep.subr.mxu0 0.0
    %708 = vmatpush1.msra.mxu0 0.0
    %709 = vmatprep.subr.mxu0 0.0
    %710 = vmatpush1.msra.mxu0 0.0
    %711 = vmatprep.mubr.f32.mxu0 0.0
    %712 = vmatmul.mubr.f32.gmra.mrb[0].mxu0 0.0
    %v713 = vpop.f32.mrb[0].mxu0
    %v714 = vadd.f32 %v572, %v713
    %v715 = vpop.f32.mrb[0].mxu0
    %716 = vdwg.mxu0
    %v717 = vadd.f32 %v559, %v643
    %v718 = vxor.u32 %v717, 2147483648
    %v719 = vmul.f32 %v718, 1.442695
    %v720 = vpow.pop %v719
    %v721 = vadd.f32 %v720, 1.0
    %v722 = vrcp.pop %v721
    %v723 = vmul.f32 1.0, %v722
    %v725 = vrot.slane %v559, 2
    %v727 = vadd.f32 %v725, %v645
    %v728 = vxor.u32 %v727, 2147483648
    %v729 = vmul.f32 %v728, 1.442695
    %v730 = vpow.pop %v729
    %v731 = vadd.f32 %v730, 1.0
    %v732 = vrcp.pop %v731
    %v733 = vmul.f32 1.0, %v732
    %v734 = vmul.f32 %v723, %v714
    %v735 = vrot.slane %v559, 4
    %v737 = vadd.f32 %v735, %v734
    %v738 = vtanh.pop %v737
    %v739 = vsub.f32 1.0, %v733
    %v740 = vmul.f32 %v739, %v738
    %v741 = vmul.f32 %v733, 0.0
    %v742 = vadd.f32 %v740, %v741
    %v744 = vlaneseq
    %v745 = vshrl.u32 %v744, 7
    %v746 = vsub.s32 0, %v745
    %v747 = vrot.slane %v509, %v746
    %v748 = vlaneseq
    %v749 = vshrl.u32 %v748, 7
    %v750 = vsub.s32 1, %v749
    %v751 = vrot.slane %v509, %v750
    %v752 = vlaneseq
    %v753 = vshrl.u32 %v752, 7
    %v754 = vsub.s32 2, %v753
    %v755 = vrot.slane %v509, %v754
    %759 = vmatprep.subr.mxu0 %v462
    %760 = vmatpush1.msra.mxu0 %v461
    %761 = vmatprep.subr.mxu0 %v465
    %762 = vmatpush1.msra.mxu0 %v464
    %763 = vmatprep.subr.mxu0 %v468
    %764 = vmatpush1.msra.mxu0 %v467
    %765 = vmatprep.subr.mxu0 %v471
    %766 = vmatpush1.msra.mxu0 %v470
    %767 = vmatprep.subr.mxu0 %v474
    %768 = vmatpush1.msra.mxu0 %v473
    %769 = vmatprep.subr.mxu0 %v477
    %770 = vmatpush1.msra.mxu0 %v476
    %771 = vmatprep.subr.mxu0 %v480
    %772 = vmatpush1.msra.mxu0 %v479
    %773 = vmatprep.subr.mxu0 %v483
    %774 = vmatpush1.msra.mxu0 %v482
    %775 = vmatprep.subr.mxu0 %v486
    %776 = vmatpush1.msra.mxu0 %v485
    %777 = vmatprep.subr.mxu0 %v489
    %778 = vmatpush1.msra.mxu0 %v488
    %779 = vmatprep.subr.mxu0 %v492
    %780 = vmatpush1.msra.mxu0 %v491
    %781 = vmatprep.subr.mxu0 %v495
    %782 = vmatpush1.msra.mxu0 %v494
    %783 = vmatprep.subr.mxu0 %v498
    %784 = vmatpush1.msra.mxu0 %v497
    %785 = vmatprep.subr.mxu0 %v501
    %786 = vmatpush1.msra.mxu0 %v500
    %787 = vmatprep.subr.mxu0 %v504
    %788 = vmatpush1.msra.mxu0 %v503
    %789 = vmatprep.subr.mxu0 %v507
    %790 = vmatpush1.msra.mxu0 %v506
    %791 = vmatprep.subr.mxu0 0.0
    %792 = vmatpush1.msra.mxu0 0.0
    %793 = vmatprep.subr.mxu0 0.0
    %794 = vmatpush1.msra.mxu0 0.0
    %795 = vmatprep.subr.mxu0 0.0
    %796 = vmatpush1.msra.mxu0 0.0
    %797 = vmatprep.subr.mxu0 0.0
    %798 = vmatpush1.msra.mxu0 0.0
    %799 = vmatprep.subr.mxu0 0.0
    %800 = vmatpush1.msra.mxu0 0.0
    %801 = vmatprep.subr.mxu0 0.0
    %802 = vmatpush1.msra.mxu0 0.0
    %803 = vmatprep.subr.mxu0 0.0
    %804 = vmatpush1.msra.mxu0 0.0
    %805 = vmatprep.subr.mxu0 0.0
    %806 = vmatpush1.msra.mxu0 0.0
    %807 = vmatprep.subr.mxu0 0.0
    %808 = vmatpush1.msra.mxu0 0.0
    %809 = vmatprep.subr.mxu0 0.0
    %810 = vmatpush1.msra.mxu0 0.0
    %811 = vmatprep.subr.mxu0 0.0
    %812 = vmatpush1.msra.mxu0 0.0
    %813 = vmatprep.subr.mxu0 0.0
    %814 = vmatpush1.msra.mxu0 0.0
    %815 = vmatprep.subr.mxu0 0.0
    %816 = vmatpush1.msra.mxu0 0.0
    %817 = vmatprep.subr.mxu0 0.0
    %818 = vmatpush1.msra.mxu0 0.0
    %819 = vmatprep.subr.mxu0 0.0
    %820 = vmatpush1.msra.mxu0 0.0
    %821 = vmatprep.subr.mxu0 0.0
    %822 = vmatpush1.msra.mxu0 0.0
    %823 = vmatprep.mubr.f32.mxu0 0.0
    %824 = vmatmul.mubr.f32.gmra.mrb[0].mxu0 %v742
    %v825 = vpop.f32.mrb[0].mxu0
    %v826 = vadd.f32 %v747, %v825
    %v827 = vpop.f32.mrb[0].mxu0
    %v828 = vadd.f32 %v751, %v827
    %829 = vdwg.mxu0
    %830 = vmatprep.subr.mxu0 0.0
    %831 = vmatpush1.msra.mxu0 %v463
    %832 = vmatprep.subr.mxu0 0.0
    %833 = vmatpush1.msra.mxu0 %v466
    %834 = vmatprep.subr.mxu0 0.0
    %835 = vmatpush1.msra.mxu0 %v469
    %836 = vmatprep.subr.mxu0 0.0
    %837 = vmatpush1.msra.mxu0 %v472
    %838 = vmatprep.subr.mxu0 0.0
    %839 = vmatpush1.msra.mxu0 %v475
    %840 = vmatprep.subr.mxu0 0.0
    %841 = vmatpush1.msra.mxu0 %v478
    %842 = vmatprep.subr.mxu0 0.0
    %843 = vmatpush1.msra.mxu0 %v481
    %844 = vmatprep.subr.mxu0 0.0
    %845 = vmatpush1.msra.mxu0 %v484
    %846 = vmatprep.subr.mxu0 0.0
    %847 = vmatpush1.msra.mxu0 %v487
    %848 = vmatprep.subr.mxu0 0.0
    %849 = vmatpush1.msra.mxu0 %v490
    %850 = vmatprep.subr.mxu0 0.0
    %851 = vmatpush1.msra.mxu0 %v493
    %852 = vmatprep.subr.mxu0 0.0
    %853 = vmatpush1.msra.mxu0 %v496
    %854 = vmatprep.subr.mxu0 0.0
    %855 = vmatpush1.msra.mxu0 %v499
    %856 = vmatprep.subr.mxu0 0.0
    %857 = vmatpush1.msra.mxu0 %v502
    %858 = vmatprep.subr.mxu0 0.0
    %859 = vmatpush1.msra.mxu0 %v505
    %860 = vmatprep.subr.mxu0 0.0
    %861 = vmatpush1.msra.mxu0 %v508
    %862 = vmatprep.subr.mxu0 0.0
    %863 = vmatpush1.msra.mxu0 0.0
    %864 = vmatprep.subr.mxu0 0.0
    %865 = vmatpush1.msra.mxu0 0.0
    %866 = vmatprep.subr.mxu0 0.0
    %867 = vmatpush1.msra.mxu0 0.0
    %868 = vmatprep.subr.mxu0 0.0
    %869 = vmatpush1.msra.mxu0 0.0
    %870 = vmatprep.subr.mxu0 0.0
    %871 = vmatpush1.msra.mxu0 0.0
    %872 = vmatprep.subr.mxu0 0.0
    %873 = vmatpush1.msra.mxu0 0.0
    %874 = vmatprep.subr.mxu0 0.0
    %875 = vmatpush1.msra.mxu0 0.0
    %876 = vmatprep.subr.mxu0 0.0
    %877 = vmatpush1.msra.mxu0 0.0
    %878 = vmatprep.subr.mxu0 0.0
    %879 = vmatpush1.msra.mxu0 0.0
    %880 = vmatprep.subr.mxu0 0.0
    %881 = vmatpush1.msra.mxu0 0.0
    %882 = vmatprep.subr.mxu0 0.0
    %883 = vmatpush1.msra.mxu0 0.0
    %884 = vmatprep.subr.mxu0 0.0
    %885 = vmatpush1.msra.mxu0 0.0
    %886 = vmatprep.subr.mxu0 0.0
    %887 = vmatpush1.msra.mxu0 0.0
    %888 = vmatprep.subr.mxu0 0.0
    %889 = vmatpush1.msra.mxu0 0.0
    %890 = vmatprep.subr.mxu0 0.0
    %891 = vmatpush1.msra.mxu0 0.0
    %892 = vmatprep.subr.mxu0 0.0
    %893 = vmatpush1.msra.mxu0 0.0
    %894 = vmatprep.mubr.f32.mxu0 0.0
    %895 = vmatmul.mubr.f32.gmra.mrb[0].mxu0 %v742
    %v896 = vpop.f32.mrb[0].mxu0
    %v897 = vadd.f32 %v755, %v896
    %v898 = vpop.f32.mrb[0].mxu0
    %899 = vdwg.mxu0
    %v901 = vlaneseq
    %v902 = vshrl.u32 %v901, 7
    %v903 = vsub.s32 0, %v902
    %v904 = vrot.slane %v558, %v903
    %v905 = vlaneseq
    %v906 = vshrl.u32 %v905, 7
    %v907 = vsub.s32 1, %v906
    %v908 = vrot.slane %v558, %v907
    %v909 = vlaneseq
    %v910 = vshrl.u32 %v909, 7
    %v911 = vsub.s32 2, %v910
    %v912 = vrot.slane %v558, %v911
    %916 = vmatprep.subr.mxu0 %v511
    %917 = vmatpush1.msra.mxu0 %v510
    %918 = vmatprep.subr.mxu0 %v514
    %919 = vmatpush1.msra.mxu0 %v513
    %920 = vmatprep.subr.mxu0 %v517
    %921 = vmatpush1.msra.mxu0 %v516
    %922 = vmatprep.subr.mxu0 %v520
    %923 = vmatpush1.msra.mxu0 %v519
    %924 = vmatprep.subr.mxu0 %v523
    %925 = vmatpush1.msra.mxu0 %v522
    %926 = vmatprep.subr.mxu0 %v526
    %927 = vmatpush1.msra.mxu0 %v525
    %928 = vmatprep.subr.mxu0 %v529
    %929 = vmatpush1.msra.mxu0 %v528
    %930 = vmatprep.subr.mxu0 %v532
    %931 = vmatpush1.msra.mxu0 %v531
    %932 = vmatprep.subr.mxu0 %v535
    %933 = vmatpush1.msra.mxu0 %v534
    %934 = vmatprep.subr.mxu0 %v538
    %935 = vmatpush1.msra.mxu0 %v537
    %936 = vmatprep.subr.mxu0 %v541
    %937 = vmatpush1.msra.mxu0 %v540
    %938 = vmatprep.subr.mxu0 %v544
    %939 = vmatpush1.msra.mxu0 %v543
    %940 = vmatprep.subr.mxu0 %v547
    %941 = vmatpush1.msra.mxu0 %v546
    %942 = vmatprep.subr.mxu0 %v550
    %943 = vmatpush1.msra.mxu0 %v549
    %944 = vmatprep.subr.mxu0 %v553
    %945 = vmatpush1.msra.mxu0 %v552
    %946 = vmatprep.subr.mxu0 %v556
    %947 = vmatpush1.msra.mxu0 %v555
    %948 = vmatprep.subr.mxu0 0.0
    %949 = vmatpush1.msra.mxu0 0.0
    %950 = vmatprep.subr.mxu0 0.0
    %951 = vmatpush1.msra.mxu0 0.0
    %952 = vmatprep.subr.mxu0 0.0
    %953 = vmatpush1.msra.mxu0 0.0
    %954 = vmatprep.subr.mxu0 0.0
    %955 = vmatpush1.msra.mxu0 0.0
    %956 = vmatprep.subr.mxu0 0.0
    %957 = vmatpush1.msra.mxu0 0.0
    %958 = vmatprep.subr.mxu0 0.0
    %959 = vmatpush1.msra.mxu0 0.0
    %960 = vmatprep.subr.mxu0 0.0
    %961 = vmatpush1.msra.mxu0 0.0
    %962 = vmatprep.subr.mxu0 0.0
    %963 = vmatpush1.msra.mxu0 0.0
    %964 = vmatprep.subr.mxu0 0.0
    %965 = vmatpush1.msra.mxu0 0.0
    %966 = vmatprep.subr.mxu0 0.0
    %967 = vmatpush1.msra.mxu0 0.0
    %968 = vmatprep.subr.mxu0 0.0
    %969 = vmatpush1.msra.mxu0 0.0
    %970 = vmatprep.subr.mxu0 0.0
    %971 = vmatpush1.msra.mxu0 0.0
    %972 = vmatprep.subr.mxu0 0.0
    %973 = vmatpush1.msra.mxu0 0.0
    %974 = vmatprep.subr.mxu0 0.0
    %975 = vmatpush1.msra.mxu0 0.0
    %976 = vmatprep.subr.mxu0 0.0
    %977 = vmatpush1.msra.mxu0 0.0
    %978 = vmatprep.subr.mxu0 0.0
    %979 = vmatpush1.msra.mxu0 0.0
    %980 = vmatprep.mubr.f32.mxu0 0.0
    %981 = vmatmul.mubr.f32.gmra.mrb[0].mxu0 0.0
    %v982 = vpop.f32.mrb[0].mxu0
    %v983 = vadd.f32 %v904, %v982
    %v984 = vpop.f32.mrb[0].mxu0
    %v985 = vadd.f32 %v908, %v984
    %986 = vdwg.mxu0
    %987 = vmatprep.subr.mxu0 0.0
    %988 = vmatpush1.msra.mxu0 %v512
    %989 = vmatprep.subr.mxu0 0.0
    %990 = vmatpush1.msra.mxu0 %v515
    %991 = vmatprep.subr.mxu0 0.0
    %992 = vmatpush1.msra.mxu0 %v518
    %993 = vmatprep.subr.mxu0 0.0
    %994 = vmatpush1.msra.mxu0 %v521
    %995 = vmatprep.subr.mxu0 0.0
    %996 = vmatpush1.msra.mxu0 %v524
    %997 = vmatprep.subr.mxu0 0.0
    %998 = vmatpush1.msra.mxu0 %v527
    %999 = vmatprep.subr.mxu0 0.0
    %1000 = vmatpush1.msra.mxu0 %v530
    %1001 = vmatprep.subr.mxu0 0.0
    %1002 = vmatpush1.msra.mxu0 %v533
    %1003 = vmatprep.subr.mxu0 0.0
    %1004 = vmatpush1.msra.mxu0 %v536
    %1005 = vmatprep.subr.mxu0 0.0
    %1006 = vmatpush1.msra.mxu0 %v539
    %1007 = vmatprep.subr.mxu0 0.0
    %1008 = vmatpush1.msra.mxu0 %v542
    %1009 = vmatprep.subr.mxu0 0.0
    %1010 = vmatpush1.msra.mxu0 %v545
    %1011 = vmatprep.subr.mxu0 0.0
    %1012 = vmatpush1.msra.mxu0 %v548
    %1013 = vmatprep.subr.mxu0 0.0
    %1014 = vmatpush1.msra.mxu0 %v551
    %1015 = vmatprep.subr.mxu0 0.0
    %1016 = vmatpush1.msra.mxu0 %v554
    %1017 = vmatprep.subr.mxu0 0.0
    %1018 = vmatpush1.msra.mxu0 %v557
    %1019 = vmatprep.subr.mxu0 0.0
    %1020 = vmatpush1.msra.mxu0 0.0
    %1021 = vmatprep.subr.mxu0 0.0
    %1022 = vmatpush1.msra.mxu0 0.0
    %1023 = vmatprep.subr.mxu0 0.0
    %1024 = vmatpush1.msra.mxu0 0.0
    %1025 = vmatprep.subr.mxu0 0.0
    %1026 = vmatpush1.msra.mxu0 0.0
    %1027 = vmatprep.subr.mxu0 0.0
    %1028 = vmatpush1.msra.mxu0 0.0
    %1029 = vmatprep.subr.mxu0 0.0
    %1030 = vmatpush1.msra.mxu0 0.0
    %1031 = vmatprep.subr.mxu0 0.0
    %1032 = vmatpush1.msra.mxu0 0.0
    %1033 = vmatprep.subr.mxu0 0.0
    %1034 = vmatpush1.msra.mxu0 0.0
    %1035 = vmatprep.subr.mxu0 0.0
    %1036 = vmatpush1.msra.mxu0 0.0
    %1037 = vmatprep.subr.mxu0 0.0
    %1038 = vmatpush1.msra.mxu0 0.0
    %1039 = vmatprep.subr.mxu0 0.0
    %1040 = vmatpush1.msra.mxu0 0.0
    %1041 = vmatprep.subr.mxu0 0.0
    %1042 = vmatpush1.msra.mxu0 0.0
    %1043 = vmatprep.subr.mxu0 0.0
    %1044 = vmatpush1.msra.mxu0 0.0
    %1045 = vmatprep.subr.mxu0 0.0
    %1046 = vmatpush1.msra.mxu0 0.0
    %1047 = vmatprep.subr.mxu0 0.0
    %1048 = vmatpush1.msra.mxu0 0.0
    %1049 = vmatprep.subr.mxu0 0.0
    %1050 = vmatpush1.msra.mxu0 0.0
    %1051 = vmatprep.mubr.f32.mxu0 0.0
    %1052 = vmatmul.mubr.f32.gmra.mrb[0].mxu0 0.0
    %v1053 = vpop.f32.mrb[0].mxu0
    %v1054 = vadd.f32 %v912, %v1053
    %v1055 = vpop.f32.mrb[0].mxu0
    %1056 = vdwg.mxu0
    %v1057 = vadd.f32 %v826, %v983
    %v1058 = vxor.u32 %v1057, 2147483648
    %v1059 = vmul.f32 %v1058, 1.442695
    %v1060 = vpow.pop %v1059
    %v1061 = vadd.f32 %v1060, 1.0
    %v1062 = vrcp.pop %v1061
    %v1063 = vmul.f32 1.0, %v1062
    %v1064 = vadd.f32 %v828, %v985
    %v1065 = vxor.u32 %v1064, 2147483648
    %v1066 = vmul.f32 %v1065, 1.442695
    %v1067 = vpow.pop %v1066
    %v1068 = vadd.f32 %v1067, 1.0
    %v1069 = vrcp.pop %v1068
    %v1070 = vmul.f32 1.0, %v1069
    %v1071 = vmul.f32 %v1063, %v1054
    %v1072 = vadd.f32 %v897, %v1071
    %v1073 = vtanh.pop %v1072
    %v1074 = vsub.f32 1.0, %v1070
    %v1075 = vmul.f32 %v1074, %v1073
    %v1076 = vmul.f32 %v1070, 0.0
    %v1077 = vadd.f32 %v1075, %v1076
    %1078 = vst [vmem:[#allocation3] sm:$0x3] %v1077
    %s1079 = scalar_lea.vmem [#allocation2], 6
    %v1080 = vld [vmem:[%s1079] sm:$0x3f]
    %1081 = vmatprep.subr.mxu0 %v413
    %1082 = vmatpush1.msra.mxu0 %v412
    %1083 = vmatprep.subr.mxu0 %v416
    %1084 = vmatpush1.msra.mxu0 %v415
    %1085 = vmatprep.subr.mxu0 %v419
    %1086 = vmatpush1.msra.mxu0 %v418
    %1087 = vmatprep.subr.mxu0 %v422
    %1088 = vmatpush1.msra.mxu0 %v421
    %1089 = vmatprep.subr.mxu0 %v425
    %1090 = vmatpush1.msra.mxu0 %v424
    %1091 = vmatprep.subr.mxu0 %v428
    %1092 = vmatpush1.msra.mxu0 %v427
    %1093 = vmatprep.subr.mxu0 %v431
    %1094 = vmatpush1.msra.mxu0 %v430
    %1095 = vmatprep.subr.mxu0 %v434
    %1096 = vmatpush1.msra.mxu0 %v433
    %1097 = vmatprep.subr.mxu0 %v437
    %1098 = vmatpush1.msra.mxu0 %v436
    %1099 = vmatprep.subr.mxu0 %v440
    %1100 = vmatpush1.msra.mxu0 %v439
    %1101 = vmatprep.subr.mxu0 %v443
    %1102 = vmatpush1.msra.mxu0 %v442
    %1103 = vmatprep.subr.mxu0 %v446
    %1104 = vmatpush1.msra.mxu0 %v445
    %1105 = vmatprep.subr.mxu0 %v449
    %1106 = vmatpush1.msra.mxu0 %v448
    %1107 = vmatprep.subr.mxu0 %v452
    %1108 = vmatpush1.msra.mxu0 %v451
    %1109 = vmatprep.subr.mxu0 %v455
    %1110 = vmatpush1.msra.mxu0 %v454
    %1111 = vmatprep.subr.mxu0 %v458
    %1112 = vmatpush1.msra.mxu0 %v457
    %1113 = vmatprep.subr.mxu0 0.0
    %1114 = vmatpush1.msra.mxu0 0.0
    %1115 = vmatprep.subr.mxu0 0.0
    %1116 = vmatpush1.msra.mxu0 0.0
    %1117 = vmatprep.subr.mxu0 0.0
    %1118 = vmatpush1.msra.mxu0 0.0
    %1119 = vmatprep.subr.mxu0 0.0
    %1120 = vmatpush1.msra.mxu0 0.0
    %1121 = vmatprep.subr.mxu0 0.0
    %1122 = vmatpush1.msra.mxu0 0.0
    %1123 = vmatprep.subr.mxu0 0.0
    %1124 = vmatpush1.msra.mxu0 0.0
    %1125 = vmatprep.subr.mxu0 0.0
    %1126 = vmatpush1.msra.mxu0 0.0
    %1127 = vmatprep.subr.mxu0 0.0
    %1128 = vmatpush1.msra.mxu0 0.0
    %1129 = vmatprep.subr.mxu0 0.0
    %1130 = vmatpush1.msra.mxu0 0.0
    %1131 = vmatprep.subr.mxu0 0.0
    %1132 = vmatpush1.msra.mxu0 0.0
    %1133 = vmatprep.subr.mxu0 0.0
    %1134 = vmatpush1.msra.mxu0 0.0
    %1135 = vmatprep.subr.mxu0 0.0
    %1136 = vmatpush1.msra.mxu0 0.0
    %1137 = vmatprep.subr.mxu0 0.0
    %1138 = vmatpush1.msra.mxu0 0.0
    %1139 = vmatprep.subr.mxu0 0.0
    %1140 = vmatpush1.msra.mxu0 0.0
    %1141 = vmatprep.subr.mxu0 0.0
    %1142 = vmatpush1.msra.mxu0 0.0
    %1143 = vmatprep.subr.mxu0 0.0
    %1144 = vmatpush1.msra.mxu0 0.0
    %1145 = vmatprep.mubr.f32.mxu0 0.0
    %1146 = vmatmul.mubr.f32.gmra.mrb[0].mxu0 %v742
    %v1147 = vpop.f32.mrb[0].mxu0
    %v1148 = vadd.f32 %v564, %v1147
    %v1149 = vpop.f32.mrb[0].mxu0
    %v1150 = vadd.f32 %v568, %v1149
    %1151 = vdwg.mxu0
    %1152 = vmatprep.subr.mxu0 0.0
    %1153 = vmatpush1.msra.mxu0 %v414
    %1154 = vmatprep.subr.mxu0 0.0
    %1155 = vmatpush1.msra.mxu0 %v417
    %1156 = vmatprep.subr.mxu0 0.0
    %1157 = vmatpush1.msra.mxu0 %v420
    %1158 = vmatprep.subr.mxu0 0.0
    %1159 = vmatpush1.msra.mxu0 %v423
    %1160 = vmatprep.subr.mxu0 0.0
    %1161 = vmatpush1.msra.mxu0 %v426
    %1162 = vmatprep.subr.mxu0 0.0
    %1163 = vmatpush1.msra.mxu0 %v429
    %1164 = vmatprep.subr.mxu0 0.0
    %1165 = vmatpush1.msra.mxu0 %v432
    %1166 = vmatprep.subr.mxu0 0.0
    %1167 = vmatpush1.msra.mxu0 %v435
    %1168 = vmatprep.subr.mxu0 0.0
    %1169 = vmatpush1.msra.mxu0 %v438
    %1170 = vmatprep.subr.mxu0 0.0
    %1171 = vmatpush1.msra.mxu0 %v441
    %1172 = vmatprep.subr.mxu0 0.0
    %1173 = vmatpush1.msra.mxu0 %v444
    %1174 = vmatprep.subr.mxu0 0.0
    %1175 = vmatpush1.msra.mxu0 %v447
    %1176 = vmatprep.subr.mxu0 0.0
    %1177 = vmatpush1.msra.mxu0 %v450
    %1178 = vmatprep.subr.mxu0 0.0
    %1179 = vmatpush1.msra.mxu0 %v453
    %1180 = vmatprep.subr.mxu0 0.0
    %1181 = vmatpush1.msra.mxu0 %v456
    %1182 = vmatprep.subr.mxu0 0.0
    %1183 = vmatpush1.msra.mxu0 %v459
    %1184 = vmatprep.subr.mxu0 0.0
    %1185 = vmatpush1.msra.mxu0 0.0
    %1186 = vmatprep.subr.mxu0 0.0
    %1187 = vmatpush1.msra.mxu0 0.0
    %1188 = vmatprep.subr.mxu0 0.0
    %1189 = vmatpush1.msra.mxu0 0.0
    %1190 = vmatprep.subr.mxu0 0.0
    %1191 = vmatpush1.msra.mxu0 0.0
    %1192 = vmatprep.subr.mxu0 0.0
    %1193 = vmatpush1.msra.mxu0 0.0
    %1194 = vmatprep.subr.mxu0 0.0
    %1195 = vmatpush1.msra.mxu0 0.0
    %1196 = vmatprep.subr.mxu0 0.0
    %1197 = vmatpush1.msra.mxu0 0.0
    %1198 = vmatprep.subr.mxu0 0.0
    %1199 = vmatpush1.msra.mxu0 0.0
    %1200 = vmatprep.subr.mxu0 0.0
    %1201 = vmatpush1.msra.mxu0 0.0
    %1202 = vmatprep.subr.mxu0 0.0
    %1203 = vmatpush1.msra.mxu0 0.0
    %1204 = vmatprep.subr.mxu0 0.0
    %1205 = vmatpush1.msra.mxu0 0.0
    %1206 = vmatprep.subr.mxu0 0.0
    %1207 = vmatpush1.msra.mxu0 0.0
    %1208 = vmatprep.subr.mxu0 0.0
    %1209 = vmatpush1.msra.mxu0 0.0
    %1210 = vmatprep.subr.mxu0 0.0
    %1211 = vmatpush1.msra.mxu0 0.0
    %1212 = vmatprep.subr.mxu0 0.0
    %1213 = vmatpush1.msra.mxu0 0.0
    %1214 = vmatprep.subr.mxu0 0.0
    %1215 = vmatpush1.msra.mxu0 0.0
    %1216 = vmatprep.mubr.f32.mxu0 0.0
    %1217 = vmatmul.mubr.f32.gmra.mrb[0].mxu0 %v742
    %v1218 = vpop.f32.mrb[0].mxu0
    %v1219 = vadd.f32 %v572, %v1218
    %v1220 = vpop.f32.mrb[0].mxu0
    %1221 = vdwg.mxu0
    %v1222 = vadd.f32 %v1080, %v1148
    %v1223 = vxor.u32 %v1222, 2147483648
    %v1224 = vmul.f32 %v1223, 1.442695
    %v1225 = vpow.pop %v1224
    %v1226 = vadd.f32 %v1225, 1.0
    %v1227 = vrcp.pop %v1226
    %v1228 = vmul.f32 1.0, %v1227
    %v1230 = vrot.slane %v1080, 2
    %v1232 = vadd.f32 %v1230, %v1150
    %v1233 = vxor.u32 %v1232, 2147483648
    %v1234 = vmul.f32 %v1233, 1.442695
    %v1235 = vpow.pop %v1234
    %v1236 = vadd.f32 %v1235, 1.0
    %v1237 = vrcp.pop %v1236
    %v1238 = vmul.f32 1.0, %v1237
    %v1239 = vmul.f32 %v1228, %v1219
    %v1240 = vrot.slane %v1080, 4
    %v1242 = vadd.f32 %v1240, %v1239
    %v1243 = vtanh.pop %v1242
    %v1244 = vsub.f32 1.0, %v1238
    %v1245 = vmul.f32 %v1244, %v1243
    %v1246 = vmul.f32 %v1238, %v742
    %v1247 = vadd.f32 %v1245, %v1246
    %1248 = vmatprep.subr.mxu0 %v462
    %1249 = vmatpush1.msra.mxu0 %v461
    %1250 = vmatprep.subr.mxu0 %v465
    %1251 = vmatpush1.msra.mxu0 %v464
    %1252 = vmatprep.subr.mxu0 %v468
    %1253 = vmatpush1.msra.mxu0 %v467
    %1254 = vmatprep.subr.mxu0 %v471
    %1255 = vmatpush1.msra.mxu0 %v470
    %1256 = vmatprep.subr.mxu0 %v474
    %1257 = vmatpush1.msra.mxu0 %v473
    %1258 = vmatprep.subr.mxu0 %v477
    %1259 = vmatpush1.msra.mxu0 %v476
    %1260 = vmatprep.subr.mxu0 %v480
    %1261 = vmatpush1.msra.mxu0 %v479
    %1262 = vmatprep.subr.mxu0 %v483
    %1263 = vmatpush1.msra.mxu0 %v482
    %1264 = vmatprep.subr.mxu0 %v486
    %1265 = vmatpush1.msra.mxu0 %v485
    %1266 = vmatprep.subr.mxu0 %v489
    %1267 = vmatpush1.msra.mxu0 %v488
    %1268 = vmatprep.subr.mxu0 %v492
    %1269 = vmatpush1.msra.mxu0 %v491
    %1270 = vmatprep.subr.mxu0 %v495
    %1271 = vmatpush1.msra.mxu0 %v494
    %1272 = vmatprep.subr.mxu0 %v498
    %1273 = vmatpush1.msra.mxu0 %v497
    %1274 = vmatprep.subr.mxu0 %v501
    %1275 = vmatpush1.msra.mxu0 %v500
    %1276 = vmatprep.subr.mxu0 %v504
    %1277 = vmatpush1.msra.mxu0 %v503
    %1278 = vmatprep.subr.mxu0 %v507
    %1279 = vmatpush1.msra.mxu0 %v506
    %1280 = vmatprep.subr.mxu0 0.0
    %1281 = vmatpush1.msra.mxu0 0.0
    %1282 = vmatprep.subr.mxu0 0.0
    %1283 = vmatpush1.msra.mxu0 0.0
    %1284 = vmatprep.subr.mxu0 0.0
    %1285 = vmatpush1.msra.mxu0 0.0
    %1286 = vmatprep.subr.mxu0 0.0
    %1287 = vmatpush1.msra.mxu0 0.0
    %1288 = vmatprep.subr.mxu0 0.0
    %1289 = vmatpush1.msra.mxu0 0.0
    %1290 = vmatprep.subr.mxu0 0.0
    %1291 = vmatpush1.msra.mxu0 0.0
    %1292 = vmatprep.subr.mxu0 0.0
    %1293 = vmatpush1.msra.mxu0 0.0
    %1294 = vmatprep.subr.mxu0 0.0
    %1295 = vmatpush1.msra.mxu0 0.0
    %1296 = vmatprep.subr.mxu0 0.0
    %1297 = vmatpush1.msra.mxu0 0.0
    %1298 = vmatprep.subr.mxu0 0.0
    %1299 = vmatpush1.msra.mxu0 0.0
    %1300 = vmatprep.subr.mxu0 0.0
    %1301 = vmatpush1.msra.mxu0 0.0
    %1302 = vmatprep.subr.mxu0 0.0
    %1303 = vmatpush1.msra.mxu0 0.0
    %1304 = vmatprep.subr.mxu0 0.0
    %1305 = vmatpush1.msra.mxu0 0.0
    %1306 = vmatprep.subr.mxu0 0.0
    %1307 = vmatpush1.msra.mxu0 0.0
    %1308 = vmatprep.subr.mxu0 0.0
    %1309 = vmatpush1.msra.mxu0 0.0
    %1310 = vmatprep.subr.mxu0 0.0
    %1311 = vmatpush1.msra.mxu0 0.0
    %1312 = vmatprep.mubr.f32.mxu0 0.0
    %1313 = vmatmul.mubr.f32.gmra.mrb[0].mxu0 %v1247
    %v1314 = vpop.f32.mrb[0].mxu0
    %v1315 = vadd.f32 %v747, %v1314
    %v1316 = vpop.f32.mrb[0].mxu0
    %v1317 = vadd.f32 %v751, %v1316
    %1318 = vdwg.mxu0
    %1319 = vmatprep.subr.mxu0 0.0
    %1320 = vmatpush1.msra.mxu0 %v463
    %1321 = vmatprep.subr.mxu0 0.0
    %1322 = vmatpush1.msra.mxu0 %v466
    %1323 = vmatprep.subr.mxu0 0.0
    %1324 = vmatpush1.msra.mxu0 %v469
    %1325 = vmatprep.subr.mxu0 0.0
    %1326 = vmatpush1.msra.mxu0 %v472
    %1327 = vmatprep.subr.mxu0 0.0
    %1328 = vmatpush1.msra.mxu0 %v475
    %1329 = vmatprep.subr.mxu0 0.0
    %1330 = vmatpush1.msra.mxu0 %v478
    %1331 = vmatprep.subr.mxu0 0.0
    %1332 = vmatpush1.msra.mxu0 %v481
    %1333 = vmatprep.subr.mxu0 0.0
    %1334 = vmatpush1.msra.mxu0 %v484
    %1335 = vmatprep.subr.mxu0 0.0
    %1336 = vmatpush1.msra.mxu0 %v487
    %1337 = vmatprep.subr.mxu0 0.0
    %1338 = vmatpush1.msra.mxu0 %v490
    %1339 = vmatprep.subr.mxu0 0.0
    %1340 = vmatpush1.msra.mxu0 %v493
    %1341 = vmatprep.subr.mxu0 0.0
    %1342 = vmatpush1.msra.mxu0 %v496
    %1343 = vmatprep.subr.mxu0 0.0
    %1344 = vmatpush1.msra.mxu0 %v499
    %1345 = vmatprep.subr.mxu0 0.0
    %1346 = vmatpush1.msra.mxu0 %v502
    %1347 = vmatprep.subr.mxu0 0.0
    %1348 = vmatpush1.msra.mxu0 %v505
    %1349 = vmatprep.subr.mxu0 0.0
    %1350 = vmatpush1.msra.mxu0 %v508
    %1351 = vmatprep.subr.mxu0 0.0
    %1352 = vmatpush1.msra.mxu0 0.0
    %1353 = vmatprep.subr.mxu0 0.0
    %1354 = vmatpush1.msra.mxu0 0.0
    %1355 = vmatprep.subr.mxu0 0.0
    %1356 = vmatpush1.msra.mxu0 0.0
    %1357 = vmatprep.subr.mxu0 0.0
    %1358 = vmatpush1.msra.mxu0 0.0
    %1359 = vmatprep.subr.mxu0 0.0
    %1360 = vmatpush1.msra.mxu0 0.0
    %1361 = vmatprep.subr.mxu0 0.0
    %1362 = vmatpush1.msra.mxu0 0.0
    %1363 = vmatprep.subr.mxu0 0.0
    %1364 = vmatpush1.msra.mxu0 0.0
    %1365 = vmatprep.subr.mxu0 0.0
    %1366 = vmatpush1.msra.mxu0 0.0
    %1367 = vmatprep.subr.mxu0 0.0
    %1368 = vmatpush1.msra.mxu0 0.0
    %1369 = vmatprep.subr.mxu0 0.0
    %1370 = vmatpush1.msra.mxu0 0.0
    %1371 = vmatprep.subr.mxu0 0.0
    %1372 = vmatpush1.msra.mxu0 0.0
    %1373 = vmatprep.subr.mxu0 0.0
    %1374 = vmatpush1.msra.mxu0 0.0
    %1375 = vmatprep.subr.mxu0 0.0
    %1376 = vmatpush1.msra.mxu0 0.0
    %1377 = vmatprep.subr.mxu0 0.0
    %1378 = vmatpush1.msra.mxu0 0.0
    %1379 = vmatprep.subr.mxu0 0.0
    %1380 = vmatpush1.msra.mxu0 0.0
    %1381 = vmatprep.subr.mxu0 0.0
    %1382 = vmatpush1.msra.mxu0 0.0
    %1383 = vmatprep.mubr.f32.mxu0 0.0
    %1384 = vmatmul.mubr.f32.gmra.mrb[0].mxu0 %v1247
    %v1385 = vpop.f32.mrb[0].mxu0
    %v1386 = vadd.f32 %v755, %v1385
    %v1387 = vpop.f32.mrb[0].mxu0
    %1388 = vdwg.mxu0
    %1389 = vmatprep.subr.mxu0 %v511
    %1390 = vmatpush1.msra.mxu0 %v510
    %1391 = vmatprep.subr.mxu0 %v514
    %1392 = vmatpush1.msra.mxu0 %v513
    %1393 = vmatprep.subr.mxu0 %v517
    %1394 = vmatpush1.msra.mxu0 %v516
    %1395 = vmatprep.subr.mxu0 %v520
    %1396 = vmatpush1.msra.mxu0 %v519
    %1397 = vmatprep.subr.mxu0 %v523
    %1398 = vmatpush1.msra.mxu0 %v522
    %1399 = vmatprep.subr.mxu0 %v526
    %1400 = vmatpush1.msra.mxu0 %v525
    %1401 = vmatprep.subr.mxu0 %v529
    %1402 = vmatpush1.msra.mxu0 %v528
    %1403 = vmatprep.subr.mxu0 %v532
    %1404 = vmatpush1.msra.mxu0 %v531
    %1405 = vmatprep.subr.mxu0 %v535
    %1406 = vmatpush1.msra.mxu0 %v534
    %1407 = vmatprep.subr.mxu0 %v538
    %1408 = vmatpush1.msra.mxu0 %v537
    %1409 = vmatprep.subr.mxu0 %v541
    %1410 = vmatpush1.msra.mxu0 %v540
    %1411 = vmatprep.subr.mxu0 %v544
    %1412 = vmatpush1.msra.mxu0 %v543
    %1413 = vmatprep.subr.mxu0 %v547
    %1414 = vmatpush1.msra.mxu0 %v546
    %1415 = vmatprep.subr.mxu0 %v550
    %1416 = vmatpush1.msra.mxu0 %v549
    %1417 = vmatprep.subr.mxu0 %v553
    %1418 = vmatpush1.msra.mxu0 %v552
    %1419 = vmatprep.subr.mxu0 %v556
    %1420 = vmatpush1.msra.mxu0 %v555
    %1421 = vmatprep.subr.mxu0 0.0
    %1422 = vmatpush1.msra.mxu0 0.0
    %1423 = vmatprep.subr.mxu0 0.0
    %1424 = vmatpush1.msra.mxu0 0.0
    %1425 = vmatprep.subr.mxu0 0.0
    %1426 = vmatpush1.msra.mxu0 0.0
    %1427 = vmatprep.subr.mxu0 0.0
    %1428 = vmatpush1.msra.mxu0 0.0
    %1429 = vmatprep.subr.mxu0 0.0
    %1430 = vmatpush1.msra.mxu0 0.0
    %1431 = vmatprep.subr.mxu0 0.0
    %1432 = vmatpush1.msra.mxu0 0.0
    %1433 = vmatprep.subr.mxu0 0.0
    %1434 = vmatpush1.msra.mxu0 0.0
    %1435 = vmatprep.subr.mxu0 0.0
    %1436 = vmatpush1.msra.mxu0 0.0
    %1437 = vmatprep.subr.mxu0 0.0
    %1438 = vmatpush1.msra.mxu0 0.0
    %1439 = vmatprep.subr.mxu0 0.0
    %1440 = vmatpush1.msra.mxu0 0.0
    %1441 = vmatprep.subr.mxu0 0.0
    %1442 = vmatpush1.msra.mxu0 0.0
    %1443 = vmatprep.subr.mxu0 0.0
    %1444 = vmatpush1.msra.mxu0 0.0
    %1445 = vmatprep.subr.mxu0 0.0
    %1446 = vmatpush1.msra.mxu0 0.0
    %1447 = vmatprep.subr.mxu0 0.0
    %1448 = vmatpush1.msra.mxu0 0.0
    %1449 = vmatprep.subr.mxu0 0.0
    %1450 = vmatpush1.msra.mxu0 0.0
    %1451 = vmatprep.subr.mxu0 0.0
    %1452 = vmatpush1.msra.mxu0 0.0
    %1453 = vmatprep.mubr.f32.mxu0 0.0
    %1454 = vmatmul.mubr.f32.gmra.mrb[0].mxu0 %v1077
    %v1455 = vpop.f32.mrb[0].mxu0
    %v1456 = vadd.f32 %v904, %v1455
    %v1457 = vpop.f32.mrb[0].mxu0
    %v1458 = vadd.f32 %v908, %v1457
    %1459 = vdwg.mxu0
    %1460 = vmatprep.subr.mxu0 0.0
    %1461 = vmatpush1.msra.mxu0 %v512
    %1462 = vmatprep.subr.mxu0 0.0
    %1463 = vmatpush1.msra.mxu0 %v515
    %1464 = vmatprep.subr.mxu0 0.0
    %1465 = vmatpush1.msra.mxu0 %v518
    %1466 = vmatprep.subr.mxu0 0.0
    %1467 = vmatpush1.msra.mxu0 %v521
    %1468 = vmatprep.subr.mxu0 0.0
    %1469 = vmatpush1.msra.mxu0 %v524
    %1470 = vmatprep.subr.mxu0 0.0
    %1471 = vmatpush1.msra.mxu0 %v527
    %1472 = vmatprep.subr.mxu0 0.0
    %1473 = vmatpush1.msra.mxu0 %v530
    %1474 = vmatprep.subr.mxu0 0.0
    %1475 = vmatpush1.msra.mxu0 %v533
    %1476 = vmatprep.subr.mxu0 0.0
    %1477 = vmatpush1.msra.mxu0 %v536
    %1478 = vmatprep.subr.mxu0 0.0
    %1479 = vmatpush1.msra.mxu0 %v539
    %1480 = vmatprep.subr.mxu0 0.0
    %1481 = vmatpush1.msra.mxu0 %v542
    %1482 = vmatprep.subr.mxu0 0.0
    %1483 = vmatpush1.msra.mxu0 %v545
    %1484 = vmatprep.subr.mxu0 0.0
    %1485 = vmatpush1.msra.mxu0 %v548
    %1486 = vmatprep.subr.mxu0 0.0
    %1487 = vmatpush1.msra.mxu0 %v551
    %1488 = vmatprep.subr.mxu0 0.0
    %1489 = vmatpush1.msra.mxu0 %v554
    %1490 = vmatprep.subr.mxu0 0.0
    %1491 = vmatpush1.msra.mxu0 %v557
    %1492 = vmatprep.subr.mxu0 0.0
    %1493 = vmatpush1.msra.mxu0 0.0
    %1494 = vmatprep.subr.mxu0 0.0
    %1495 = vmatpush1.msra.mxu0 0.0
    %1496 = vmatprep.subr.mxu0 0.0
    %1497 = vmatpush1.msra.mxu0 0.0
    %1498 = vmatprep.subr.mxu0 0.0
    %1499 = vmatpush1.msra.mxu0 0.0
    %1500 = vmatprep.subr.mxu0 0.0
    %1501 = vmatpush1.msra.mxu0 0.0
    %1502 = vmatprep.subr.mxu0 0.0
    %1503 = vmatpush1.msra.mxu0 0.0
    %1504 = vmatprep.subr.mxu0 0.0
    %1505 = vmatpush1.msra.mxu0 0.0
    %1506 = vmatprep.subr.mxu0 0.0
    %1507 = vmatpush1.msra.mxu0 0.0
    %1508 = vmatprep.subr.mxu0 0.0
    %1509 = vmatpush1.msra.mxu0 0.0
    %1510 = vmatprep.subr.mxu0 0.0
    %1511 = vmatpush1.msra.mxu0 0.0
    %1512 = vmatprep.subr.mxu0 0.0
    %1513 = vmatpush1.msra.mxu0 0.0
    %1514 = vmatprep.subr.mxu0 0.0
    %1515 = vmatpush1.msra.mxu0 0.0
    %1516 = vmatprep.subr.mxu0 0.0
    %1517 = vmatpush1.msra.mxu0 0.0
    %1518 = vmatprep.subr.mxu0 0.0
    %1519 = vmatpush1.msra.mxu0 0.0
    %1520 = vmatprep.subr.mxu0 0.0
    %1521 = vmatpush1.msra.mxu0 0.0
    %1522 = vmatprep.subr.mxu0 0.0
    %1523 = vmatpush1.msra.mxu0 0.0
    %1524 = vmatprep.mubr.f32.mxu0 0.0
    %1525 = vmatmul.mubr.f32.gmra.mrb[0].mxu0 %v1077
    %v1526 = vpop.f32.mrb[0].mxu0
    %v1527 = vadd.f32 %v912, %v1526
    %v1528 = vpop.f32.mrb[0].mxu0
    %1529 = vdwg.mxu0
    %v1530 = vadd.f32 %v1315, %v1456
    %v1531 = vxor.u32 %v1530, 2147483648
    %v1532 = vmul.f32 %v1531, 1.442695
    %v1533 = vpow.pop %v1532
    %v1534 = vadd.f32 %v1533, 1.0
    %v1535 = vrcp.pop %v1534
    %v1536 = vmul.f32 1.0, %v1535
    %v1537 = vadd.f32 %v1317, %v1458
    %v1538 = vxor.u32 %v1537, 2147483648
    %v1539 = vmul.f32 %v1538, 1.442695
    %v1540 = vpow.pop %v1539
    %v1541 = vadd.f32 %v1540, 1.0
    %v1542 = vrcp.pop %v1541
    %v1543 = vmul.f32 1.0, %v1542
    %v1544 = vmul.f32 %v1536, %v1527
    %v1545 = vadd.f32 %v1386, %v1544
    %v1546 = vtanh.pop %v1545
    %v1547 = vsub.f32 1.0, %v1543
    %v1548 = vmul.f32 %v1547, %v1546
    %v1549 = vmul.f32 %v1543, %v1077
    %v1550 = vadd.f32 %v1548, %v1549
    %s1551 = scalar_lea.vmem [#allocation3], 2
    %1552 = vst [vmem:[%s1551] sm:$0x3] %v1550
    %s1553 = scalar_lea.vmem [#allocation2], 12
    %v1554 = vld [vmem:[%s1553] sm:$0x3f]
    %1555 = vmatprep.subr.mxu0 %v413
    %1556 = vmatpush1.msra.mxu0 %v412
    %1557 = vmatprep.subr.mxu0 %v416
    %1558 = vmatpush1.msra.mxu0 %v415
    %1559 = vmatprep.subr.mxu0 %v419
    %1560 = vmatpush1.msra.mxu0 %v418
    %1561 = vmatprep.subr.mxu0 %v422
    %1562 = vmatpush1.msra.mxu0 %v421
    %1563 = vmatprep.subr.mxu0 %v425
    %1564 = vmatpush1.msra.mxu0 %v424
    %1565 = vmatprep.subr.mxu0 %v428
    %1566 = vmatpush1.msra.mxu0 %v427
    %1567 = vmatprep.subr.mxu0 %v431
    %1568 = vmatpush1.msra.mxu0 %v430
    %1569 = vmatprep.subr.mxu0 %v434
    %1570 = vmatpush1.msra.mxu0 %v433
    %1571 = vmatprep.subr.mxu0 %v437
    %1572 = vmatpush1.msra.mxu0 %v436
    %1573 = vmatprep.subr.mxu0 %v440
    %1574 = vmatpush1.msra.mxu0 %v439
    %1575 = vmatprep.subr.mxu0 %v443
    %1576 = vmatpush1.msra.mxu0 %v442
    %1577 = vmatprep.subr.mxu0 %v446
    %1578 = vmatpush1.msra.mxu0 %v445
    %1579 = vmatprep.subr.mxu0 %v449
    %1580 = vmatpush1.msra.mxu0 %v448
    %1581 = vmatprep.subr.mxu0 %v452
    %1582 = vmatpush1.msra.mxu0 %v451
    %1583 = vmatprep.subr.mxu0 %v455
    %1584 = vmatpush1.msra.mxu0 %v454
    %1585 = vmatprep.subr.mxu0 %v458
    %1586 = vmatpush1.msra.mxu0 %v457
    %1587 = vmatprep.subr.mxu0 0.0
    %1588 = vmatpush1.msra.mxu0 0.0
    %1589 = vmatprep.subr.mxu0 0.0
    %1590 = vmatpush1.msra.mxu0 0.0
    %1591 = vmatprep.subr.mxu0 0.0
    %1592 = vmatpush1.msra.mxu0 0.0
    %1593 = vmatprep.subr.mxu0 0.0
    %1594 = vmatpush1.msra.mxu0 0.0
    %1595 = vmatprep.subr.mxu0 0.0
    %1596 = vmatpush1.msra.mxu0 0.0
    %1597 = vmatprep.subr.mxu0 0.0
    %1598 = vmatpush1.msra.mxu0 0.0
    %1599 = vmatprep.subr.mxu0 0.0
    %1600 = vmatpush1.msra.mxu0 0.0
    %1601 = vmatprep.subr.mxu0 0.0
    %1602 = vmatpush1.msra.mxu0 0.0
    %1603 = vmatprep.subr.mxu0 0.0
    %1604 = vmatpush1.msra.mxu0 0.0
    %1605 = vmatprep.subr.mxu0 0.0
    %1606 = vmatpush1.msra.mxu0 0.0
    %1607 = vmatprep.subr.mxu0 0.0
    %1608 = vmatpush1.msra.mxu0 0.0
    %1609 = vmatprep.subr.mxu0 0.0
    %1610 = vmatpush1.msra.mxu0 0.0
    %1611 = vmatprep.subr.mxu0 0.0
    %1612 = vmatpush1.msra.mxu0 0.0
    %1613 = vmatprep.subr.mxu0 0.0
    %1614 = vmatpush1.msra.mxu0 0.0
    %1615 = vmatprep.subr.mxu0 0.0
    %1616 = vmatpush1.msra.mxu0 0.0
    %1617 = vmatprep.subr.mxu0 0.0
    %1618 = vmatpush1.msra.mxu0 0.0
    %1619 = vmatprep.mubr.f32.mxu0 0.0
    %1620 = vmatmul.mubr.f32.gmra.mrb[0].mxu0 %v1247
    %v1621 = vpop.f32.mrb[0].mxu0
    %v1622 = vadd.f32 %v564, %v1621
    %v1623 = vpop.f32.mrb[0].mxu0
    %v1624 = vadd.f32 %v568, %v1623
    %1625 = vdwg.mxu0
    %1626 = vmatprep.subr.mxu0 0.0
    %1627 = vmatpush1.msra.mxu0 %v414
    %1628 = vmatprep.subr.mxu0 0.0
    %1629 = vmatpush1.msra.mxu0 %v417
    %1630 = vmatprep.subr.mxu0 0.0
    %1631 = vmatpush1.msra.mxu0 %v420
    %1632 = vmatprep.subr.mxu0 0.0
    %1633 = vmatpush1.msra.mxu0 %v423
    %1634 = vmatprep.subr.mxu0 0.0
    %1635 = vmatpush1.msra.mxu0 %v426
    %1636 = vmatprep.subr.mxu0 0.0
    %1637 = vmatpush1.msra.mxu0 %v429
    %1638 = vmatprep.subr.mxu0 0.0
    %1639 = vmatpush1.msra.mxu0 %v432
    %1640 = vmatprep.subr.mxu0 0.0
    %1641 = vmatpush1.msra.mxu0 %v435
    %1642 = vmatprep.subr.mxu0 0.0
    %1643 = vmatpush1.msra.mxu0 %v438
    %1644 = vmatprep.subr.mxu0 0.0
    %1645 = vmatpush1.msra.mxu0 %v441
    %1646 = vmatprep.subr.mxu0 0.0
    %1647 = vmatpush1.msra.mxu0 %v444
    %1648 = vmatprep.subr.mxu0 0.0
    %1649 = vmatpush1.msra.mxu0 %v447
    %1650 = vmatprep.subr.mxu0 0.0
    %1651 = vmatpush1.msra.mxu0 %v450
    %1652 = vmatprep.subr.mxu0 0.0
    %1653 = vmatpush1.msra.mxu0 %v453
    %1654 = vmatprep.subr.mxu0 0.0
    %1655 = vmatpush1.msra.mxu0 %v456
    %1656 = vmatprep.subr.mxu0 0.0
    %1657 = vmatpush1.msra.mxu0 %v459
    %1658 = vmatprep.subr.mxu0 0.0
    %1659 = vmatpush1.msra.mxu0 0.0
    %1660 = vmatprep.subr.mxu0 0.0
    %1661 = vmatpush1.msra.mxu0 0.0
    %1662 = vmatprep.subr.mxu0 0.0
    %1663 = vmatpush1.msra.mxu0 0.0
    %1664 = vmatprep.subr.mxu0 0.0
    %1665 = vmatpush1.msra.mxu0 0.0
    %1666 = vmatprep.subr.mxu0 0.0
    %1667 = vmatpush1.msra.mxu0 0.0
    %1668 = vmatprep.subr.mxu0 0.0
    %1669 = vmatpush1.msra.mxu0 0.0
    %1670 = vmatprep.subr.mxu0 0.0
    %1671 = vmatpush1.msra.mxu0 0.0
    %1672 = vmatprep.subr.mxu0 0.0
    %1673 = vmatpush1.msra.mxu0 0.0
    %1674 = vmatprep.subr.mxu0 0.0
    %1675 = vmatpush1.msra.mxu0 0.0
    %1676 = vmatprep.subr.mxu0 0.0
    %1677 = vmatpush1.msra.mxu0 0.0
    %1678 = vmatprep.subr.mxu0 0.0
    %1679 = vmatpush1.msra.mxu0 0.0
    %1680 = vmatprep.subr.mxu0 0.0
    %1681 = vmatpush1.msra.mxu0 0.0
    %1682 = vmatprep.subr.mxu0 0.0
    %1683 = vmatpush1.msra.mxu0 0.0
    %1684 = vmatprep.subr.mxu0 0.0
    %1685 = vmatpush1.msra.mxu0 0.0
    %1686 = vmatprep.subr.mxu0 0.0
    %1687 = vmatpush1.msra.mxu0 0.0
    %1688 = vmatprep.subr.mxu0 0.0
    %1689 = vmatpush1.msra.mxu0 0.0
    %1690 = vmatprep.mubr.f32.mxu0 0.0
    %1691 = vmatmul.mubr.f32.gmra.mrb[0].mxu0 %v1247
    %v1692 = vpop.f32.mrb[0].mxu0
    %v1693 = vadd.f32 %v572, %v1692
    %v1694 = vpop.f32.mrb[0].mxu0
    %1695 = vdwg.mxu0
    %v1696 = vadd.f32 %v1554, %v1622
    %v1697 = vxor.u32 %v1696, 2147483648
    %v1698 = vmul.f32 %v1697, 1.442695
    %v1699 = vpow.pop %v1698
    %v1700 = vadd.f32 %v1699, 1.0
    %v1701 = vrcp.pop %v1700
    %v1702 = vmul.f32 1.0, %v1701
    %v1704 = vrot.slane %v1554, 2
    %v1706 = vadd.f32 %v1704, %v1624
    %v1707 = vxor.u32 %v1706, 2147483648
    %v1708 = vmul.f32 %v1707, 1.442695
    %v1709 = vpow.pop %v1708
    %v1710 = vadd.f32 %v1709, 1.0
    %v1711 = vrcp.pop %v1710
    %v1712 = vmul.f32 1.0, %v1711
    %v1713 = vmul.f32 %v1702, %v1693
    %v1714 = vrot.slane %v1554, 4
    %v1716 = vadd.f32 %v1714, %v1713
    %v1717 = vtanh.pop %v1716
    %v1718 = vsub.f32 1.0, %v1712
    %v1719 = vmul.f32 %v1718, %v1717
    %v1720 = vmul.f32 %v1712, %v1247
    %v1721 = vadd.f32 %v1719, %v1720
    %1722 = vmatprep.subr.mxu0 %v462
    %1723 = vmatpush1.msra.mxu0 %v461
    %1724 = vmatprep.subr.mxu0 %v465
    %1725 = vmatpush1.msra.mxu0 %v464
    %1726 = vmatprep.subr.mxu0 %v468
    %1727 = vmatpush1.msra.mxu0 %v467
    %1728 = vmatprep.subr.mxu0 %v471
    %1729 = vmatpush1.msra.mxu0 %v470
    %1730 = vmatprep.subr.mxu0 %v474
    %1731 = vmatpush1.msra.mxu0 %v473
    %1732 = vmatprep.subr.mxu0 %v477
    %1733 = vmatpush1.msra.mxu0 %v476
    %1734 = vmatprep.subr.mxu0 %v480
    %1735 = vmatpush1.msra.mxu0 %v479
    %1736 = vmatprep.subr.mxu0 %v483
    %1737 = vmatpush1.msra.mxu0 %v482
    %1738 = vmatprep.subr.mxu0 %v486
    %1739 = vmatpush1.msra.mxu0 %v485
    %1740 = vmatprep.subr.mxu0 %v489
    %1741 = vmatpush1.msra.mxu0 %v488
    %1742 = vmatprep.subr.mxu0 %v492
    %1743 = vmatpush1.msra.mxu0 %v491
    %1744 = vmatprep.subr.mxu0 %v495
    %1745 = vmatpush1.msra.mxu0 %v494
    %1746 = vmatprep.subr.mxu0 %v498
    %1747 = vmatpush1.msra.mxu0 %v497
    %1748 = vmatprep.subr.mxu0 %v501
    %1749 = vmatpush1.msra.mxu0 %v500
    %1750 = vmatprep.subr.mxu0 %v504
    %1751 = vmatpush1.msra.mxu0 %v503
    %1752 = vmatprep.subr.mxu0 %v507
    %1753 = vmatpush1.msra.mxu0 %v506
    %1754 = vmatprep.subr.mxu0 0.0
    %1755 = vmatpush1.msra.mxu0 0.0
    %1756 = vmatprep.subr.mxu0 0.0
    %1757 = vmatpush1.msra.mxu0 0.0
    %1758 = vmatprep.subr.mxu0 0.0
    %1759 = vmatpush1.msra.mxu0 0.0
    %1760 = vmatprep.subr.mxu0 0.0
    %1761 = vmatpush1.msra.mxu0 0.0
    %1762 = vmatprep.subr.mxu0 0.0
    %1763 = vmatpush1.msra.mxu0 0.0
    %1764 = vmatprep.subr.mxu0 0.0
    %1765 = vmatpush1.msra.mxu0 0.0
    %1766 = vmatprep.subr.mxu0 0.0
    %1767 = vmatpush1.msra.mxu0 0.0
    %1768 = vmatprep.subr.mxu0 0.0
    %1769 = vmatpush1.msra.mxu0 0.0
    %1770 = vmatprep.subr.mxu0 0.0
    %1771 = vmatpush1.msra.mxu0 0.0
    %1772 = vmatprep.subr.mxu0 0.0
    %1773 = vmatpush1.msra.mxu0 0.0
    %1774 = vmatprep.subr.mxu0 0.0
    %1775 = vmatpush1.msra.mxu0 0.0
    %1776 = vmatprep.subr.mxu0 0.0
    %1777 = vmatpush1.msra.mxu0 0.0
    %1778 = vmatprep.subr.mxu0 0.0
    %1779 = vmatpush1.msra.mxu0 0.0
    %1780 = vmatprep.subr.mxu0 0.0
    %1781 = vmatpush1.msra.mxu0 0.0
    %1782 = vmatprep.subr.mxu0 0.0
    %1783 = vmatpush1.msra.mxu0 0.0
    %1784 = vmatprep.subr.mxu0 0.0
    %1785 = vmatpush1.msra.mxu0 0.0
    %1786 = vmatprep.mubr.f32.mxu0 0.0
    %1787 = vmatmul.mubr.f32.gmra.mrb[0].mxu0 %v1721
    %v1788 = vpop.f32.mrb[0].mxu0
    %v1789 = vadd.f32 %v747, %v1788
    %v1790 = vpop.f32.mrb[0].mxu0
    %v1791 = vadd.f32 %v751, %v1790
    %1792 = vdwg.mxu0
    %1793 = vmatprep.subr.mxu0 0.0
    %1794 = vmatpush1.msra.mxu0 %v463
    %1795 = vmatprep.subr.mxu0 0.0
    %1796 = vmatpush1.msra.mxu0 %v466
    %1797 = vmatprep.subr.mxu0 0.0
    %1798 = vmatpush1.msra.mxu0 %v469
    %1799 = vmatprep.subr.mxu0 0.0
    %1800 = vmatpush1.msra.mxu0 %v472
    %1801 = vmatprep.subr.mxu0 0.0
    %1802 = vmatpush1.msra.mxu0 %v475
    %1803 = vmatprep.subr.mxu0 0.0
    %1804 = vmatpush1.msra.mxu0 %v478
    %1805 = vmatprep.subr.mxu0 0.0
    %1806 = vmatpush1.msra.mxu0 %v481
    %1807 = vmatprep.subr.mxu0 0.0
    %1808 = vmatpush1.msra.mxu0 %v484
    %1809 = vmatprep.subr.mxu0 0.0
    %1810 = vmatpush1.msra.mxu0 %v487
    %1811 = vmatprep.subr.mxu0 0.0
    %1812 = vmatpush1.msra.mxu0 %v490
    %1813 = vmatprep.subr.mxu0 0.0
    %1814 = vmatpush1.msra.mxu0 %v493
    %1815 = vmatprep.subr.mxu0 0.0
    %1816 = vmatpush1.msra.mxu0 %v496
    %1817 = vmatprep.subr.mxu0 0.0
    %1818 = vmatpush1.msra.mxu0 %v499
    %1819 = vmatprep.subr.mxu0 0.0
    %1820 = vmatpush1.msra.mxu0 %v502
    %1821 = vmatprep.subr.mxu0 0.0
    %1822 = vmatpush1.msra.mxu0 %v505
    %1823 = vmatprep.subr.mxu0 0.0
    %1824 = vmatpush1.msra.mxu0 %v508
    %1825 = vmatprep.subr.mxu0 0.0
    %1826 = vmatpush1.msra.mxu0 0.0
    %1827 = vmatprep.subr.mxu0 0.0
    %1828 = vmatpush1.msra.mxu0 0.0
    %1829 = vmatprep.subr.mxu0 0.0
    %1830 = vmatpush1.msra.mxu0 0.0
    %1831 = vmatprep.subr.mxu0 0.0
    %1832 = vmatpush1.msra.mxu0 0.0
    %1833 = vmatprep.subr.mxu0 0.0
    %1834 = vmatpush1.msra.mxu0 0.0
    %1835 = vmatprep.subr.mxu0 0.0
    %1836 = vmatpush1.msra.mxu0 0.0
    %1837 = vmatprep.subr.mxu0 0.0
    %1838 = vmatpush1.msra.mxu0 0.0
    %1839 = vmatprep.subr.mxu0 0.0
    %1840 = vmatpush1.msra.mxu0 0.0
    %1841 = vmatprep.subr.mxu0 0.0
    %1842 = vmatpush1.msra.mxu0 0.0
    %1843 = vmatprep.subr.mxu0 0.0
    %1844 = vmatpush1.msra.mxu0 0.0
    %1845 = vmatprep.subr.mxu0 0.0
    %1846 = vmatpush1.msra.mxu0 0.0
    %1847 = vmatprep.subr.mxu0 0.0
    %1848 = vmatpush1.msra.mxu0 0.0
    %1849 = vmatprep.subr.mxu0 0.0
    %1850 = vmatpush1.msra.mxu0 0.0
    %1851 = vmatprep.subr.mxu0 0.0
    %1852 = vmatpush1.msra.mxu0 0.0
    %1853 = vmatprep.subr.mxu0 0.0
    %1854 = vmatpush1.msra.mxu0 0.0
    %1855 = vmatprep.subr.mxu0 0.0
    %1856 = vmatpush1.msra.mxu0 0.0
    %1857 = vmatprep.mubr.f32.mxu0 0.0
    %1858 = vmatmul.mubr.f32.gmra.mrb[0].mxu0 %v1721
    %v1859 = vpop.f32.mrb[0].mxu0
    %v1860 = vadd.f32 %v755, %v1859
    %v1861 = vpop.f32.mrb[0].mxu0
    %1862 = vdwg.mxu0
    %1863 = vmatprep.subr.mxu0 %v511
    %1864 = vmatpush1.msra.mxu0 %v510
    %1865 = vmatprep.subr.mxu0 %v514
    %1866 = vmatpush1.msra.mxu0 %v513
    %1867 = vmatprep.subr.mxu0 %v517
    %1868 = vmatpush1.msra.mxu0 %v516
    %1869 = vmatprep.subr.mxu0 %v520
    %1870 = vmatpush1.msra.mxu0 %v519
    %1871 = vmatprep.subr.mxu0 %v523
    %1872 = vmatpush1.msra.mxu0 %v522
    %1873 = vmatprep.subr.mxu0 %v526
    %1874 = vmatpush1.msra.mxu0 %v525
    %1875 = vmatprep.subr.mxu0 %v529
    %1876 = vmatpush1.msra.mxu0 %v528
    %1877 = vmatprep.subr.mxu0 %v532
    %1878 = vmatpush1.msra.mxu0 %v531
    %1879 = vmatprep.subr.mxu0 %v535
    %1880 = vmatpush1.msra.mxu0 %v534
    %1881 = vmatprep.subr.mxu0 %v538
    %1882 = vmatpush1.msra.mxu0 %v537
    %1883 = vmatprep.subr.mxu0 %v541
    %1884 = vmatpush1.msra.mxu0 %v540
    %1885 = vmatprep.subr.mxu0 %v544
    %1886 = vmatpush1.msra.mxu0 %v543
    %1887 = vmatprep.subr.mxu0 %v547
    %1888 = vmatpush1.msra.mxu0 %v546
    %1889 = vmatprep.subr.mxu0 %v550
    %1890 = vmatpush1.msra.mxu0 %v549
    %1891 = vmatprep.subr.mxu0 %v553
    %1892 = vmatpush1.msra.mxu0 %v552
    %1893 = vmatprep.subr.mxu0 %v556
    %1894 = vmatpush1.msra.mxu0 %v555
    %1895 = vmatprep.subr.mxu0 0.0
    %1896 = vmatpush1.msra.mxu0 0.0
    %1897 = vmatprep.subr.mxu0 0.0
    %1898 = vmatpush1.msra.mxu0 0.0
    %1899 = vmatprep.subr.mxu0 0.0
    %1900 = vmatpush1.msra.mxu0 0.0
    %1901 = vmatprep.subr.mxu0 0.0
    %1902 = vmatpush1.msra.mxu0 0.0
    %1903 = vmatprep.subr.mxu0 0.0
    %1904 = vmatpush1.msra.mxu0 0.0
    %1905 = vmatprep.subr.mxu0 0.0
    %1906 = vmatpush1.msra.mxu0 0.0
    %1907 = vmatprep.subr.mxu0 0.0
    %1908 = vmatpush1.msra.mxu0 0.0
    %1909 = vmatprep.subr.mxu0 0.0
    %1910 = vmatpush1.msra.mxu0 0.0
    %1911 = vmatprep.subr.mxu0 0.0
    %1912 = vmatpush1.msra.mxu0 0.0
    %1913 = vmatprep.subr.mxu0 0.0
    %1914 = vmatpush1.msra.mxu0 0.0
    %1915 = vmatprep.subr.mxu0 0.0
    %1916 = vmatpush1.msra.mxu0 0.0
    %1917 = vmatprep.subr.mxu0 0.0
    %1918 = vmatpush1.msra.mxu0 0.0
    %1919 = vmatprep.subr.mxu0 0.0
    %1920 = vmatpush1.msra.mxu0 0.0
    %1921 = vmatprep.subr.mxu0 0.0
    %1922 = vmatpush1.msra.mxu0 0.0
    %1923 = vmatprep.subr.mxu0 0.0
    %1924 = vmatpush1.msra.mxu0 0.0
    %1925 = vmatprep.subr.mxu0 0.0
    %1926 = vmatpush1.msra.mxu0 0.0
    %1927 = vmatprep.mubr.f32.mxu0 0.0
    %1928 = vmatmul.mubr.f32.gmra.mrb[0].mxu0 %v1550
    %v1929 = vpop.f32.mrb[0].mxu0
    %v1930 = vadd.f32 %v904, %v1929
    %v1931 = vpop.f32.mrb[0].mxu0
    %v1932 = vadd.f32 %v908, %v1931
    %1933 = vdwg.mxu0
    %1934 = vmatprep.subr.mxu0 0.0
    %1935 = vmatpush1.msra.mxu0 %v512
    %1936 = vmatprep.subr.mxu0 0.0
    %1937 = vmatpush1.msra.mxu0 %v515
    %1938 = vmatprep.subr.mxu0 0.0
    %1939 = vmatpush1.msra.mxu0 %v518
    %1940 = vmatprep.subr.mxu0 0.0
    %1941 = vmatpush1.msra.mxu0 %v521
    %1942 = vmatprep.subr.mxu0 0.0
    %1943 = vmatpush1.msra.mxu0 %v524
    %1944 = vmatprep.subr.mxu0 0.0
    %1945 = vmatpush1.msra.mxu0 %v527
    %1946 = vmatprep.subr.mxu0 0.0
    %1947 = vmatpush1.msra.mxu0 %v530
    %1948 = vmatprep.subr.mxu0 0.0
    %1949 = vmatpush1.msra.mxu0 %v533
    %1950 = vmatprep.subr.mxu0 0.0
    %1951 = vmatpush1.msra.mxu0 %v536
    %1952 = vmatprep.subr.mxu0 0.0
    %1953 = vmatpush1.msra.mxu0 %v539
    %1954 = vmatprep.subr.mxu0 0.0
    %1955 = vmatpush1.msra.mxu0 %v542
    %1956 = vmatprep.subr.mxu0 0.0
    %1957 = vmatpush1.msra.mxu0 %v545
    %1958 = vmatprep.subr.mxu0 0.0
    %1959 = vmatpush1.msra.mxu0 %v548
    %1960 = vmatprep.subr.mxu0 0.0
    %1961 = vmatpush1.msra.mxu0 %v551
    %1962 = vmatprep.subr.mxu0 0.0
    %1963 = vmatpush1.msra.mxu0 %v554
    %1964 = vmatprep.subr.mxu0 0.0
    %1965 = vmatpush1.msra.mxu0 %v557
    %1966 = vmatprep.subr.mxu0 0.0
    %1967 = vmatpush1.msra.mxu0 0.0
    %1968 = vmatprep.subr.mxu0 0.0
    %1969 = vmatpush1.msra.mxu0 0.0
    %1970 = vmatprep.subr.mxu0 0.0
    %1971 = vmatpush1.msra.mxu0 0.0
    %1972 = vmatprep.subr.mxu0 0.0
    %1973 = vmatpush1.msra.mxu0 0.0
    %1974 = vmatprep.subr.mxu0 0.0
    %1975 = vmatpush1.msra.mxu0 0.0
    %1976 = vmatprep.subr.mxu0 0.0
    %1977 = vmatpush1.msra.mxu0 0.0
    %1978 = vmatprep.subr.mxu0 0.0
    %1979 = vmatpush1.msra.mxu0 0.0
    %1980 = vmatprep.subr.mxu0 0.0
    %1981 = vmatpush1.msra.mxu0 0.0
    %1982 = vmatprep.subr.mxu0 0.0
    %1983 = vmatpush1.msra.mxu0 0.0
    %1984 = vmatprep.subr.mxu0 0.0
    %1985 = vmatpush1.msra.mxu0 0.0
    %1986 = vmatprep.subr.mxu0 0.0
    %1987 = vmatpush1.msra.mxu0 0.0
    %1988 = vmatprep.subr.mxu0 0.0
    %1989 = vmatpush1.msra.mxu0 0.0
    %1990 = vmatprep.subr.mxu0 0.0
    %1991 = vmatpush1.msra.mxu0 0.0
    %1992 = vmatprep.subr.mxu0 0.0
    %1993 = vmatpush1.msra.mxu0 0.0
    %1994 = vmatprep.subr.mxu0 0.0
    %1995 = vmatpush1.msra.mxu0 0.0
    %1996 = vmatprep.subr.mxu0 0.0
    %1997 = vmatpush1.msra.mxu0 0.0
    %1998 = vmatprep.mubr.f32.mxu0 0.0
    %1999 = vmatmul.mubr.f32.gmra.mrb[0].mxu0 %v1550
    %v2000 = vpop.f32.mrb[0].mxu0
    %v2001 = vadd.f32 %v912, %v2000
    %v2002 = vpop.f32.mrb[0].mxu0
    %2003 = vdwg.mxu0
    %v2004 = vadd.f32 %v1789, %v1930
    %v2005 = vxor.u32 %v2004, 2147483648
    %v2006 = vmul.f32 %v2005, 1.442695
    %v2007 = vpow.pop %v2006
    %v2008 = vadd.f32 %v2007, 1.0
    %v2009 = vrcp.pop %v2008
    %v2010 = vmul.f32 1.0, %v2009
    %v2011 = vadd.f32 %v1791, %v1932
    %v2012 = vxor.u32 %v2011, 2147483648
    %v2013 = vmul.f32 %v2012, 1.442695
    %v2014 = vpow.pop %v2013
    %v2015 = vadd.f32 %v2014, 1.0
    %v2016 = vrcp.pop %v2015
    %v2017 = vmul.f32 1.0, %v2016
    %v2018 = vmul.f32 %v2010, %v2001
    %v2019 = vadd.f32 %v1860, %v2018
    %v2020 = vtanh.pop %v2019
    %v2021 = vsub.f32 1.0, %v2017
    %v2022 = vmul.f32 %v2021, %v2020
    %v2023 = vmul.f32 %v2017, %v1550
    %v2024 = vadd.f32 %v2022, %v2023
    %s2025 = scalar_lea.vmem [#allocation3], 4
    %2026 = vst [vmem:[%s2025] sm:$0x3] %v2024
    %s2027 = scalar_lea.vmem [#allocation2], 18
    %v2028 = vld [vmem:[%s2027] sm:$0x3f]
    %2029 = vmatprep.subr.mxu0 %v413
    %2030 = vmatpush1.msra.mxu0 %v412
    %2031 = vmatprep.subr.mxu0 %v416
    %2032 = vmatpush1.msra.mxu0 %v415
    %2033 = vmatprep.subr.mxu0 %v419
    %2034 = vmatpush1.msra.mxu0 %v418
    %2035 = vmatprep.subr.mxu0 %v422
    %2036 = vmatpush1.msra.mxu0 %v421
    %2037 = vmatprep.subr.mxu0 %v425
    %2038 = vmatpush1.msra.mxu0 %v424
    %2039 = vmatprep.subr.mxu0 %v428
    %2040 = vmatpush1.msra.mxu0 %v427
    %2041 = vmatprep.subr.mxu0 %v431
    %2042 = vmatpush1.msra.mxu0 %v430
    %2043 = vmatprep.subr.mxu0 %v434
    %2044 = vmatpush1.msra.mxu0 %v433
    %2045 = vmatprep.subr.mxu0 %v437
    %2046 = vmatpush1.msra.mxu0 %v436
    %2047 = vmatprep.subr.mxu0 %v440
    %2048 = vmatpush1.msra.mxu0 %v439
    %2049 = vmatprep.subr.mxu0 %v443
    %2050 = vmatpush1.msra.mxu0 %v442
    %2051 = vmatprep.subr.mxu0 %v446
    %2052 = vmatpush1.msra.mxu0 %v445
    %2053 = vmatprep.subr.mxu0 %v449
    %2054 = vmatpush1.msra.mxu0 %v448
    %2055 = vmatprep.subr.mxu0 %v452
    %2056 = vmatpush1.msra.mxu0 %v451
    %2057 = vmatprep.subr.mxu0 %v455
    %2058 = vmatpush1.msra.mxu0 %v454
    %2059 = vmatprep.subr.mxu0 %v458
    %2060 = vmatpush1.msra.mxu0 %v457
    %2061 = vmatprep.subr.mxu0 0.0
    %2062 = vmatpush1.msra.mxu0 0.0
    %2063 = vmatprep.subr.mxu0 0.0
    %2064 = vmatpush1.msra.mxu0 0.0
    %2065 = vmatprep.subr.mxu0 0.0
    %2066 = vmatpush1.msra.mxu0 0.0
    %2067 = vmatprep.subr.mxu0 0.0
    %2068 = vmatpush1.msra.mxu0 0.0
    %2069 = vmatprep.subr.mxu0 0.0
    %2070 = vmatpush1.msra.mxu0 0.0
    %2071 = vmatprep.subr.mxu0 0.0
    %2072 = vmatpush1.msra.mxu0 0.0
    %2073 = vmatprep.subr.mxu0 0.0
    %2074 = vmatpush1.msra.mxu0 0.0
    %2075 = vmatprep.subr.mxu0 0.0
    %2076 = vmatpush1.msra.mxu0 0.0
    %2077 = vmatprep.subr.mxu0 0.0
    %2078 = vmatpush1.msra.mxu0 0.0
    %2079 = vmatprep.subr.mxu0 0.0
    %2080 = vmatpush1.msra.mxu0 0.0
    %2081 = vmatprep.subr.mxu0 0.0
    %2082 = vmatpush1.msra.mxu0 0.0
    %2083 = vmatprep.subr.mxu0 0.0
    %2084 = vmatpush1.msra.mxu0 0.0
    %2085 = vmatprep.subr.mxu0 0.0
    %2086 = vmatpush1.msra.mxu0 0.0
    %2087 = vmatprep.subr.mxu0 0.0
    %2088 = vmatpush1.msra.mxu0 0.0
    %2089 = vmatprep.subr.mxu0 0.0
    %2090 = vmatpush1.msra.mxu0 0.0
    %2091 = vmatprep.subr.mxu0 0.0
    %2092 = vmatpush1.msra.mxu0 0.0
    %2093 = vmatprep.mubr.f32.mxu0 0.0
    %2094 = vmatmul.mubr.f32.gmra.mrb[0].mxu0 %v1721
    %v2095 = vpop.f32.mrb[0].mxu0
    %v2096 = vadd.f32 %v564, %v2095
    %v2097 = vpop.f32.mrb[0].mxu0
    %v2098 = vadd.f32 %v568, %v2097
    %2099 = vdwg.mxu0
    %2100 = vmatprep.subr.mxu0 0.0
    %2101 = vmatpush1.msra.mxu0 %v414
    %2102 = vmatprep.subr.mxu0 0.0
    %2103 = vmatpush1.msra.mxu0 %v417
    %2104 = vmatprep.subr.mxu0 0.0
    %2105 = vmatpush1.msra.mxu0 %v420
    %2106 = vmatprep.subr.mxu0 0.0
    %2107 = vmatpush1.msra.mxu0 %v423
    %2108 = vmatprep.subr.mxu0 0.0
    %2109 = vmatpush1.msra.mxu0 %v426
    %2110 = vmatprep.subr.mxu0 0.0
    %2111 = vmatpush1.msra.mxu0 %v429
    %2112 = vmatprep.subr.mxu0 0.0
    %2113 = vmatpush1.msra.mxu0 %v432
    %2114 = vmatprep.subr.mxu0 0.0
    %2115 = vmatpush1.msra.mxu0 %v435
    %2116 = vmatprep.subr.mxu0 0.0
    %2117 = vmatpush1.msra.mxu0 %v438
    %2118 = vmatprep.subr.mxu0 0.0
    %2119 = vmatpush1.msra.mxu0 %v441
    %2120 = vmatprep.subr.mxu0 0.0
    %2121 = vmatpush1.msra.mxu0 %v444
    %2122 = vmatprep.subr.mxu0 0.0
    %2123 = vmatpush1.msra.mxu0 %v447
    %2124 = vmatprep.subr.mxu0 0.0
    %2125 = vmatpush1.msra.mxu0 %v450
    %2126 = vmatprep.subr.mxu0 0.0
    %2127 = vmatpush1.msra.mxu0 %v453
    %2128 = vmatprep.subr.mxu0 0.0
    %2129 = vmatpush1.msra.mxu0 %v456
    %2130 = vmatprep.subr.mxu0 0.0
    %2131 = vmatpush1.msra.mxu0 %v459
    %2132 = vmatprep.subr.mxu0 0.0
    %2133 = vmatpush1.msra.mxu0 0.0
    %2134 = vmatprep.subr.mxu0 0.0
    %2135 = vmatpush1.msra.mxu0 0.0
    %2136 = vmatprep.subr.mxu0 0.0
    %2137 = vmatpush1.msra.mxu0 0.0
    %2138 = vmatprep.subr.mxu0 0.0
    %2139 = vmatpush1.msra.mxu0 0.0
    %2140 = vmatprep.subr.mxu0 0.0
    %2141 = vmatpush1.msra.mxu0 0.0
    %2142 = vmatprep.subr.mxu0 0.0
    %2143 = vmatpush1.msra.mxu0 0.0
    %2144 = vmatprep.subr.mxu0 0.0
    %2145 = vmatpush1.msra.mxu0 0.0
    %2146 = vmatprep.subr.mxu0 0.0
    %2147 = vmatpush1.msra.mxu0 0.0
    %2148 = vmatprep.subr.mxu0 0.0
    %2149 = vmatpush1.msra.mxu0 0.0
    %2150 = vmatprep.subr.mxu0 0.0
    %2151 = vmatpush1.msra.mxu0 0.0
    %2152 = vmatprep.subr.mxu0 0.0
    %2153 = vmatpush1.msra.mxu0 0.0
    %2154 = vmatprep.subr.mxu0 0.0
    %2155 = vmatpush1.msra.mxu0 0.0
    %2156 = vmatprep.subr.mxu0 0.0
    %2157 = vmatpush1.msra.mxu0 0.0
    %2158 = vmatprep.subr.mxu0 0.0
    %2159 = vmatpush1.msra.mxu0 0.0
    %2160 = vmatprep.subr.mxu0 0.0
    %2161 = vmatpush1.msra.mxu0 0.0
    %2162 = vmatprep.subr.mxu0 0.0
    %2163 = vmatpush1.msra.mxu0 0.0
    %2164 = vmatprep.mubr.f32.mxu0 0.0
    %2165 = vmatmul.mubr.f32.gmra.mrb[0].mxu0 %v1721
    %v2166 = vpop.f32.mrb[0].mxu0
    %v2167 = vadd.f32 %v572, %v2166
    %v2168 = vpop.f32.mrb[0].mxu0
    %2169 = vdwg.mxu0
    %v2170 = vadd.f32 %v2028, %v2096
    %v2171 = vxor.u32 %v2170, 2147483648
    %v2172 = vmul.f32 %v2171, 1.442695
    %v2173 = vpow.pop %v2172
    %v2174 = vadd.f32 %v2173, 1.0
    %v2175 = vrcp.pop %v2174
    %v2176 = vmul.f32 1.0, %v2175
    %v2178 = vrot.slane %v2028, 2
    %v2180 = vadd.f32 %v2178, %v2098
    %v2181 = vxor.u32 %v2180, 2147483648
    %v2182 = vmul.f32 %v2181, 1.442695
    %v2183 = vpow.pop %v2182
    %v2184 = vadd.f32 %v2183, 1.0
    %v2185 = vrcp.pop %v2184
    %v2186 = vmul.f32 1.0, %v2185
    %v2187 = vmul.f32 %v2176, %v2167
    %v2188 = vrot.slane %v2028, 4
    %v2190 = vadd.f32 %v2188, %v2187
    %v2191 = vtanh.pop %v2190
    %v2192 = vsub.f32 1.0, %v2186
    %v2193 = vmul.f32 %v2192, %v2191
    %v2194 = vmul.f32 %v2186, %v1721
    %v2195 = vadd.f32 %v2193, %v2194
    %2196 = vmatprep.subr.mxu0 %v462
    %2197 = vmatpush1.msra.mxu0 %v461
    %2198 = vmatprep.subr.mxu0 %v465
    %2199 = vmatpush1.msra.mxu0 %v464
    %2200 = vmatprep.subr.mxu0 %v468
    %2201 = vmatpush1.msra.mxu0 %v467
    %2202 = vmatprep.subr.mxu0 %v471
    %2203 = vmatpush1.msra.mxu0 %v470
    %2204 = vmatprep.subr.mxu0 %v474
    %2205 = vmatpush1.msra.mxu0 %v473
    %2206 = vmatprep.subr.mxu0 %v477
    %2207 = vmatpush1.msra.mxu0 %v476
    %2208 = vmatprep.subr.mxu0 %v480
    %2209 = vmatpush1.msra.mxu0 %v479
    %2210 = vmatprep.subr.mxu0 %v483
    %2211 = vmatpush1.msra.mxu0 %v482
    %2212 = vmatprep.subr.mxu0 %v486
    %2213 = vmatpush1.msra.mxu0 %v485
    %2214 = vmatprep.subr.mxu0 %v489
    %2215 = vmatpush1.msra.mxu0 %v488
    %2216 = vmatprep.subr.mxu0 %v492
    %2217 = vmatpush1.msra.mxu0 %v491
    %2218 = vmatprep.subr.mxu0 %v495
    %2219 = vmatpush1.msra.mxu0 %v494
    %2220 = vmatprep.subr.mxu0 %v498
    %2221 = vmatpush1.msra.mxu0 %v497
    %2222 = vmatprep.subr.mxu0 %v501
    %2223 = vmatpush1.msra.mxu0 %v500
    %2224 = vmatprep.subr.mxu0 %v504
    %2225 = vmatpush1.msra.mxu0 %v503
    %2226 = vmatprep.subr.mxu0 %v507
    %2227 = vmatpush1.msra.mxu0 %v506
    %2228 = vmatprep.subr.mxu0 0.0
    %2229 = vmatpush1.msra.mxu0 0.0
    %2230 = vmatprep.subr.mxu0 0.0
    %2231 = vmatpush1.msra.mxu0 0.0
    %2232 = vmatprep.subr.mxu0 0.0
    %2233 = vmatpush1.msra.mxu0 0.0
    %2234 = vmatprep.subr.mxu0 0.0
    %2235 = vmatpush1.msra.mxu0 0.0
    %2236 = vmatprep.subr.mxu0 0.0
    %2237 = vmatpush1.msra.mxu0 0.0
    %2238 = vmatprep.subr.mxu0 0.0
    %2239 = vmatpush1.msra.mxu0 0.0
    %2240 = vmatprep.subr.mxu0 0.0
    %2241 = vmatpush1.msra.mxu0 0.0
    %2242 = vmatprep.subr.mxu0 0.0
    %2243 = vmatpush1.msra.mxu0 0.0
    %2244 = vmatprep.subr.mxu0 0.0
    %2245 = vmatpush1.msra.mxu0 0.0
    %2246 = vmatprep.subr.mxu0 0.0
    %2247 = vmatpush1.msra.mxu0 0.0
    %2248 = vmatprep.subr.mxu0 0.0
    %2249 = vmatpush1.msra.mxu0 0.0
    %2250 = vmatprep.subr.mxu0 0.0
    %2251 = vmatpush1.msra.mxu0 0.0
    %2252 = vmatprep.subr.mxu0 0.0
    %2253 = vmatpush1.msra.mxu0 0.0
    %2254 = vmatprep.subr.mxu0 0.0
    %2255 = vmatpush1.msra.mxu0 0.0
    %2256 = vmatprep.subr.mxu0 0.0
    %2257 = vmatpush1.msra.mxu0 0.0
    %2258 = vmatprep.subr.mxu0 0.0
    %2259 = vmatpush1.msra.mxu0 0.0
    %2260 = vmatprep.mubr.f32.mxu0 0.0
    %2261 = vmatmul.mubr.f32.gmra.mrb[0].mxu0 %v2195
    %v2262 = vpop.f32.mrb[0].mxu0
    %v2263 = vadd.f32 %v747, %v2262
    %v2264 = vpop.f32.mrb[0].mxu0
    %v2265 = vadd.f32 %v751, %v2264
    %2266 = vdwg.mxu0
    %2267 = vmatprep.subr.mxu0 0.0
    %2268 = vmatpush1.msra.mxu0 %v463
    %2269 = vmatprep.subr.mxu0 0.0
    %2270 = vmatpush1.msra.mxu0 %v466
    %2271 = vmatprep.subr.mxu0 0.0
    %2272 = vmatpush1.msra.mxu0 %v469
    %2273 = vmatprep.subr.mxu0 0.0
    %2274 = vmatpush1.msra.mxu0 %v472
    %2275 = vmatprep.subr.mxu0 0.0
    %2276 = vmatpush1.msra.mxu0 %v475
    %2277 = vmatprep.subr.mxu0 0.0
    %2278 = vmatpush1.msra.mxu0 %v478
    %2279 = vmatprep.subr.mxu0 0.0
    %2280 = vmatpush1.msra.mxu0 %v481
    %2281 = vmatprep.subr.mxu0 0.0
    %2282 = vmatpush1.msra.mxu0 %v484
    %2283 = vmatprep.subr.mxu0 0.0
    %2284 = vmatpush1.msra.mxu0 %v487
    %2285 = vmatprep.subr.mxu0 0.0
    %2286 = vmatpush1.msra.mxu0 %v490
    %2287 = vmatprep.subr.mxu0 0.0
    %2288 = vmatpush1.msra.mxu0 %v493
    %2289 = vmatprep.subr.mxu0 0.0
    %2290 = vmatpush1.msra.mxu0 %v496
    %2291 = vmatprep.subr.mxu0 0.0
    %2292 = vmatpush1.msra.mxu0 %v499
    %2293 = vmatprep.subr.mxu0 0.0
    %2294 = vmatpush1.msra.mxu0 %v502
    %2295 = vmatprep.subr.mxu0 0.0
    %2296 = vmatpush1.msra.mxu0 %v505
    %2297 = vmatprep.subr.mxu0 0.0
    %2298 = vmatpush1.msra.mxu0 %v508
    %2299 = vmatprep.subr.mxu0 0.0
    %2300 = vmatpush1.msra.mxu0 0.0
    %2301 = vmatprep.subr.mxu0 0.0
    %2302 = vmatpush1.msra.mxu0 0.0
    %2303 = vmatprep.subr.mxu0 0.0
    %2304 = vmatpush1.msra.mxu0 0.0
    %2305 = vmatprep.subr.mxu0 0.0
    %2306 = vmatpush1.msra.mxu0 0.0
    %2307 = vmatprep.subr.mxu0 0.0
    %2308 = vmatpush1.msra.mxu0 0.0
    %2309 = vmatprep.subr.mxu0 0.0
    %2310 = vmatpush1.msra.mxu0 0.0
    %2311 = vmatprep.subr.mxu0 0.0
    %2312 = vmatpush1.msra.mxu0 0.0
    %2313 = vmatprep.subr.mxu0 0.0
    %2314 = vmatpush1.msra.mxu0 0.0
    %2315 = vmatprep.subr.mxu0 0.0
    %2316 = vmatpush1.msra.mxu0 0.0
    %2317 = vmatprep.subr.mxu0 0.0
    %2318 = vmatpush1.msra.mxu0 0.0
    %2319 = vmatprep.subr.mxu0 0.0
    %2320 = vmatpush1.msra.mxu0 0.0
    %2321 = vmatprep.subr.mxu0 0.0
    %2322 = vmatpush1.msra.mxu0 0.0
    %2323 = vmatprep.subr.mxu0 0.0
    %2324 = vmatpush1.msra.mxu0 0.0
    %2325 = vmatprep.subr.mxu0 0.0
    %2326 = vmatpush1.msra.mxu0 0.0
    %2327 = vmatprep.subr.mxu0 0.0
    %2328 = vmatpush1.msra.mxu0 0.0
    %2329 = vmatprep.subr.mxu0 0.0
    %2330 = vmatpush1.msra.mxu0 0.0
    %2331 = vmatprep.mubr.f32.mxu0 0.0
    %2332 = vmatmul.mubr.f32.gmra.mrb[0].mxu0 %v2195
    %v2333 = vpop.f32.mrb[0].mxu0
    %v2334 = vadd.f32 %v755, %v2333
    %v2335 = vpop.f32.mrb[0].mxu0
    %2336 = vdwg.mxu0
    %2337 = vmatprep.subr.mxu0 %v511
    %2338 = vmatpush1.msra.mxu0 %v510
    %2339 = vmatprep.subr.mxu0 %v514
    %2340 = vmatpush1.msra.mxu0 %v513
    %2341 = vmatprep.subr.mxu0 %v517
    %2342 = vmatpush1.msra.mxu0 %v516
    %2343 = vmatprep.subr.mxu0 %v520
    %2344 = vmatpush1.msra.mxu0 %v519
    %2345 = vmatprep.subr.mxu0 %v523
    %2346 = vmatpush1.msra.mxu0 %v522
    %2347 = vmatprep.subr.mxu0 %v526
    %2348 = vmatpush1.msra.mxu0 %v525
    %2349 = vmatprep.subr.mxu0 %v529
    %2350 = vmatpush1.msra.mxu0 %v528
    %2351 = vmatprep.subr.mxu0 %v532
    %2352 = vmatpush1.msra.mxu0 %v531
    %2353 = vmatprep.subr.mxu0 %v535
    %2354 = vmatpush1.msra.mxu0 %v534
    %2355 = vmatprep.subr.mxu0 %v538
    %2356 = vmatpush1.msra.mxu0 %v537
    %2357 = vmatprep.subr.mxu0 %v541
    %2358 = vmatpush1.msra.mxu0 %v540
    %2359 = vmatprep.subr.mxu0 %v544
    %2360 = vmatpush1.msra.mxu0 %v543
    %2361 = vmatprep.subr.mxu0 %v547
    %2362 = vmatpush1.msra.mxu0 %v546
    %2363 = vmatprep.subr.mxu0 %v550
    %2364 = vmatpush1.msra.mxu0 %v549
    %2365 = vmatprep.subr.mxu0 %v553
    %2366 = vmatpush1.msra.mxu0 %v552
    %2367 = vmatprep.subr.mxu0 %v556
    %2368 = vmatpush1.msra.mxu0 %v555
    %2369 = vmatprep.subr.mxu0 0.0
    %2370 = vmatpush1.msra.mxu0 0.0
    %2371 = vmatprep.subr.mxu0 0.0
    %2372 = vmatpush1.msra.mxu0 0.0
    %2373 = vmatprep.subr.mxu0 0.0
    %2374 = vmatpush1.msra.mxu0 0.0
    %2375 = vmatprep.subr.mxu0 0.0
    %2376 = vmatpush1.msra.mxu0 0.0
    %2377 = vmatprep.subr.mxu0 0.0
    %2378 = vmatpush1.msra.mxu0 0.0
    %2379 = vmatprep.subr.mxu0 0.0
    %2380 = vmatpush1.msra.mxu0 0.0
    %2381 = vmatprep.subr.mxu0 0.0
    %2382 = vmatpush1.msra.mxu0 0.0
    %2383 = vmatprep.subr.mxu0 0.0
    %2384 = vmatpush1.msra.mxu0 0.0
    %2385 = vmatprep.subr.mxu0 0.0
    %2386 = vmatpush1.msra.mxu0 0.0
    %2387 = vmatprep.subr.mxu0 0.0
    %2388 = vmatpush1.msra.mxu0 0.0
    %2389 = vmatprep.subr.mxu0 0.0
    %2390 = vmatpush1.msra.mxu0 0.0
    %2391 = vmatprep.subr.mxu0 0.0
    %2392 = vmatpush1.msra.mxu0 0.0
    %2393 = vmatprep.subr.mxu0 0.0
    %2394 = vmatpush1.msra.mxu0 0.0
    %2395 = vmatprep.subr.mxu0 0.0
    %2396 = vmatpush1.msra.mxu0 0.0
    %2397 = vmatprep.subr.mxu0 0.0
    %2398 = vmatpush1.msra.mxu0 0.0
    %2399 = vmatprep.subr.mxu0 0.0
    %2400 = vmatpush1.msra.mxu0 0.0
    %2401 = vmatprep.mubr.f32.mxu0 0.0
    %2402 = vmatmul.mubr.f32.gmra.mrb[0].mxu0 %v2024
    %v2403 = vpop.f32.mrb[0].mxu0
    %v2404 = vadd.f32 %v904, %v2403
    %v2405 = vpop.f32.mrb[0].mxu0
    %v2406 = vadd.f32 %v908, %v2405
    %2407 = vdwg.mxu0
    %2408 = vmatprep.subr.mxu0 0.0
    %2409 = vmatpush1.msra.mxu0 %v512
    %2410 = vmatprep.subr.mxu0 0.0
    %2411 = vmatpush1.msra.mxu0 %v515
    %2412 = vmatprep.subr.mxu0 0.0
    %2413 = vmatpush1.msra.mxu0 %v518
    %2414 = vmatprep.subr.mxu0 0.0
    %2415 = vmatpush1.msra.mxu0 %v521
    %2416 = vmatprep.subr.mxu0 0.0
    %2417 = vmatpush1.msra.mxu0 %v524
    %2418 = vmatprep.subr.mxu0 0.0
    %2419 = vmatpush1.msra.mxu0 %v527
    %2420 = vmatprep.subr.mxu0 0.0
    %2421 = vmatpush1.msra.mxu0 %v530
    %2422 = vmatprep.subr.mxu0 0.0
    %2423 = vmatpush1.msra.mxu0 %v533
    %2424 = vmatprep.subr.mxu0 0.0
    %2425 = vmatpush1.msra.mxu0 %v536
    %2426 = vmatprep.subr.mxu0 0.0
    %2427 = vmatpush1.msra.mxu0 %v539
    %2428 = vmatprep.subr.mxu0 0.0
    %2429 = vmatpush1.msra.mxu0 %v542
    %2430 = vmatprep.subr.mxu0 0.0
    %2431 = vmatpush1.msra.mxu0 %v545
    %2432 = vmatprep.subr.mxu0 0.0
    %2433 = vmatpush1.msra.mxu0 %v548
    %2434 = vmatprep.subr.mxu0 0.0
    %2435 = vmatpush1.msra.mxu0 %v551
    %2436 = vmatprep.subr.mxu0 0.0
    %2437 = vmatpush1.msra.mxu0 %v554
    %2438 = vmatprep.subr.mxu0 0.0
    %2439 = vmatpush1.msra.mxu0 %v557
    %2440 = vmatprep.subr.mxu0 0.0
    %2441 = vmatpush1.msra.mxu0 0.0
    %2442 = vmatprep.subr.mxu0 0.0
    %2443 = vmatpush1.msra.mxu0 0.0
    %2444 = vmatprep.subr.mxu0 0.0
    %2445 = vmatpush1.msra.mxu0 0.0
    %2446 = vmatprep.subr.mxu0 0.0
    %2447 = vmatpush1.msra.mxu0 0.0
    %2448 = vmatprep.subr.mxu0 0.0
    %2449 = vmatpush1.msra.mxu0 0.0
    %2450 = vmatprep.subr.mxu0 0.0
    %2451 = vmatpush1.msra.mxu0 0.0
    %2452 = vmatprep.subr.mxu0 0.0
    %2453 = vmatpush1.msra.mxu0 0.0
    %2454 = vmatprep.subr.mxu0 0.0
    %2455 = vmatpush1.msra.mxu0 0.0
    %2456 = vmatprep.subr.mxu0 0.0
    %2457 = vmatpush1.msra.mxu0 0.0
    %2458 = vmatprep.subr.mxu0 0.0
    %2459 = vmatpush1.msra.mxu0 0.0
    %2460 = vmatprep.subr.mxu0 0.0
    %2461 = vmatpush1.msra.mxu0 0.0
    %2462 = vmatprep.subr.mxu0 0.0
    %2463 = vmatpush1.msra.mxu0 0.0
    %2464 = vmatprep.subr.mxu0 0.0
    %2465 = vmatpush1.msra.mxu0 0.0
    %2466 = vmatprep.subr.mxu0 0.0
    %2467 = vmatpush1.msra.mxu0 0.0
    %2468 = vmatprep.subr.mxu0 0.0
    %2469 = vmatpush1.msra.mxu0 0.0
    %2470 = vmatprep.subr.mxu0 0.0
    %2471 = vmatpush1.msra.mxu0 0.0
    %2472 = vmatprep.mubr.f32.mxu0 0.0
    %2473 = vmatmul.mubr.f32.gmra.mrb[0].mxu0 %v2024
    %v2474 = vpop.f32.mrb[0].mxu0
    %v2475 = vadd.f32 %v912, %v2474
    %v2476 = vpop.f32.mrb[0].mxu0
    %2477 = vdwg.mxu0
    %v2478 = vadd.f32 %v2263, %v2404
    %v2479 = vxor.u32 %v2478, 2147483648
    %v2480 = vmul.f32 %v2479, 1.442695
    %v2481 = vpow.pop %v2480
    %v2482 = vadd.f32 %v2481, 1.0
    %v2483 = vrcp.pop %v2482
    %v2484 = vmul.f32 1.0, %v2483
    %v2485 = vadd.f32 %v2265, %v2406
    %v2486 = vxor.u32 %v2485, 2147483648
    %v2487 = vmul.f32 %v2486, 1.442695
    %v2488 = vpow.pop %v2487
    %v2489 = vadd.f32 %v2488, 1.0
    %v2490 = vrcp.pop %v2489
    %v2491 = vmul.f32 1.0, %v2490
    %v2492 = vmul.f32 %v2484, %v2475
    %v2493 = vadd.f32 %v2334, %v2492
    %v2494 = vtanh.pop %v2493
    %v2495 = vsub.f32 1.0, %v2491
    %v2496 = vmul.f32 %v2495, %v2494
    %v2497 = vmul.f32 %v2491, %v2024
    %v2498 = vadd.f32 %v2496, %v2497
    %s2499 = scalar_lea.vmem [#allocation3], 6
    %2500 = vst [vmem:[%s2499] sm:$0x3] %v2498
    %s2501 = scalar_lea.vmem [#allocation2], 24
    %v2502 = vld [vmem:[%s2501] sm:$0x3f]
    %2503 = vmatprep.subr.mxu0 %v413
    %2504 = vmatpush1.msra.mxu0 %v412
    %2505 = vmatprep.subr.mxu0 %v416
    %2506 = vmatpush1.msra.mxu0 %v415
    %2507 = vmatprep.subr.mxu0 %v419
    %2508 = vmatpush1.msra.mxu0 %v418
    %2509 = vmatprep.subr.mxu0 %v422
    %2510 = vmatpush1.msra.mxu0 %v421
    %2511 = vmatprep.subr.mxu0 %v425
    %2512 = vmatpush1.msra.mxu0 %v424
    %2513 = vmatprep.subr.mxu0 %v428
    %2514 = vmatpush1.msra.mxu0 %v427
    %2515 = vmatprep.subr.mxu0 %v431
    %2516 = vmatpush1.msra.mxu0 %v430
    %2517 = vmatprep.subr.mxu0 %v434
    %2518 = vmatpush1.msra.mxu0 %v433
    %2519 = vmatprep.subr.mxu0 %v437
    %2520 = vmatpush1.msra.mxu0 %v436
    %2521 = vmatprep.subr.mxu0 %v440
    %2522 = vmatpush1.msra.mxu0 %v439
    %2523 = vmatprep.subr.mxu0 %v443
    %2524 = vmatpush1.msra.mxu0 %v442
    %2525 = vmatprep.subr.mxu0 %v446
    %2526 = vmatpush1.msra.mxu0 %v445
    %2527 = vmatprep.subr.mxu0 %v449
    %2528 = vmatpush1.msra.mxu0 %v448
    %2529 = vmatprep.subr.mxu0 %v452
    %2530 = vmatpush1.msra.mxu0 %v451
    %2531 = vmatprep.subr.mxu0 %v455
    %2532 = vmatpush1.msra.mxu0 %v454
    %2533 = vmatprep.subr.mxu0 %v458
    %2534 = vmatpush1.msra.mxu0 %v457
    %2535 = vmatprep.subr.mxu0 0.0
    %2536 = vmatpush1.msra.mxu0 0.0
    %2537 = vmatprep.subr.mxu0 0.0
    %2538 = vmatpush1.msra.mxu0 0.0
    %2539 = vmatprep.subr.mxu0 0.0
    %2540 = vmatpush1.msra.mxu0 0.0
    %2541 = vmatprep.subr.mxu0 0.0
    %2542 = vmatpush1.msra.mxu0 0.0
    %2543 = vmatprep.subr.mxu0 0.0
    %2544 = vmatpush1.msra.mxu0 0.0
    %2545 = vmatprep.subr.mxu0 0.0
    %2546 = vmatpush1.msra.mxu0 0.0
    %2547 = vmatprep.subr.mxu0 0.0
    %2548 = vmatpush1.msra.mxu0 0.0
    %2549 = vmatprep.subr.mxu0 0.0
    %2550 = vmatpush1.msra.mxu0 0.0
    %2551 = vmatprep.subr.mxu0 0.0
    %2552 = vmatpush1.msra.mxu0 0.0
    %2553 = vmatprep.subr.mxu0 0.0
    %2554 = vmatpush1.msra.mxu0 0.0
    %2555 = vmatprep.subr.mxu0 0.0
    %2556 = vmatpush1.msra.mxu0 0.0
    %2557 = vmatprep.subr.mxu0 0.0
    %2558 = vmatpush1.msra.mxu0 0.0
    %2559 = vmatprep.subr.mxu0 0.0
    %2560 = vmatpush1.msra.mxu0 0.0
    %2561 = vmatprep.subr.mxu0 0.0
    %2562 = vmatpush1.msra.mxu0 0.0
    %2563 = vmatprep.subr.mxu0 0.0
    %2564 = vmatpush1.msra.mxu0 0.0
    %2565 = vmatprep.subr.mxu0 0.0
    %2566 = vmatpush1.msra.mxu0 0.0
    %2567 = vmatprep.mubr.f32.mxu0 0.0
    %2568 = vmatmul.mubr.f32.gmra.mrb[0].mxu0 %v2195
    %v2569 = vpop.f32.mrb[0].mxu0
    %v2570 = vadd.f32 %v564, %v2569
    %v2571 = vpop.f32.mrb[0].mxu0
    %v2572 = vadd.f32 %v568, %v2571
    %2573 = vdwg.mxu0
    %2574 = vmatprep.subr.mxu0 0.0
    %2575 = vmatpush1.msra.mxu0 %v414
    %2576 = vmatprep.subr.mxu0 0.0
    %2577 = vmatpush1.msra.mxu0 %v417
    %2578 = vmatprep.subr.mxu0 0.0
    %2579 = vmatpush1.msra.mxu0 %v420
    %2580 = vmatprep.subr.mxu0 0.0
    %2581 = vmatpush1.msra.mxu0 %v423
    %2582 = vmatprep.subr.mxu0 0.0
    %2583 = vmatpush1.msra.mxu0 %v426
    %2584 = vmatprep.subr.mxu0 0.0
    %2585 = vmatpush1.msra.mxu0 %v429
    %2586 = vmatprep.subr.mxu0 0.0
    %2587 = vmatpush1.msra.mxu0 %v432
    %2588 = vmatprep.subr.mxu0 0.0
    %2589 = vmatpush1.msra.mxu0 %v435
    %2590 = vmatprep.subr.mxu0 0.0
    %2591 = vmatpush1.msra.mxu0 %v438
    %2592 = vmatprep.subr.mxu0 0.0
    %2593 = vmatpush1.msra.mxu0 %v441
    %2594 = vmatprep.subr.mxu0 0.0
    %2595 = vmatpush1.msra.mxu0 %v444
    %2596 = vmatprep.subr.mxu0 0.0
    %2597 = vmatpush1.msra.mxu0 %v447
    %2598 = vmatprep.subr.mxu0 0.0
    %2599 = vmatpush1.msra.mxu0 %v450
    %2600 = vmatprep.subr.mxu0 0.0
    %2601 = vmatpush1.msra.mxu0 %v453
    %2602 = vmatprep.subr.mxu0 0.0
    %2603 = vmatpush1.msra.mxu0 %v456
    %2604 = vmatprep.subr.mxu0 0.0
    %2605 = vmatpush1.msra.mxu0 %v459
    %2606 = vmatprep.subr.mxu0 0.0
    %2607 = vmatpush1.msra.mxu0 0.0
    %2608 = vmatprep.subr.mxu0 0.0
    %2609 = vmatpush1.msra.mxu0 0.0
    %2610 = vmatprep.subr.mxu0 0.0
    %2611 = vmatpush1.msra.mxu0 0.0
    %2612 = vmatprep.subr.mxu0 0.0
    %2613 = vmatpush1.msra.mxu0 0.0
    %2614 = vmatprep.subr.mxu0 0.0
    %2615 = vmatpush1.msra.mxu0 0.0
    %2616 = vmatprep.subr.mxu0 0.0
    %2617 = vmatpush1.msra.mxu0 0.0
    %2618 = vmatprep.subr.mxu0 0.0
    %2619 = vmatpush1.msra.mxu0 0.0
    %2620 = vmatprep.subr.mxu0 0.0
    %2621 = vmatpush1.msra.mxu0 0.0
    %2622 = vmatprep.subr.mxu0 0.0
    %2623 = vmatpush1.msra.mxu0 0.0
    %2624 = vmatprep.subr.mxu0 0.0
    %2625 = vmatpush1.msra.mxu0 0.0
    %2626 = vmatprep.subr.mxu0 0.0
    %2627 = vmatpush1.msra.mxu0 0.0
    %2628 = vmatprep.subr.mxu0 0.0
    %2629 = vmatpush1.msra.mxu0 0.0
    %2630 = vmatprep.subr.mxu0 0.0
    %2631 = vmatpush1.msra.mxu0 0.0
    %2632 = vmatprep.subr.mxu0 0.0
    %2633 = vmatpush1.msra.mxu0 0.0
    %2634 = vmatprep.subr.mxu0 0.0
    %2635 = vmatpush1.msra.mxu0 0.0
    %2636 = vmatprep.subr.mxu0 0.0
    %2637 = vmatpush1.msra.mxu0 0.0
    %2638 = vmatprep.mubr.f32.mxu0 0.0
    %2639 = vmatmul.mubr.f32.gmra.mrb[0].mxu0 %v2195
    %v2640 = vpop.f32.mrb[0].mxu0
    %v2641 = vadd.f32 %v572, %v2640
    %v2642 = vpop.f32.mrb[0].mxu0
    %2643 = vdwg.mxu0
    %v2644 = vadd.f32 %v2502, %v2570
    %v2645 = vxor.u32 %v2644, 2147483648
    %v2646 = vmul.f32 %v2645, 1.442695
    %v2647 = vpow.pop %v2646
    %v2648 = vadd.f32 %v2647, 1.0
    %v2649 = vrcp.pop %v2648
    %v2650 = vmul.f32 1.0, %v2649
    %v2652 = vrot.slane %v2502, 2
    %v2654 = vadd.f32 %v2652, %v2572
    %v2655 = vxor.u32 %v2654, 2147483648
    %v2656 = vmul.f32 %v2655, 1.442695
    %v2657 = vpow.pop %v2656
    %v2658 = vadd.f32 %v2657, 1.0
    %v2659 = vrcp.pop %v2658
    %v2660 = vmul.f32 1.0, %v2659
    %v2661 = vmul.f32 %v2650, %v2641
    %v2662 = vrot.slane %v2502, 4
    %v2664 = vadd.f32 %v2662, %v2661
    %v2665 = vtanh.pop %v2664
    %v2666 = vsub.f32 1.0, %v2660
    %v2667 = vmul.f32 %v2666, %v2665
    %v2668 = vmul.f32 %v2660, %v2195
    %v2669 = vadd.f32 %v2667, %v2668
    %2670 = vmatprep.subr.mxu0 %v462
    %2671 = vmatpush1.msra.mxu0 %v461
    %2672 = vmatprep.subr.mxu0 %v465
    %2673 = vmatpush1.msra.mxu0 %v464
    %2674 = vmatprep.subr.mxu0 %v468
    %2675 = vmatpush1.msra.mxu0 %v467
    %2676 = vmatprep.subr.mxu0 %v471
    %2677 = vmatpush1.msra.mxu0 %v470
    %2678 = vmatprep.subr.mxu0 %v474
    %2679 = vmatpush1.msra.mxu0 %v473
    %2680 = vmatprep.subr.mxu0 %v477
    %2681 = vmatpush1.msra.mxu0 %v476
    %2682 = vmatprep.subr.mxu0 %v480
    %2683 = vmatpush1.msra.mxu0 %v479
    %2684 = vmatprep.subr.mxu0 %v483
    %2685 = vmatpush1.msra.mxu0 %v482
    %2686 = vmatprep.subr.mxu0 %v486
    %2687 = vmatpush1.msra.mxu0 %v485
    %2688 = vmatprep.subr.mxu0 %v489
    %2689 = vmatpush1.msra.mxu0 %v488
    %2690 = vmatprep.subr.mxu0 %v492
    %2691 = vmatpush1.msra.mxu0 %v491
    %2692 = vmatprep.subr.mxu0 %v495
    %2693 = vmatpush1.msra.mxu0 %v494
    %2694 = vmatprep.subr.mxu0 %v498
    %2695 = vmatpush1.msra.mxu0 %v497
    %2696 = vmatprep.subr.mxu0 %v501
    %2697 = vmatpush1.msra.mxu0 %v500
    %2698 = vmatprep.subr.mxu0 %v504
    %2699 = vmatpush1.msra.mxu0 %v503
    %2700 = vmatprep.subr.mxu0 %v507
    %2701 = vmatpush1.msra.mxu0 %v506
    %2702 = vmatprep.subr.mxu0 0.0
    %2703 = vmatpush1.msra.mxu0 0.0
    %2704 = vmatprep.subr.mxu0 0.0
    %2705 = vmatpush1.msra.mxu0 0.0
    %2706 = vmatprep.subr.mxu0 0.0
    %2707 = vmatpush1.msra.mxu0 0.0
    %2708 = vmatprep.subr.mxu0 0.0
    %2709 = vmatpush1.msra.mxu0 0.0
    %2710 = vmatprep.subr.mxu0 0.0
    %2711 = vmatpush1.msra.mxu0 0.0
    %2712 = vmatprep.subr.mxu0 0.0
    %2713 = vmatpush1.msra.mxu0 0.0
    %2714 = vmatprep.subr.mxu0 0.0
    %2715 = vmatpush1.msra.mxu0 0.0
    %2716 = vmatprep.subr.mxu0 0.0
    %2717 = vmatpush1.msra.mxu0 0.0
    %2718 = vmatprep.subr.mxu0 0.0
    %2719 = vmatpush1.msra.mxu0 0.0
    %2720 = vmatprep.subr.mxu0 0.0
    %2721 = vmatpush1.msra.mxu0 0.0
    %2722 = vmatprep.subr.mxu0 0.0
    %2723 = vmatpush1.msra.mxu0 0.0
    %2724 = vmatprep.subr.mxu0 0.0
    %2725 = vmatpush1.msra.mxu0 0.0
    %2726 = vmatprep.subr.mxu0 0.0
    %2727 = vmatpush1.msra.mxu0 0.0
    %2728 = vmatprep.subr.mxu0 0.0
    %2729 = vmatpush1.msra.mxu0 0.0
    %2730 = vmatprep.subr.mxu0 0.0
    %2731 = vmatpush1.msra.mxu0 0.0
    %2732 = vmatprep.subr.mxu0 0.0
    %2733 = vmatpush1.msra.mxu0 0.0
    %2734 = vmatprep.mubr.f32.mxu0 0.0
    %2735 = vmatmul.mubr.f32.gmra.mrb[0].mxu0 %v2669
    %v2736 = vpop.f32.mrb[0].mxu0
    %v2737 = vadd.f32 %v747, %v2736
    %v2738 = vpop.f32.mrb[0].mxu0
    %v2739 = vadd.f32 %v751, %v2738
    %2740 = vdwg.mxu0
    %2741 = vmatprep.subr.mxu0 0.0
    %2742 = vmatpush1.msra.mxu0 %v463
    %2743 = vmatprep.subr.mxu0 0.0
    %2744 = vmatpush1.msra.mxu0 %v466
    %2745 = vmatprep.subr.mxu0 0.0
    %2746 = vmatpush1.msra.mxu0 %v469
    %2747 = vmatprep.subr.mxu0 0.0
    %2748 = vmatpush1.msra.mxu0 %v472
    %2749 = vmatprep.subr.mxu0 0.0
    %2750 = vmatpush1.msra.mxu0 %v475
    %2751 = vmatprep.subr.mxu0 0.0
    %2752 = vmatpush1.msra.mxu0 %v478
    %2753 = vmatprep.subr.mxu0 0.0
    %2754 = vmatpush1.msra.mxu0 %v481
    %2755 = vmatprep.subr.mxu0 0.0
    %2756 = vmatpush1.msra.mxu0 %v484
    %2757 = vmatprep.subr.mxu0 0.0
    %2758 = vmatpush1.msra.mxu0 %v487
    %2759 = vmatprep.subr.mxu0 0.0
    %2760 = vmatpush1.msra.mxu0 %v490
    %2761 = vmatprep.subr.mxu0 0.0
    %2762 = vmatpush1.msra.mxu0 %v493
    %2763 = vmatprep.subr.mxu0 0.0
    %2764 = vmatpush1.msra.mxu0 %v496
    %2765 = vmatprep.subr.mxu0 0.0
    %2766 = vmatpush1.msra.mxu0 %v499
    %2767 = vmatprep.subr.mxu0 0.0
    %2768 = vmatpush1.msra.mxu0 %v502
    %2769 = vmatprep.subr.mxu0 0.0
    %2770 = vmatpush1.msra.mxu0 %v505
    %2771 = vmatprep.subr.mxu0 0.0
    %2772 = vmatpush1.msra.mxu0 %v508
    %2773 = vmatprep.subr.mxu0 0.0
    %2774 = vmatpush1.msra.mxu0 0.0
    %2775 = vmatprep.subr.mxu0 0.0
    %2776 = vmatpush1.msra.mxu0 0.0
    %2777 = vmatprep.subr.mxu0 0.0
    %2778 = vmatpush1.msra.mxu0 0.0
    %2779 = vmatprep.subr.mxu0 0.0
    %2780 = vmatpush1.msra.mxu0 0.0
    %2781 = vmatprep.subr.mxu0 0.0
    %2782 = vmatpush1.msra.mxu0 0.0
    %2783 = vmatprep.subr.mxu0 0.0
    %2784 = vmatpush1.msra.mxu0 0.0
    %2785 = vmatprep.subr.mxu0 0.0
    %2786 = vmatpush1.msra.mxu0 0.0
    %2787 = vmatprep.subr.mxu0 0.0
    %2788 = vmatpush1.msra.mxu0 0.0
    %2789 = vmatprep.subr.mxu0 0.0
    %2790 = vmatpush1.msra.mxu0 0.0
    %2791 = vmatprep.subr.mxu0 0.0
    %2792 = vmatpush1.msra.mxu0 0.0
    %2793 = vmatprep.subr.mxu0 0.0
    %2794 = vmatpush1.msra.mxu0 0.0
    %2795 = vmatprep.subr.mxu0 0.0
    %2796 = vmatpush1.msra.mxu0 0.0
    %2797 = vmatprep.subr.mxu0 0.0
    %2798 = vmatpush1.msra.mxu0 0.0
    %2799 = vmatprep.subr.mxu0 0.0
    %2800 = vmatpush1.msra.mxu0 0.0
    %2801 = vmatprep.subr.mxu0 0.0
    %2802 = vmatpush1.msra.mxu0 0.0
    %2803 = vmatprep.subr.mxu0 0.0
    %2804 = vmatpush1.msra.mxu0 0.0
    %2805 = vmatprep.mubr.f32.mxu0 0.0
    %2806 = vmatmul.mubr.f32.gmra.mrb[0].mxu0 %v2669
    %v2807 = vpop.f32.mrb[0].mxu0
    %v2808 = vadd.f32 %v755, %v2807
    %v2809 = vpop.f32.mrb[0].mxu0
    %2810 = vdwg.mxu0
    %2811 = vmatprep.subr.mxu0 %v511
    %2812 = vmatpush1.msra.mxu0 %v510
    %2813 = vmatprep.subr.mxu0 %v514
    %2814 = vmatpush1.msra.mxu0 %v513
    %2815 = vmatprep.subr.mxu0 %v517
    %2816 = vmatpush1.msra.mxu0 %v516
    %2817 = vmatprep.subr.mxu0 %v520
    %2818 = vmatpush1.msra.mxu0 %v519
    %2819 = vmatprep.subr.mxu0 %v523
    %2820 = vmatpush1.msra.mxu0 %v522
    %2821 = vmatprep.subr.mxu0 %v526
    %2822 = vmatpush1.msra.mxu0 %v525
    %2823 = vmatprep.subr.mxu0 %v529
    %2824 = vmatpush1.msra.mxu0 %v528
    %2825 = vmatprep.subr.mxu0 %v532
    %2826 = vmatpush1.msra.mxu0 %v531
    %2827 = vmatprep.subr.mxu0 %v535
    %2828 = vmatpush1.msra.mxu0 %v534
    %2829 = vmatprep.subr.mxu0 %v538
    %2830 = vmatpush1.msra.mxu0 %v537
    %2831 = vmatprep.subr.mxu0 %v541
    %2832 = vmatpush1.msra.mxu0 %v540
    %2833 = vmatprep.subr.mxu0 %v544
    %2834 = vmatpush1.msra.mxu0 %v543
    %2835 = vmatprep.subr.mxu0 %v547
    %2836 = vmatpush1.msra.mxu0 %v546
    %2837 = vmatprep.subr.mxu0 %v550
    %2838 = vmatpush1.msra.mxu0 %v549
    %2839 = vmatprep.subr.mxu0 %v553
    %2840 = vmatpush1.msra.mxu0 %v552
    %2841 = vmatprep.subr.mxu0 %v556
    %2842 = vmatpush1.msra.mxu0 %v555
    %2843 = vmatprep.subr.mxu0 0.0
    %2844 = vmatpush1.msra.mxu0 0.0
    %2845 = vmatprep.subr.mxu0 0.0
    %2846 = vmatpush1.msra.mxu0 0.0
    %2847 = vmatprep.subr.mxu0 0.0
    %2848 = vmatpush1.msra.mxu0 0.0
    %2849 = vmatprep.subr.mxu0 0.0
    %2850 = vmatpush1.msra.mxu0 0.0
    %2851 = vmatprep.subr.mxu0 0.0
    %2852 = vmatpush1.msra.mxu0 0.0
    %2853 = vmatprep.subr.mxu0 0.0
    %2854 = vmatpush1.msra.mxu0 0.0
    %2855 = vmatprep.subr.mxu0 0.0
    %2856 = vmatpush1.msra.mxu0 0.0
    %2857 = vmatprep.subr.mxu0 0.0
    %2858 = vmatpush1.msra.mxu0 0.0
    %2859 = vmatprep.subr.mxu0 0.0
    %2860 = vmatpush1.msra.mxu0 0.0
    %2861 = vmatprep.subr.mxu0 0.0
    %2862 = vmatpush1.msra.mxu0 0.0
    %2863 = vmatprep.subr.mxu0 0.0
    %2864 = vmatpush1.msra.mxu0 0.0
    %2865 = vmatprep.subr.mxu0 0.0
    %2866 = vmatpush1.msra.mxu0 0.0
    %2867 = vmatprep.subr.mxu0 0.0
    %2868 = vmatpush1.msra.mxu0 0.0
    %2869 = vmatprep.subr.mxu0 0.0
    %2870 = vmatpush1.msra.mxu0 0.0
    %2871 = vmatprep.subr.mxu0 0.0
    %2872 = vmatpush1.msra.mxu0 0.0
    %2873 = vmatprep.subr.mxu0 0.0
    %2874 = vmatpush1.msra.mxu0 0.0
    %2875 = vmatprep.mubr.f32.mxu0 0.0
    %2876 = vmatmul.mubr.f32.gmra.mrb[0].mxu0 %v2498
    %v2877 = vpop.f32.mrb[0].mxu0
    %v2878 = vadd.f32 %v904, %v2877
    %v2879 = vpop.f32.mrb[0].mxu0
    %v2880 = vadd.f32 %v908, %v2879
    %2881 = vdwg.mxu0
    %2882 = vmatprep.subr.mxu0 0.0
    %2883 = vmatpush1.msra.mxu0 %v512
    %2884 = vmatprep.subr.mxu0 0.0
    %2885 = vmatpush1.msra.mxu0 %v515
    %2886 = vmatprep.subr.mxu0 0.0
    %2887 = vmatpush1.msra.mxu0 %v518
    %2888 = vmatprep.subr.mxu0 0.0
    %2889 = vmatpush1.msra.mxu0 %v521
    %2890 = vmatprep.subr.mxu0 0.0
    %2891 = vmatpush1.msra.mxu0 %v524
    %2892 = vmatprep.subr.mxu0 0.0
    %2893 = vmatpush1.msra.mxu0 %v527
    %2894 = vmatprep.subr.mxu0 0.0
    %2895 = vmatpush1.msra.mxu0 %v530
    %2896 = vmatprep.subr.mxu0 0.0
    %2897 = vmatpush1.msra.mxu0 %v533
    %2898 = vmatprep.subr.mxu0 0.0
    %2899 = vmatpush1.msra.mxu0 %v536
    %2900 = vmatprep.subr.mxu0 0.0
    %2901 = vmatpush1.msra.mxu0 %v539
    %2902 = vmatprep.subr.mxu0 0.0
    %2903 = vmatpush1.msra.mxu0 %v542
    %2904 = vmatprep.subr.mxu0 0.0
    %2905 = vmatpush1.msra.mxu0 %v545
    %2906 = vmatprep.subr.mxu0 0.0
    %2907 = vmatpush1.msra.mxu0 %v548
    %2908 = vmatprep.subr.mxu0 0.0
    %2909 = vmatpush1.msra.mxu0 %v551
    %2910 = vmatprep.subr.mxu0 0.0
    %2911 = vmatpush1.msra.mxu0 %v554
    %2912 = vmatprep.subr.mxu0 0.0
    %2913 = vmatpush1.msra.mxu0 %v557
    %2914 = vmatprep.subr.mxu0 0.0
    %2915 = vmatpush1.msra.mxu0 0.0
    %2916 = vmatprep.subr.mxu0 0.0
    %2917 = vmatpush1.msra.mxu0 0.0
    %2918 = vmatprep.subr.mxu0 0.0
    %2919 = vmatpush1.msra.mxu0 0.0
    %2920 = vmatprep.subr.mxu0 0.0
    %2921 = vmatpush1.msra.mxu0 0.0
    %2922 = vmatprep.subr.mxu0 0.0
    %2923 = vmatpush1.msra.mxu0 0.0
    %2924 = vmatprep.subr.mxu0 0.0
    %2925 = vmatpush1.msra.mxu0 0.0
    %2926 = vmatprep.subr.mxu0 0.0
    %2927 = vmatpush1.msra.mxu0 0.0
    %2928 = vmatprep.subr.mxu0 0.0
    %2929 = vmatpush1.msra.mxu0 0.0
    %2930 = vmatprep.subr.mxu0 0.0
    %2931 = vmatpush1.msra.mxu0 0.0
    %2932 = vmatprep.subr.mxu0 0.0
    %2933 = vmatpush1.msra.mxu0 0.0
    %2934 = vmatprep.subr.mxu0 0.0
    %2935 = vmatpush1.msra.mxu0 0.0
    %2936 = vmatprep.subr.mxu0 0.0
    %2937 = vmatpush1.msra.mxu0 0.0
    %2938 = vmatprep.subr.mxu0 0.0
    %2939 = vmatpush1.msra.mxu0 0.0
    %2940 = vmatprep.subr.mxu0 0.0
    %2941 = vmatpush1.msra.mxu0 0.0
    %2942 = vmatprep.subr.mxu0 0.0
    %2943 = vmatpush1.msra.mxu0 0.0
    %2944 = vmatprep.subr.mxu0 0.0
    %2945 = vmatpush1.msra.mxu0 0.0
    %2946 = vmatprep.mubr.f32.mxu0 0.0
    %2947 = vmatmul.mubr.f32.gmra.mrb[0].mxu0 %v2498
    %v2948 = vpop.f32.mrb[0].mxu0
    %v2949 = vadd.f32 %v912, %v2948
    %v2950 = vpop.f32.mrb[0].mxu0
    %2951 = vdwg.mxu0
    %v2952 = vadd.f32 %v2737, %v2878
    %v2953 = vxor.u32 %v2952, 2147483648
    %v2954 = vmul.f32 %v2953, 1.442695
    %v2955 = vpow.pop %v2954
    %v2956 = vadd.f32 %v2955, 1.0
    %v2957 = vrcp.pop %v2956
    %v2958 = vmul.f32 1.0, %v2957
    %v2959 = vadd.f32 %v2739, %v2880
    %v2960 = vxor.u32 %v2959, 2147483648
    %v2961 = vmul.f32 %v2960, 1.442695
    %v2962 = vpow.pop %v2961
    %v2963 = vadd.f32 %v2962, 1.0
    %v2964 = vrcp.pop %v2963
    %v2965 = vmul.f32 1.0, %v2964
    %v2966 = vmul.f32 %v2958, %v2949
    %v2967 = vadd.f32 %v2808, %v2966
    %v2968 = vtanh.pop %v2967
    %v2969 = vsub.f32 1.0, %v2965
    %v2970 = vmul.f32 %v2969, %v2968
    %v2971 = vmul.f32 %v2965, %v2498
    %v2972 = vadd.f32 %v2970, %v2971
    %s2973 = scalar_lea.vmem [#allocation3], 8
    %2974 = vst [vmem:[%s2973] sm:$0x3] %v2972
    %s2975 = scalar_lea.vmem [#allocation2], 30
    %v2976 = vld [vmem:[%s2975] sm:$0x3f]
    %2977 = vmatprep.subr.mxu0 %v413
    %2978 = vmatpush1.msra.mxu0 %v412
    %2979 = vmatprep.subr.mxu0 %v416
    %2980 = vmatpush1.msra.mxu0 %v415
    %2981 = vmatprep.subr.mxu0 %v419
    %2982 = vmatpush1.msra.mxu0 %v418
    %2983 = vmatprep.subr.mxu0 %v422
    %2984 = vmatpush1.msra.mxu0 %v421
    %2985 = vmatprep.subr.mxu0 %v425
    %2986 = vmatpush1.msra.mxu0 %v424
    %2987 = vmatprep.subr.mxu0 %v428
    %2988 = vmatpush1.msra.mxu0 %v427
    %2989 = vmatprep.subr.mxu0 %v431
    %2990 = vmatpush1.msra.mxu0 %v430
    %2991 = vmatprep.subr.mxu0 %v434
    %2992 = vmatpush1.msra.mxu0 %v433
    %2993 = vmatprep.subr.mxu0 %v437
    %2994 = vmatpush1.msra.mxu0 %v436
    %2995 = vmatprep.subr.mxu0 %v440
    %2996 = vmatpush1.msra.mxu0 %v439
    %2997 = vmatprep.subr.mxu0 %v443
    %2998 = vmatpush1.msra.mxu0 %v442
    %2999 = vmatprep.subr.mxu0 %v446
    %3000 = vmatpush1.msra.mxu0 %v445
    %3001 = vmatprep.subr.mxu0 %v449
    %3002 = vmatpush1.msra.mxu0 %v448
    %3003 = vmatprep.subr.mxu0 %v452
    %3004 = vmatpush1.msra.mxu0 %v451
    %3005 = vmatprep.subr.mxu0 %v455
    %3006 = vmatpush1.msra.mxu0 %v454
    %3007 = vmatprep.subr.mxu0 %v458
    %3008 = vmatpush1.msra.mxu0 %v457
    %3009 = vmatprep.subr.mxu0 0.0
    %3010 = vmatpush1.msra.mxu0 0.0
    %3011 = vmatprep.subr.mxu0 0.0
    %3012 = vmatpush1.msra.mxu0 0.0
    %3013 = vmatprep.subr.mxu0 0.0
    %3014 = vmatpush1.msra.mxu0 0.0
    %3015 = vmatprep.subr.mxu0 0.0
    %3016 = vmatpush1.msra.mxu0 0.0
    %3017 = vmatprep.subr.mxu0 0.0
    %3018 = vmatpush1.msra.mxu0 0.0
    %3019 = vmatprep.subr.mxu0 0.0
    %3020 = vmatpush1.msra.mxu0 0.0
    %3021 = vmatprep.subr.mxu0 0.0
    %3022 = vmatpush1.msra.mxu0 0.0
    %3023 = vmatprep.subr.mxu0 0.0
    %3024 = vmatpush1.msra.mxu0 0.0
    %3025 = vmatprep.subr.mxu0 0.0
    %3026 = vmatpush1.msra.mxu0 0.0
    %3027 = vmatprep.subr.mxu0 0.0
    %3028 = vmatpush1.msra.mxu0 0.0
    %3029 = vmatprep.subr.mxu0 0.0
    %3030 = vmatpush1.msra.mxu0 0.0
    %3031 = vmatprep.subr.mxu0 0.0
    %3032 = vmatpush1.msra.mxu0 0.0
    %3033 = vmatprep.subr.mxu0 0.0
    %3034 = vmatpush1.msra.mxu0 0.0
    %3035 = vmatprep.subr.mxu0 0.0
    %3036 = vmatpush1.msra.mxu0 0.0
    %3037 = vmatprep.subr.mxu0 0.0
    %3038 = vmatpush1.msra.mxu0 0.0
    %3039 = vmatprep.subr.mxu0 0.0
    %3040 = vmatpush1.msra.mxu0 0.0
    %3041 = vmatprep.mubr.f32.mxu0 0.0
    %3042 = vmatmul.mubr.f32.gmra.mrb[0].mxu0 %v2669
    %v3043 = vpop.f32.mrb[0].mxu0
    %v3044 = vadd.f32 %v564, %v3043
    %v3045 = vpop.f32.mrb[0].mxu0
    %v3046 = vadd.f32 %v568, %v3045
    %3047 = vdwg.mxu0
    %3048 = vmatprep.subr.mxu0 0.0
    %3049 = vmatpush1.msra.mxu0 %v414
    %3050 = vmatprep.subr.mxu0 0.0
    %3051 = vmatpush1.msra.mxu0 %v417
    %3052 = vmatprep.subr.mxu0 0.0
    %3053 = vmatpush1.msra.mxu0 %v420
    %3054 = vmatprep.subr.mxu0 0.0
    %3055 = vmatpush1.msra.mxu0 %v423
    %3056 = vmatprep.subr.mxu0 0.0
    %3057 = vmatpush1.msra.mxu0 %v426
    %3058 = vmatprep.subr.mxu0 0.0
    %3059 = vmatpush1.msra.mxu0 %v429
    %3060 = vmatprep.subr.mxu0 0.0
    %3061 = vmatpush1.msra.mxu0 %v432
    %3062 = vmatprep.subr.mxu0 0.0
    %3063 = vmatpush1.msra.mxu0 %v435
    %3064 = vmatprep.subr.mxu0 0.0
    %3065 = vmatpush1.msra.mxu0 %v438
    %3066 = vmatprep.subr.mxu0 0.0
    %3067 = vmatpush1.msra.mxu0 %v441
    %3068 = vmatprep.subr.mxu0 0.0
    %3069 = vmatpush1.msra.mxu0 %v444
    %3070 = vmatprep.subr.mxu0 0.0
    %3071 = vmatpush1.msra.mxu0 %v447
    %3072 = vmatprep.subr.mxu0 0.0
    %3073 = vmatpush1.msra.mxu0 %v450
    %3074 = vmatprep.subr.mxu0 0.0
    %3075 = vmatpush1.msra.mxu0 %v453
    %3076 = vmatprep.subr.mxu0 0.0
    %3077 = vmatpush1.msra.mxu0 %v456
    %3078 = vmatprep.subr.mxu0 0.0
    %3079 = vmatpush1.msra.mxu0 %v459
    %3080 = vmatprep.subr.mxu0 0.0
    %3081 = vmatpush1.msra.mxu0 0.0
    %3082 = vmatprep.subr.mxu0 0.0
    %3083 = vmatpush1.msra.mxu0 0.0
    %3084 = vmatprep.subr.mxu0 0.0
    %3085 = vmatpush1.msra.mxu0 0.0
    %3086 = vmatprep.subr.mxu0 0.0
    %3087 = vmatpush1.msra.mxu0 0.0
    %3088 = vmatprep.subr.mxu0 0.0
    %3089 = vmatpush1.msra.mxu0 0.0
    %3090 = vmatprep.subr.mxu0 0.0
    %3091 = vmatpush1.msra.mxu0 0.0
    %3092 = vmatprep.subr.mxu0 0.0
    %3093 = vmatpush1.msra.mxu0 0.0
    %3094 = vmatprep.subr.mxu0 0.0
    %3095 = vmatpush1.msra.mxu0 0.0
    %3096 = vmatprep.subr.mxu0 0.0
    %3097 = vmatpush1.msra.mxu0 0.0
    %3098 = vmatprep.subr.mxu0 0.0
    %3099 = vmatpush1.msra.mxu0 0.0
    %3100 = vmatprep.subr.mxu0 0.0
    %3101 = vmatpush1.msra.mxu0 0.0
    %3102 = vmatprep.subr.mxu0 0.0
    %3103 = vmatpush1.msra.mxu0 0.0
    %3104 = vmatprep.subr.mxu0 0.0
    %3105 = vmatpush1.msra.mxu0 0.0
    %3106 = vmatprep.subr.mxu0 0.0
    %3107 = vmatpush1.msra.mxu0 0.0
    %3108 = vmatprep.subr.mxu0 0.0
    %3109 = vmatpush1.msra.mxu0 0.0
    %3110 = vmatprep.subr.mxu0 0.0
    %3111 = vmatpush1.msra.mxu0 0.0
    %3112 = vmatprep.mubr.f32.mxu0 0.0
    %3113 = vmatmul.mubr.f32.gmra.mrb[0].mxu0 %v2669
    %v3114 = vpop.f32.mrb[0].mxu0
    %v3115 = vadd.f32 %v572, %v3114
    %v3116 = vpop.f32.mrb[0].mxu0
    %3117 = vdwg.mxu0
    %v3118 = vadd.f32 %v2976, %v3044
    %v3119 = vxor.u32 %v3118, 2147483648
    %v3120 = vmul.f32 %v3119, 1.442695
    %v3121 = vpow.pop %v3120
    %v3122 = vadd.f32 %v3121, 1.0
    %v3123 = vrcp.pop %v3122
    %v3124 = vmul.f32 1.0, %v3123
    %v3126 = vrot.slane %v2976, 2
    %v3128 = vadd.f32 %v3126, %v3046
    %v3129 = vxor.u32 %v3128, 2147483648
    %v3130 = vmul.f32 %v3129, 1.442695
    %v3131 = vpow.pop %v3130
    %v3132 = vadd.f32 %v3131, 1.0
    %v3133 = vrcp.pop %v3132
    %v3134 = vmul.f32 1.0, %v3133
    %v3135 = vmul.f32 %v3124, %v3115
    %v3136 = vrot.slane %v2976, 4
    %v3138 = vadd.f32 %v3136, %v3135
    %v3139 = vtanh.pop %v3138
    %v3140 = vsub.f32 1.0, %v3134
    %v3141 = vmul.f32 %v3140, %v3139
    %v3142 = vmul.f32 %v3134, %v2669
    %v3143 = vadd.f32 %v3141, %v3142
    %3144 = vmatprep.subr.mxu0 %v462
    %3145 = vmatpush1.msra.mxu0 %v461
    %3146 = vmatprep.subr.mxu0 %v465
    %3147 = vmatpush1.msra.mxu0 %v464
    %3148 = vmatprep.subr.mxu0 %v468
    %3149 = vmatpush1.msra.mxu0 %v467
    %3150 = vmatprep.subr.mxu0 %v471
    %3151 = vmatpush1.msra.mxu0 %v470
    %3152 = vmatprep.subr.mxu0 %v474
    %3153 = vmatpush1.msra.mxu0 %v473
    %3154 = vmatprep.subr.mxu0 %v477
    %3155 = vmatpush1.msra.mxu0 %v476
    %3156 = vmatprep.subr.mxu0 %v480
    %3157 = vmatpush1.msra.mxu0 %v479
    %3158 = vmatprep.subr.mxu0 %v483
    %3159 = vmatpush1.msra.mxu0 %v482
    %3160 = vmatprep.subr.mxu0 %v486
    %3161 = vmatpush1.msra.mxu0 %v485
    %3162 = vmatprep.subr.mxu0 %v489
    %3163 = vmatpush1.msra.mxu0 %v488
    %3164 = vmatprep.subr.mxu0 %v492
    %3165 = vmatpush1.msra.mxu0 %v491
    %3166 = vmatprep.subr.mxu0 %v495
    %3167 = vmatpush1.msra.mxu0 %v494
    %3168 = vmatprep.subr.mxu0 %v498
    %3169 = vmatpush1.msra.mxu0 %v497
    %3170 = vmatprep.subr.mxu0 %v501
    %3171 = vmatpush1.msra.mxu0 %v500
    %3172 = vmatprep.subr.mxu0 %v504
    %3173 = vmatpush1.msra.mxu0 %v503
    %3174 = vmatprep.subr.mxu0 %v507
    %3175 = vmatpush1.msra.mxu0 %v506
    %3176 = vmatprep.subr.mxu0 0.0
    %3177 = vmatpush1.msra.mxu0 0.0
    %3178 = vmatprep.subr.mxu0 0.0
    %3179 = vmatpush1.msra.mxu0 0.0
    %3180 = vmatprep.subr.mxu0 0.0
    %3181 = vmatpush1.msra.mxu0 0.0
    %3182 = vmatprep.subr.mxu0 0.0
    %3183 = vmatpush1.msra.mxu0 0.0
    %3184 = vmatprep.subr.mxu0 0.0
    %3185 = vmatpush1.msra.mxu0 0.0
    %3186 = vmatprep.subr.mxu0 0.0
    %3187 = vmatpush1.msra.mxu0 0.0
    %3188 = vmatprep.subr.mxu0 0.0
    %3189 = vmatpush1.msra.mxu0 0.0
    %3190 = vmatprep.subr.mxu0 0.0
    %3191 = vmatpush1.msra.mxu0 0.0
    %3192 = vmatprep.subr.mxu0 0.0
    %3193 = vmatpush1.msra.mxu0 0.0
    %3194 = vmatprep.subr.mxu0 0.0
    %3195 = vmatpush1.msra.mxu0 0.0
    %3196 = vmatprep.subr.mxu0 0.0
    %3197 = vmatpush1.msra.mxu0 0.0
    %3198 = vmatprep.subr.mxu0 0.0
    %3199 = vmatpush1.msra.mxu0 0.0
    %3200 = vmatprep.subr.mxu0 0.0
    %3201 = vmatpush1.msra.mxu0 0.0
    %3202 = vmatprep.subr.mxu0 0.0
    %3203 = vmatpush1.msra.mxu0 0.0
    %3204 = vmatprep.subr.mxu0 0.0
    %3205 = vmatpush1.msra.mxu0 0.0
    %3206 = vmatprep.subr.mxu0 0.0
    %3207 = vmatpush1.msra.mxu0 0.0
    %3208 = vmatprep.mubr.f32.mxu0 0.0
    %3209 = vmatmul.mubr.f32.gmra.mrb[0].mxu0 %v3143
    %v3210 = vpop.f32.mrb[0].mxu0
    %v3211 = vadd.f32 %v747, %v3210
    %v3212 = vpop.f32.mrb[0].mxu0
    %v3213 = vadd.f32 %v751, %v3212
    %3214 = vdwg.mxu0
    %3215 = vmatprep.subr.mxu0 0.0
    %3216 = vmatpush1.msra.mxu0 %v463
    %3217 = vmatprep.subr.mxu0 0.0
    %3218 = vmatpush1.msra.mxu0 %v466
    %3219 = vmatprep.subr.mxu0 0.0
    %3220 = vmatpush1.msra.mxu0 %v469
    %3221 = vmatprep.subr.mxu0 0.0
    %3222 = vmatpush1.msra.mxu0 %v472
    %3223 = vmatprep.subr.mxu0 0.0
    %3224 = vmatpush1.msra.mxu0 %v475
    %3225 = vmatprep.subr.mxu0 0.0
    %3226 = vmatpush1.msra.mxu0 %v478
    %3227 = vmatprep.subr.mxu0 0.0
    %3228 = vmatpush1.msra.mxu0 %v481
    %3229 = vmatprep.subr.mxu0 0.0
    %3230 = vmatpush1.msra.mxu0 %v484
    %3231 = vmatprep.subr.mxu0 0.0
    %3232 = vmatpush1.msra.mxu0 %v487
    %3233 = vmatprep.subr.mxu0 0.0
    %3234 = vmatpush1.msra.mxu0 %v490
    %3235 = vmatprep.subr.mxu0 0.0
    %3236 = vmatpush1.msra.mxu0 %v493
    %3237 = vmatprep.subr.mxu0 0.0
    %3238 = vmatpush1.msra.mxu0 %v496
    %3239 = vmatprep.subr.mxu0 0.0
    %3240 = vmatpush1.msra.mxu0 %v499
    %3241 = vmatprep.subr.mxu0 0.0
    %3242 = vmatpush1.msra.mxu0 %v502
    %3243 = vmatprep.subr.mxu0 0.0
    %3244 = vmatpush1.msra.mxu0 %v505
    %3245 = vmatprep.subr.mxu0 0.0
    %3246 = vmatpush1.msra.mxu0 %v508
    %3247 = vmatprep.subr.mxu0 0.0
    %3248 = vmatpush1.msra.mxu0 0.0
    %3249 = vmatprep.subr.mxu0 0.0
    %3250 = vmatpush1.msra.mxu0 0.0
    %3251 = vmatprep.subr.mxu0 0.0
    %3252 = vmatpush1.msra.mxu0 0.0
    %3253 = vmatprep.subr.mxu0 0.0
    %3254 = vmatpush1.msra.mxu0 0.0
    %3255 = vmatprep.subr.mxu0 0.0
    %3256 = vmatpush1.msra.mxu0 0.0
    %3257 = vmatprep.subr.mxu0 0.0
    %3258 = vmatpush1.msra.mxu0 0.0
    %3259 = vmatprep.subr.mxu0 0.0
    %3260 = vmatpush1.msra.mxu0 0.0
    %3261 = vmatprep.subr.mxu0 0.0
    %3262 = vmatpush1.msra.mxu0 0.0
    %3263 = vmatprep.subr.mxu0 0.0
    %3264 = vmatpush1.msra.mxu0 0.0
    %3265 = vmatprep.subr.mxu0 0.0
    %3266 = vmatpush1.msra.mxu0 0.0
    %3267 = vmatprep.subr.mxu0 0.0
    %3268 = vmatpush1.msra.mxu0 0.0
    %3269 = vmatprep.subr.mxu0 0.0
    %3270 = vmatpush1.msra.mxu0 0.0
    %3271 = vmatprep.subr.mxu0 0.0
    %3272 = vmatpush1.msra.mxu0 0.0
    %3273 = vmatprep.subr.mxu0 0.0
    %3274 = vmatpush1.msra.mxu0 0.0
    %3275 = vmatprep.subr.mxu0 0.0
    %3276 = vmatpush1.msra.mxu0 0.0
    %3277 = vmatprep.subr.mxu0 0.0
    %3278 = vmatpush1.msra.mxu0 0.0
    %3279 = vmatprep.mubr.f32.mxu0 0.0
    %3280 = vmatmul.mubr.f32.gmra.mrb[0].mxu0 %v3143
    %v3281 = vpop.f32.mrb[0].mxu0
    %v3282 = vadd.f32 %v755, %v3281
    %v3283 = vpop.f32.mrb[0].mxu0
    %3284 = vdwg.mxu0
    %3285 = vmatprep.subr.mxu0 %v511
    %3286 = vmatpush1.msra.mxu0 %v510
    %3287 = vmatprep.subr.mxu0 %v514
    %3288 = vmatpush1.msra.mxu0 %v513
    %3289 = vmatprep.subr.mxu0 %v517
    %3290 = vmatpush1.msra.mxu0 %v516
    %3291 = vmatprep.subr.mxu0 %v520
    %3292 = vmatpush1.msra.mxu0 %v519
    %3293 = vmatprep.subr.mxu0 %v523
    %3294 = vmatpush1.msra.mxu0 %v522
    %3295 = vmatprep.subr.mxu0 %v526
    %3296 = vmatpush1.msra.mxu0 %v525
    %3297 = vmatprep.subr.mxu0 %v529
    %3298 = vmatpush1.msra.mxu0 %v528
    %3299 = vmatprep.subr.mxu0 %v532
    %3300 = vmatpush1.msra.mxu0 %v531
    %3301 = vmatprep.subr.mxu0 %v535
    %3302 = vmatpush1.msra.mxu0 %v534
    %3303 = vmatprep.subr.mxu0 %v538
    %3304 = vmatpush1.msra.mxu0 %v537
    %3305 = vmatprep.subr.mxu0 %v541
    %3306 = vmatpush1.msra.mxu0 %v540
    %3307 = vmatprep.subr.mxu0 %v544
    %3308 = vmatpush1.msra.mxu0 %v543
    %3309 = vmatprep.subr.mxu0 %v547
    %3310 = vmatpush1.msra.mxu0 %v546
    %3311 = vmatprep.subr.mxu0 %v550
    %3312 = vmatpush1.msra.mxu0 %v549
    %3313 = vmatprep.subr.mxu0 %v553
    %3314 = vmatpush1.msra.mxu0 %v552
    %3315 = vmatprep.subr.mxu0 %v556
    %3316 = vmatpush1.msra.mxu0 %v555
    %3317 = vmatprep.subr.mxu0 0.0
    %3318 = vmatpush1.msra.mxu0 0.0
    %3319 = vmatprep.subr.mxu0 0.0
    %3320 = vmatpush1.msra.mxu0 0.0
    %3321 = vmatprep.subr.mxu0 0.0
    %3322 = vmatpush1.msra.mxu0 0.0
    %3323 = vmatprep.subr.mxu0 0.0
    %3324 = vmatpush1.msra.mxu0 0.0
    %3325 = vmatprep.subr.mxu0 0.0
    %3326 = vmatpush1.msra.mxu0 0.0
    %3327 = vmatprep.subr.mxu0 0.0
    %3328 = vmatpush1.msra.mxu0 0.0
    %3329 = vmatprep.subr.mxu0 0.0
    %3330 = vmatpush1.msra.mxu0 0.0
    %3331 = vmatprep.subr.mxu0 0.0
    %3332 = vmatpush1.msra.mxu0 0.0
    %3333 = vmatprep.subr.mxu0 0.0
    %3334 = vmatpush1.msra.mxu0 0.0
    %3335 = vmatprep.subr.mxu0 0.0
    %3336 = vmatpush1.msra.mxu0 0.0
    %3337 = vmatprep.subr.mxu0 0.0
    %3338 = vmatpush1.msra.mxu0 0.0
    %3339 = vmatprep.subr.mxu0 0.0
    %3340 = vmatpush1.msra.mxu0 0.0
    %3341 = vmatprep.subr.mxu0 0.0
    %3342 = vmatpush1.msra.mxu0 0.0
    %3343 = vmatprep.subr.mxu0 0.0
    %3344 = vmatpush1.msra.mxu0 0.0
    %3345 = vmatprep.subr.mxu0 0.0
    %3346 = vmatpush1.msra.mxu0 0.0
    %3347 = vmatprep.subr.mxu0 0.0
    %3348 = vmatpush1.msra.mxu0 0.0
    %3349 = vmatprep.mubr.f32.mxu0 0.0
    %3350 = vmatmul.mubr.f32.gmra.mrb[0].mxu0 %v2972
    %v3351 = vpop.f32.mrb[0].mxu0
    %v3352 = vadd.f32 %v904, %v3351
    %v3353 = vpop.f32.mrb[0].mxu0
    %v3354 = vadd.f32 %v908, %v3353
    %3355 = vdwg.mxu0
    %3356 = vmatprep.subr.mxu0 0.0
    %3357 = vmatpush1.msra.mxu0 %v512
    %3358 = vmatprep.subr.mxu0 0.0
    %3359 = vmatpush1.msra.mxu0 %v515
    %3360 = vmatprep.subr.mxu0 0.0
    %3361 = vmatpush1.msra.mxu0 %v518
    %3362 = vmatprep.subr.mxu0 0.0
    %3363 = vmatpush1.msra.mxu0 %v521
    %3364 = vmatprep.subr.mxu0 0.0
    %3365 = vmatpush1.msra.mxu0 %v524
    %3366 = vmatprep.subr.mxu0 0.0
    %3367 = vmatpush1.msra.mxu0 %v527
    %3368 = vmatprep.subr.mxu0 0.0
    %3369 = vmatpush1.msra.mxu0 %v530
    %3370 = vmatprep.subr.mxu0 0.0
    %3371 = vmatpush1.msra.mxu0 %v533
    %3372 = vmatprep.subr.mxu0 0.0
    %3373 = vmatpush1.msra.mxu0 %v536
    %3374 = vmatprep.subr.mxu0 0.0
    %3375 = vmatpush1.msra.mxu0 %v539
    %3376 = vmatprep.subr.mxu0 0.0
    %3377 = vmatpush1.msra.mxu0 %v542
    %3378 = vmatprep.subr.mxu0 0.0
    %3379 = vmatpush1.msra.mxu0 %v545
    %3380 = vmatprep.subr.mxu0 0.0
    %3381 = vmatpush1.msra.mxu0 %v548
    %3382 = vmatprep.subr.mxu0 0.0
    %3383 = vmatpush1.msra.mxu0 %v551
    %3384 = vmatprep.subr.mxu0 0.0
    %3385 = vmatpush1.msra.mxu0 %v554
    %3386 = vmatprep.subr.mxu0 0.0
    %3387 = vmatpush1.msra.mxu0 %v557
    %3388 = vmatprep.subr.mxu0 0.0
    %3389 = vmatpush1.msra.mxu0 0.0
    %3390 = vmatprep.subr.mxu0 0.0
    %3391 = vmatpush1.msra.mxu0 0.0
    %3392 = vmatprep.subr.mxu0 0.0
    %3393 = vmatpush1.msra.mxu0 0.0
    %3394 = vmatprep.subr.mxu0 0.0
    %3395 = vmatpush1.msra.mxu0 0.0
    %3396 = vmatprep.subr.mxu0 0.0
    %3397 = vmatpush1.msra.mxu0 0.0
    %3398 = vmatprep.subr.mxu0 0.0
    %3399 = vmatpush1.msra.mxu0 0.0
    %3400 = vmatprep.subr.mxu0 0.0
    %3401 = vmatpush1.msra.mxu0 0.0
    %3402 = vmatprep.subr.mxu0 0.0
    %3403 = vmatpush1.msra.mxu0 0.0
    %3404 = vmatprep.subr.mxu0 0.0
    %3405 = vmatpush1.msra.mxu0 0.0
    %3406 = vmatprep.subr.mxu0 0.0
    %3407 = vmatpush1.msra.mxu0 0.0
    %3408 = vmatprep.subr.mxu0 0.0
    %3409 = vmatpush1.msra.mxu0 0.0
    %3410 = vmatprep.subr.mxu0 0.0
    %3411 = vmatpush1.msra.mxu0 0.0
    %3412 = vmatprep.subr.mxu0 0.0
    %3413 = vmatpush1.msra.mxu0 0.0
    %3414 = vmatprep.subr.mxu0 0.0
    %3415 = vmatpush1.msra.mxu0 0.0
    %3416 = vmatprep.subr.mxu0 0.0
    %3417 = vmatpush1.msra.mxu0 0.0
    %3418 = vmatprep.subr.mxu0 0.0
    %3419 = vmatpush1.msra.mxu0 0.0
    %3420 = vmatprep.mubr.f32.mxu0 0.0
    %3421 = vmatmul.mubr.f32.gmra.mrb[0].mxu0 %v2972
    %v3422 = vpop.f32.mrb[0].mxu0
    %v3423 = vadd.f32 %v912, %v3422
    %v3424 = vpop.f32.mrb[0].mxu0
    %3425 = vdwg.mxu0
    %v3426 = vadd.f32 %v3211, %v3352
    %v3427 = vxor.u32 %v3426, 2147483648
    %v3428 = vmul.f32 %v3427, 1.442695
    %v3429 = vpow.pop %v3428
    %v3430 = vadd.f32 %v3429, 1.0
    %v3431 = vrcp.pop %v3430
    %v3432 = vmul.f32 1.0, %v3431
    %v3433 = vadd.f32 %v3213, %v3354
    %v3434 = vxor.u32 %v3433, 2147483648
    %v3435 = vmul.f32 %v3434, 1.442695
    %v3436 = vpow.pop %v3435
    %v3437 = vadd.f32 %v3436, 1.0
    %v3438 = vrcp.pop %v3437
    %v3439 = vmul.f32 1.0, %v3438
    %v3440 = vmul.f32 %v3432, %v3423
    %v3441 = vadd.f32 %v3282, %v3440
    %v3442 = vtanh.pop %v3441
    %v3443 = vsub.f32 1.0, %v3439
    %v3444 = vmul.f32 %v3443, %v3442
    %v3445 = vmul.f32 %v3439, %v2972
    %v3446 = vadd.f32 %v3444, %v3445
    %s3447 = scalar_lea.vmem [#allocation3], 10
    %3448 = vst [vmem:[%s3447] sm:$0x3] %v3446
    %s3449 = scalar_lea.vmem [#allocation2], 36
    %v3450 = vld [vmem:[%s3449] sm:$0x3f]
    %3451 = vmatprep.subr.mxu0 %v413
    %3452 = vmatpush1.msra.mxu0 %v412
    %3453 = vmatprep.subr.mxu0 %v416
    %3454 = vmatpush1.msra.mxu0 %v415
    %3455 = vmatprep.subr.mxu0 %v419
    %3456 = vmatpush1.msra.mxu0 %v418
    %3457 = vmatprep.subr.mxu0 %v422
    %3458 = vmatpush1.msra.mxu0 %v421
    %3459 = vmatprep.subr.mxu0 %v425
    %3460 = vmatpush1.msra.mxu0 %v424
    %3461 = vmatprep.subr.mxu0 %v428
    %3462 = vmatpush1.msra.mxu0 %v427
    %3463 = vmatprep.subr.mxu0 %v431
    %3464 = vmatpush1.msra.mxu0 %v430
    %3465 = vmatprep.subr.mxu0 %v434
    %3466 = vmatpush1.msra.mxu0 %v433
    %3467 = vmatprep.subr.mxu0 %v437
    %3468 = vmatpush1.msra.mxu0 %v436
    %3469 = vmatprep.subr.mxu0 %v440
    %3470 = vmatpush1.msra.mxu0 %v439
    %3471 = vmatprep.subr.mxu0 %v443
    %3472 = vmatpush1.msra.mxu0 %v442
    %3473 = vmatprep.subr.mxu0 %v446
    %3474 = vmatpush1.msra.mxu0 %v445
    %3475 = vmatprep.subr.mxu0 %v449
    %3476 = vmatpush1.msra.mxu0 %v448
    %3477 = vmatprep.subr.mxu0 %v452
    %3478 = vmatpush1.msra.mxu0 %v451
    %3479 = vmatprep.subr.mxu0 %v455
    %3480 = vmatpush1.msra.mxu0 %v454
    %3481 = vmatprep.subr.mxu0 %v458
    %3482 = vmatpush1.msra.mxu0 %v457
    %3483 = vmatprep.subr.mxu0 0.0
    %3484 = vmatpush1.msra.mxu0 0.0
    %3485 = vmatprep.subr.mxu0 0.0
    %3486 = vmatpush1.msra.mxu0 0.0
    %3487 = vmatprep.subr.mxu0 0.0
    %3488 = vmatpush1.msra.mxu0 0.0
    %3489 = vmatprep.subr.mxu0 0.0
    %3490 = vmatpush1.msra.mxu0 0.0
    %3491 = vmatprep.subr.mxu0 0.0
    %3492 = vmatpush1.msra.mxu0 0.0
    %3493 = vmatprep.subr.mxu0 0.0
    %3494 = vmatpush1.msra.mxu0 0.0
    %3495 = vmatprep.subr.mxu0 0.0
    %3496 = vmatpush1.msra.mxu0 0.0
    %3497 = vmatprep.subr.mxu0 0.0
    %3498 = vmatpush1.msra.mxu0 0.0
    %3499 = vmatprep.subr.mxu0 0.0
    %3500 = vmatpush1.msra.mxu0 0.0
    %3501 = vmatprep.subr.mxu0 0.0
    %3502 = vmatpush1.msra.mxu0 0.0
    %3503 = vmatprep.subr.mxu0 0.0
    %3504 = vmatpush1.msra.mxu0 0.0
    %3505 = vmatprep.subr.mxu0 0.0
    %3506 = vmatpush1.msra.mxu0 0.0
    %3507 = vmatprep.subr.mxu0 0.0
    %3508 = vmatpush1.msra.mxu0 0.0
    %3509 = vmatprep.subr.mxu0 0.0
    %3510 = vmatpush1.msra.mxu0 0.0
    %3511 = vmatprep.subr.mxu0 0.0
    %3512 = vmatpush1.msra.mxu0 0.0
    %3513 = vmatprep.subr.mxu0 0.0
    %3514 = vmatpush1.msra.mxu0 0.0
    %3515 = vmatprep.mubr.f32.mxu0 0.0
    %3516 = vmatmul.mubr.f32.gmra.mrb[0].mxu0 %v3143
    %v3517 = vpop.f32.mrb[0].mxu0
    %v3518 = vadd.f32 %v564, %v3517
    %v3519 = vpop.f32.mrb[0].mxu0
    %v3520 = vadd.f32 %v568, %v3519
    %3521 = vdwg.mxu0
    %3522 = vmatprep.subr.mxu0 0.0
    %3523 = vmatpush1.msra.mxu0 %v414
    %3524 = vmatprep.subr.mxu0 0.0
    %3525 = vmatpush1.msra.mxu0 %v417
    %3526 = vmatprep.subr.mxu0 0.0
    %3527 = vmatpush1.msra.mxu0 %v420
    %3528 = vmatprep.subr.mxu0 0.0
    %3529 = vmatpush1.msra.mxu0 %v423
    %3530 = vmatprep.subr.mxu0 0.0
    %3531 = vmatpush1.msra.mxu0 %v426
    %3532 = vmatprep.subr.mxu0 0.0
    %3533 = vmatpush1.msra.mxu0 %v429
    %3534 = vmatprep.subr.mxu0 0.0
    %3535 = vmatpush1.msra.mxu0 %v432
    %3536 = vmatprep.subr.mxu0 0.0
    %3537 = vmatpush1.msra.mxu0 %v435
    %3538 = vmatprep.subr.mxu0 0.0
    %3539 = vmatpush1.msra.mxu0 %v438
    %3540 = vmatprep.subr.mxu0 0.0
    %3541 = vmatpush1.msra.mxu0 %v441
    %3542 = vmatprep.subr.mxu0 0.0
    %3543 = vmatpush1.msra.mxu0 %v444
    %3544 = vmatprep.subr.mxu0 0.0
    %3545 = vmatpush1.msra.mxu0 %v447
    %3546 = vmatprep.subr.mxu0 0.0
    %3547 = vmatpush1.msra.mxu0 %v450
    %3548 = vmatprep.subr.mxu0 0.0
    %3549 = vmatpush1.msra.mxu0 %v453
    %3550 = vmatprep.subr.mxu0 0.0
    %3551 = vmatpush1.msra.mxu0 %v456
    %3552 = vmatprep.subr.mxu0 0.0
    %3553 = vmatpush1.msra.mxu0 %v459
    %3554 = vmatprep.subr.mxu0 0.0
    %3555 = vmatpush1.msra.mxu0 0.0
    %3556 = vmatprep.subr.mxu0 0.0
    %3557 = vmatpush1.msra.mxu0 0.0
    %3558 = vmatprep.subr.mxu0 0.0
    %3559 = vmatpush1.msra.mxu0 0.0
    %3560 = vmatprep.subr.mxu0 0.0
    %3561 = vmatpush1.msra.mxu0 0.0
    %3562 = vmatprep.subr.mxu0 0.0
    %3563 = vmatpush1.msra.mxu0 0.0
    %3564 = vmatprep.subr.mxu0 0.0
    %3565 = vmatpush1.msra.mxu0 0.0
    %3566 = vmatprep.subr.mxu0 0.0
    %3567 = vmatpush1.msra.mxu0 0.0
    %3568 = vmatprep.subr.mxu0 0.0
    %3569 = vmatpush1.msra.mxu0 0.0
    %3570 = vmatprep.subr.mxu0 0.0
    %3571 = vmatpush1.msra.mxu0 0.0
    %3572 = vmatprep.subr.mxu0 0.0
    %3573 = vmatpush1.msra.mxu0 0.0
    %3574 = vmatprep.subr.mxu0 0.0
    %3575 = vmatpush1.msra.mxu0 0.0
    %3576 = vmatprep.subr.mxu0 0.0
    %3577 = vmatpush1.msra.mxu0 0.0
    %3578 = vmatprep.subr.mxu0 0.0
    %3579 = vmatpush1.msra.mxu0 0.0
    %3580 = vmatprep.subr.mxu0 0.0
    %3581 = vmatpush1.msra.mxu0 0.0
    %3582 = vmatprep.subr.mxu0 0.0
    %3583 = vmatpush1.msra.mxu0 0.0
    %3584 = vmatprep.subr.mxu0 0.0
    %3585 = vmatpush1.msra.mxu0 0.0
    %3586 = vmatprep.mubr.f32.mxu0 0.0
    %3587 = vmatmul.mubr.f32.gmra.mrb[0].mxu0 %v3143
    %v3588 = vpop.f32.mrb[0].mxu0
    %v3589 = vadd.f32 %v572, %v3588
    %v3590 = vpop.f32.mrb[0].mxu0
    %3591 = vdwg.mxu0
    %v3592 = vadd.f32 %v3450, %v3518
    %v3593 = vxor.u32 %v3592, 2147483648
    %v3594 = vmul.f32 %v3593, 1.442695
    %v3595 = vpow.pop %v3594
    %v3596 = vadd.f32 %v3595, 1.0
    %v3597 = vrcp.pop %v3596
    %v3598 = vmul.f32 1.0, %v3597
    %v3600 = vrot.slane %v3450, 2
    %v3602 = vadd.f32 %v3600, %v3520
    %v3603 = vxor.u32 %v3602, 2147483648
    %v3604 = vmul.f32 %v3603, 1.442695
    %v3605 = vpow.pop %v3604
    %v3606 = vadd.f32 %v3605, 1.0
    %v3607 = vrcp.pop %v3606
    %v3608 = vmul.f32 1.0, %v3607
    %v3609 = vmul.f32 %v3598, %v3589
    %v3610 = vrot.slane %v3450, 4
    %v3612 = vadd.f32 %v3610, %v3609
    %v3613 = vtanh.pop %v3612
    %v3614 = vsub.f32 1.0, %v3608
    %v3615 = vmul.f32 %v3614, %v3613
    %v3616 = vmul.f32 %v3608, %v3143
    %v3617 = vadd.f32 %v3615, %v3616
    %3618 = vmatprep.subr.mxu0 %v462
    %3619 = vmatpush1.msra.mxu0 %v461
    %3620 = vmatprep.subr.mxu0 %v465
    %3621 = vmatpush1.msra.mxu0 %v464
    %3622 = vmatprep.subr.mxu0 %v468
    %3623 = vmatpush1.msra.mxu0 %v467
    %3624 = vmatprep.subr.mxu0 %v471
    %3625 = vmatpush1.msra.mxu0 %v470
    %3626 = vmatprep.subr.mxu0 %v474
    %3627 = vmatpush1.msra.mxu0 %v473
    %3628 = vmatprep.subr.mxu0 %v477
    %3629 = vmatpush1.msra.mxu0 %v476
    %3630 = vmatprep.subr.mxu0 %v480
    %3631 = vmatpush1.msra.mxu0 %v479
    %3632 = vmatprep.subr.mxu0 %v483
    %3633 = vmatpush1.msra.mxu0 %v482
    %3634 = vmatprep.subr.mxu0 %v486
    %3635 = vmatpush1.msra.mxu0 %v485
    %3636 = vmatprep.subr.mxu0 %v489
    %3637 = vmatpush1.msra.mxu0 %v488
    %3638 = vmatprep.subr.mxu0 %v492
    %3639 = vmatpush1.msra.mxu0 %v491
    %3640 = vmatprep.subr.mxu0 %v495
    %3641 = vmatpush1.msra.mxu0 %v494
    %3642 = vmatprep.subr.mxu0 %v498
    %3643 = vmatpush1.msra.mxu0 %v497
    %3644 = vmatprep.subr.mxu0 %v501
    %3645 = vmatpush1.msra.mxu0 %v500
    %3646 = vmatprep.subr.mxu0 %v504
    %3647 = vmatpush1.msra.mxu0 %v503
    %3648 = vmatprep.subr.mxu0 %v507
    %3649 = vmatpush1.msra.mxu0 %v506
    %3650 = vmatprep.subr.mxu0 0.0
    %3651 = vmatpush1.msra.mxu0 0.0
    %3652 = vmatprep.subr.mxu0 0.0
    %3653 = vmatpush1.msra.mxu0 0.0
    %3654 = vmatprep.subr.mxu0 0.0
    %3655 = vmatpush1.msra.mxu0 0.0
    %3656 = vmatprep.subr.mxu0 0.0
    %3657 = vmatpush1.msra.mxu0 0.0
    %3658 = vmatprep.subr.mxu0 0.0
    %3659 = vmatpush1.msra.mxu0 0.0
    %3660 = vmatprep.subr.mxu0 0.0
    %3661 = vmatpush1.msra.mxu0 0.0
    %3662 = vmatprep.subr.mxu0 0.0
    %3663 = vmatpush1.msra.mxu0 0.0
    %3664 = vmatprep.subr.mxu0 0.0
    %3665 = vmatpush1.msra.mxu0 0.0
    %3666 = vmatprep.subr.mxu0 0.0
    %3667 = vmatpush1.msra.mxu0 0.0
    %3668 = vmatprep.subr.mxu0 0.0
    %3669 = vmatpush1.msra.mxu0 0.0
    %3670 = vmatprep.subr.mxu0 0.0
    %3671 = vmatpush1.msra.mxu0 0.0
    %3672 = vmatprep.subr.mxu0 0.0
    %3673 = vmatpush1.msra.mxu0 0.0
    %3674 = vmatprep.subr.mxu0 0.0
    %3675 = vmatpush1.msra.mxu0 0.0
    %3676 = vmatprep.subr.mxu0 0.0
    %3677 = vmatpush1.msra.mxu0 0.0
    %3678 = vmatprep.subr.mxu0 0.0
    %3679 = vmatpush1.msra.mxu0 0.0
    %3680 = vmatprep.subr.mxu0 0.0
    %3681 = vmatpush1.msra.mxu0 0.0
    %3682 = vmatprep.mubr.f32.mxu0 0.0
    %3683 = vmatmul.mubr.f32.gmra.mrb[0].mxu0 %v3617
    %v3684 = vpop.f32.mrb[0].mxu0
    %v3685 = vadd.f32 %v747, %v3684
    %v3686 = vpop.f32.mrb[0].mxu0
    %v3687 = vadd.f32 %v751, %v3686
    %3688 = vdwg.mxu0
    %3689 = vmatprep.subr.mxu0 0.0
    %3690 = vmatpush1.msra.mxu0 %v463
    %3691 = vmatprep.subr.mxu0 0.0
    %3692 = vmatpush1.msra.mxu0 %v466
    %3693 = vmatprep.subr.mxu0 0.0
    %3694 = vmatpush1.msra.mxu0 %v469
    %3695 = vmatprep.subr.mxu0 0.0
    %3696 = vmatpush1.msra.mxu0 %v472
    %3697 = vmatprep.subr.mxu0 0.0
    %3698 = vmatpush1.msra.mxu0 %v475
    %3699 = vmatprep.subr.mxu0 0.0
    %3700 = vmatpush1.msra.mxu0 %v478
    %3701 = vmatprep.subr.mxu0 0.0
    %3702 = vmatpush1.msra.mxu0 %v481
    %3703 = vmatprep.subr.mxu0 0.0
    %3704 = vmatpush1.msra.mxu0 %v484
    %3705 = vmatprep.subr.mxu0 0.0
    %3706 = vmatpush1.msra.mxu0 %v487
    %3707 = vmatprep.subr.mxu0 0.0
    %3708 = vmatpush1.msra.mxu0 %v490
    %3709 = vmatprep.subr.mxu0 0.0
    %3710 = vmatpush1.msra.mxu0 %v493
    %3711 = vmatprep.subr.mxu0 0.0
    %3712 = vmatpush1.msra.mxu0 %v496
    %3713 = vmatprep.subr.mxu0 0.0
    %3714 = vmatpush1.msra.mxu0 %v499
    %3715 = vmatprep.subr.mxu0 0.0
    %3716 = vmatpush1.msra.mxu0 %v502
    %3717 = vmatprep.subr.mxu0 0.0
    %3718 = vmatpush1.msra.mxu0 %v505
    %3719 = vmatprep.subr.mxu0 0.0
    %3720 = vmatpush1.msra.mxu0 %v508
    %3721 = vmatprep.subr.mxu0 0.0
    %3722 = vmatpush1.msra.mxu0 0.0
    %3723 = vmatprep.subr.mxu0 0.0
    %3724 = vmatpush1.msra.mxu0 0.0
    %3725 = vmatprep.subr.mxu0 0.0
    %3726 = vmatpush1.msra.mxu0 0.0
    %3727 = vmatprep.subr.mxu0 0.0
    %3728 = vmatpush1.msra.mxu0 0.0
    %3729 = vmatprep.subr.mxu0 0.0
    %3730 = vmatpush1.msra.mxu0 0.0
    %3731 = vmatprep.subr.mxu0 0.0
    %3732 = vmatpush1.msra.mxu0 0.0
    %3733 = vmatprep.subr.mxu0 0.0
    %3734 = vmatpush1.msra.mxu0 0.0
    %3735 = vmatprep.subr.mxu0 0.0
    %3736 = vmatpush1.msra.mxu0 0.0
    %3737 = vmatprep.subr.mxu0 0.0
    %3738 = vmatpush1.msra.mxu0 0.0
    %3739 = vmatprep.subr.mxu0 0.0
    %3740 = vmatpush1.msra.mxu0 0.0
    %3741 = vmatprep.subr.mxu0 0.0
    %3742 = vmatpush1.msra.mxu0 0.0
    %3743 = vmatprep.subr.mxu0 0.0
    %3744 = vmatpush1.msra.mxu0 0.0
    %3745 = vmatprep.subr.mxu0 0.0
    %3746 = vmatpush1.msra.mxu0 0.0
    %3747 = vmatprep.subr.mxu0 0.0
    %3748 = vmatpush1.msra.mxu0 0.0
    %3749 = vmatprep.subr.mxu0 0.0
    %3750 = vmatpush1.msra.mxu0 0.0
    %3751 = vmatprep.subr.mxu0 0.0
    %3752 = vmatpush1.msra.mxu0 0.0
    %3753 = vmatprep.mubr.f32.mxu0 0.0
    %3754 = vmatmul.mubr.f32.gmra.mrb[0].mxu0 %v3617
    %v3755 = vpop.f32.mrb[0].mxu0
    %v3756 = vadd.f32 %v755, %v3755
    %v3757 = vpop.f32.mrb[0].mxu0
    %3758 = vdwg.mxu0
    %3759 = vmatprep.subr.mxu0 %v511
    %3760 = vmatpush1.msra.mxu0 %v510
    %3761 = vmatprep.subr.mxu0 %v514
    %3762 = vmatpush1.msra.mxu0 %v513
    %3763 = vmatprep.subr.mxu0 %v517
    %3764 = vmatpush1.msra.mxu0 %v516
    %3765 = vmatprep.subr.mxu0 %v520
    %3766 = vmatpush1.msra.mxu0 %v519
    %3767 = vmatprep.subr.mxu0 %v523
    %3768 = vmatpush1.msra.mxu0 %v522
    %3769 = vmatprep.subr.mxu0 %v526
    %3770 = vmatpush1.msra.mxu0 %v525
    %3771 = vmatprep.subr.mxu0 %v529
    %3772 = vmatpush1.msra.mxu0 %v528
    %3773 = vmatprep.subr.mxu0 %v532
    %3774 = vmatpush1.msra.mxu0 %v531
    %3775 = vmatprep.subr.mxu0 %v535
    %3776 = vmatpush1.msra.mxu0 %v534
    %3777 = vmatprep.subr.mxu0 %v538
    %3778 = vmatpush1.msra.mxu0 %v537
    %3779 = vmatprep.subr.mxu0 %v541
    %3780 = vmatpush1.msra.mxu0 %v540
    %3781 = vmatprep.subr.mxu0 %v544
    %3782 = vmatpush1.msra.mxu0 %v543
    %3783 = vmatprep.subr.mxu0 %v547
    %3784 = vmatpush1.msra.mxu0 %v546
    %3785 = vmatprep.subr.mxu0 %v550
    %3786 = vmatpush1.msra.mxu0 %v549
    %3787 = vmatprep.subr.mxu0 %v553
    %3788 = vmatpush1.msra.mxu0 %v552
    %3789 = vmatprep.subr.mxu0 %v556
    %3790 = vmatpush1.msra.mxu0 %v555
    %3791 = vmatprep.subr.mxu0 0.0
    %3792 = vmatpush1.msra.mxu0 0.0
    %3793 = vmatprep.subr.mxu0 0.0
    %3794 = vmatpush1.msra.mxu0 0.0
    %3795 = vmatprep.subr.mxu0 0.0
    %3796 = vmatpush1.msra.mxu0 0.0
    %3797 = vmatprep.subr.mxu0 0.0
    %3798 = vmatpush1.msra.mxu0 0.0
    %3799 = vmatprep.subr.mxu0 0.0
    %3800 = vmatpush1.msra.mxu0 0.0
    %3801 = vmatprep.subr.mxu0 0.0
    %3802 = vmatpush1.msra.mxu0 0.0
    %3803 = vmatprep.subr.mxu0 0.0
    %3804 = vmatpush1.msra.mxu0 0.0
    %3805 = vmatprep.subr.mxu0 0.0
    %3806 = vmatpush1.msra.mxu0 0.0
    %3807 = vmatprep.subr.mxu0 0.0
    %3808 = vmatpush1.msra.mxu0 0.0
    %3809 = vmatprep.subr.mxu0 0.0
    %3810 = vmatpush1.msra.mxu0 0.0
    %3811 = vmatprep.subr.mxu0 0.0
    %3812 = vmatpush1.msra.mxu0 0.0
    %3813 = vmatprep.subr.mxu0 0.0
    %3814 = vmatpush1.msra.mxu0 0.0
    %3815 = vmatprep.subr.mxu0 0.0
    %3816 = vmatpush1.msra.mxu0 0.0
    %3817 = vmatprep.subr.mxu0 0.0
    %3818 = vmatpush1.msra.mxu0 0.0
    %3819 = vmatprep.subr.mxu0 0.0
    %3820 = vmatpush1.msra.mxu0 0.0
    %3821 = vmatprep.subr.mxu0 0.0
    %3822 = vmatpush1.msra.mxu0 0.0
    %3823 = vmatprep.mubr.f32.mxu0 0.0
    %3824 = vmatmul.mubr.f32.gmra.mrb[0].mxu0 %v3446
    %v3825 = vpop.f32.mrb[0].mxu0
    %v3826 = vadd.f32 %v904, %v3825
    %v3827 = vpop.f32.mrb[0].mxu0
    %v3828 = vadd.f32 %v908, %v3827
    %3829 = vdwg.mxu0
    %3830 = vmatprep.subr.mxu0 0.0
    %3831 = vmatpush1.msra.mxu0 %v512
    %3832 = vmatprep.subr.mxu0 0.0
    %3833 = vmatpush1.msra.mxu0 %v515
    %3834 = vmatprep.subr.mxu0 0.0
    %3835 = vmatpush1.msra.mxu0 %v518
    %3836 = vmatprep.subr.mxu0 0.0
    %3837 = vmatpush1.msra.mxu0 %v521
    %3838 = vmatprep.subr.mxu0 0.0
    %3839 = vmatpush1.msra.mxu0 %v524
    %3840 = vmatprep.subr.mxu0 0.0
    %3841 = vmatpush1.msra.mxu0 %v527
    %3842 = vmatprep.subr.mxu0 0.0
    %3843 = vmatpush1.msra.mxu0 %v530
    %3844 = vmatprep.subr.mxu0 0.0
    %3845 = vmatpush1.msra.mxu0 %v533
    %3846 = vmatprep.subr.mxu0 0.0
    %3847 = vmatpush1.msra.mxu0 %v536
    %3848 = vmatprep.subr.mxu0 0.0
    %3849 = vmatpush1.msra.mxu0 %v539
    %3850 = vmatprep.subr.mxu0 0.0
    %3851 = vmatpush1.msra.mxu0 %v542
    %3852 = vmatprep.subr.mxu0 0.0
    %3853 = vmatpush1.msra.mxu0 %v545
    %3854 = vmatprep.subr.mxu0 0.0
    %3855 = vmatpush1.msra.mxu0 %v548
    %3856 = vmatprep.subr.mxu0 0.0
    %3857 = vmatpush1.msra.mxu0 %v551
    %3858 = vmatprep.subr.mxu0 0.0
    %3859 = vmatpush1.msra.mxu0 %v554
    %3860 = vmatprep.subr.mxu0 0.0
    %3861 = vmatpush1.msra.mxu0 %v557
    %3862 = vmatprep.subr.mxu0 0.0
    %3863 = vmatpush1.msra.mxu0 0.0
    %3864 = vmatprep.subr.mxu0 0.0
    %3865 = vmatpush1.msra.mxu0 0.0
    %3866 = vmatprep.subr.mxu0 0.0
    %3867 = vmatpush1.msra.mxu0 0.0
    %3868 = vmatprep.subr.mxu0 0.0
    %3869 = vmatpush1.msra.mxu0 0.0
    %3870 = vmatprep.subr.mxu0 0.0
    %3871 = vmatpush1.msra.mxu0 0.0
    %3872 = vmatprep.subr.mxu0 0.0
    %3873 = vmatpush1.msra.mxu0 0.0
    %3874 = vmatprep.subr.mxu0 0.0
    %3875 = vmatpush1.msra.mxu0 0.0
    %3876 = vmatprep.subr.mxu0 0.0
    %3877 = vmatpush1.msra.mxu0 0.0
    %3878 = vmatprep.subr.mxu0 0.0
    %3879 = vmatpush1.msra.mxu0 0.0
    %3880 = vmatprep.subr.mxu0 0.0
    %3881 = vmatpush1.msra.mxu0 0.0
    %3882 = vmatprep.subr.mxu0 0.0
    %3883 = vmatpush1.msra.mxu0 0.0
    %3884 = vmatprep.subr.mxu0 0.0
    %3885 = vmatpush1.msra.mxu0 0.0
    %3886 = vmatprep.subr.mxu0 0.0
    %3887 = vmatpush1.msra.mxu0 0.0
    %3888 = vmatprep.subr.mxu0 0.0
    %3889 = vmatpush1.msra.mxu0 0.0
    %3890 = vmatprep.subr.mxu0 0.0
    %3891 = vmatpush1.msra.mxu0 0.0
    %3892 = vmatprep.subr.mxu0 0.0
    %3893 = vmatpush1.msra.mxu0 0.0
    %3894 = vmatprep.mubr.f32.mxu0 0.0
    %3895 = vmatmul.mubr.f32.gmra.mrb[0].mxu0 %v3446
    %v3896 = vpop.f32.mrb[0].mxu0
    %v3897 = vadd.f32 %v912, %v3896
    %v3898 = vpop.f32.mrb[0].mxu0
    %3899 = vdwg.mxu0
    %v3900 = vadd.f32 %v3685, %v3826
    %v3901 = vxor.u32 %v3900, 2147483648
    %v3902 = vmul.f32 %v3901, 1.442695
    %v3903 = vpow.pop %v3902
    %v3904 = vadd.f32 %v3903, 1.0
    %v3905 = vrcp.pop %v3904
    %v3906 = vmul.f32 1.0, %v3905
    %v3907 = vadd.f32 %v3687, %v3828
    %v3908 = vxor.u32 %v3907, 2147483648
    %v3909 = vmul.f32 %v3908, 1.442695
    %v3910 = vpow.pop %v3909
    %v3911 = vadd.f32 %v3910, 1.0
    %v3912 = vrcp.pop %v3911
    %v3913 = vmul.f32 1.0, %v3912
    %v3914 = vmul.f32 %v3906, %v3897
    %v3915 = vadd.f32 %v3756, %v3914
    %v3916 = vtanh.pop %v3915
    %v3917 = vsub.f32 1.0, %v3913
    %v3918 = vmul.f32 %v3917, %v3916
    %v3919 = vmul.f32 %v3913, %v3446
    %v3920 = vadd.f32 %v3918, %v3919
    %s3921 = scalar_lea.vmem [#allocation3], 12
    %3922 = vst [vmem:[%s3921] sm:$0x3] %v3920
    %s3923 = scalar_lea.vmem [#allocation2], 42
    %v3924 = vld [vmem:[%s3923] sm:$0x3f]
    %3925 = vmatprep.subr.mxu0 %v413
    %3926 = vmatpush1.msra.mxu0 %v412
    %3927 = vmatprep.subr.mxu0 %v416
    %3928 = vmatpush1.msra.mxu0 %v415
    %3929 = vmatprep.subr.mxu0 %v419
    %3930 = vmatpush1.msra.mxu0 %v418
    %3931 = vmatprep.subr.mxu0 %v422
    %3932 = vmatpush1.msra.mxu0 %v421
    %3933 = vmatprep.subr.mxu0 %v425
    %3934 = vmatpush1.msra.mxu0 %v424
    %3935 = vmatprep.subr.mxu0 %v428
    %3936 = vmatpush1.msra.mxu0 %v427
    %3937 = vmatprep.subr.mxu0 %v431
    %3938 = vmatpush1.msra.mxu0 %v430
    %3939 = vmatprep.subr.mxu0 %v434
    %3940 = vmatpush1.msra.mxu0 %v433
    %3941 = vmatprep.subr.mxu0 %v437
    %3942 = vmatpush1.msra.mxu0 %v436
    %3943 = vmatprep.subr.mxu0 %v440
    %3944 = vmatpush1.msra.mxu0 %v439
    %3945 = vmatprep.subr.mxu0 %v443
    %3946 = vmatpush1.msra.mxu0 %v442
    %3947 = vmatprep.subr.mxu0 %v446
    %3948 = vmatpush1.msra.mxu0 %v445
    %3949 = vmatprep.subr.mxu0 %v449
    %3950 = vmatpush1.msra.mxu0 %v448
    %3951 = vmatprep.subr.mxu0 %v452
    %3952 = vmatpush1.msra.mxu0 %v451
    %3953 = vmatprep.subr.mxu0 %v455
    %3954 = vmatpush1.msra.mxu0 %v454
    %3955 = vmatprep.subr.mxu0 %v458
    %3956 = vmatpush1.msra.mxu0 %v457
    %3957 = vmatprep.subr.mxu0 0.0
    %3958 = vmatpush1.msra.mxu0 0.0
    %3959 = vmatprep.subr.mxu0 0.0
    %3960 = vmatpush1.msra.mxu0 0.0
    %3961 = vmatprep.subr.mxu0 0.0
    %3962 = vmatpush1.msra.mxu0 0.0
    %3963 = vmatprep.subr.mxu0 0.0
    %3964 = vmatpush1.msra.mxu0 0.0
    %3965 = vmatprep.subr.mxu0 0.0
    %3966 = vmatpush1.msra.mxu0 0.0
    %3967 = vmatprep.subr.mxu0 0.0
    %3968 = vmatpush1.msra.mxu0 0.0
    %3969 = vmatprep.subr.mxu0 0.0
    %3970 = vmatpush1.msra.mxu0 0.0
    %3971 = vmatprep.subr.mxu0 0.0
    %3972 = vmatpush1.msra.mxu0 0.0
    %3973 = vmatprep.subr.mxu0 0.0
    %3974 = vmatpush1.msra.mxu0 0.0
    %3975 = vmatprep.subr.mxu0 0.0
    %3976 = vmatpush1.msra.mxu0 0.0
    %3977 = vmatprep.subr.mxu0 0.0
    %3978 = vmatpush1.msra.mxu0 0.0
    %3979 = vmatprep.subr.mxu0 0.0
    %3980 = vmatpush1.msra.mxu0 0.0
    %3981 = vmatprep.subr.mxu0 0.0
    %3982 = vmatpush1.msra.mxu0 0.0
    %3983 = vmatprep.subr.mxu0 0.0
    %3984 = vmatpush1.msra.mxu0 0.0
    %3985 = vmatprep.subr.mxu0 0.0
    %3986 = vmatpush1.msra.mxu0 0.0
    %3987 = vmatprep.subr.mxu0 0.0
    %3988 = vmatpush1.msra.mxu0 0.0
    %3989 = vmatprep.mubr.f32.mxu0 0.0
    %3990 = vmatmul.mubr.f32.gmra.mrb[0].mxu0 %v3617
    %v3991 = vpop.f32.mrb[0].mxu0
    %v3992 = vadd.f32 %v564, %v3991
    %v3993 = vpop.f32.mrb[0].mxu0
    %v3994 = vadd.f32 %v568, %v3993
    %3995 = vdwg.mxu0
    %3996 = vmatprep.subr.mxu0 0.0
    %3997 = vmatpush1.msra.mxu0 %v414
    %3998 = vmatprep.subr.mxu0 0.0
    %3999 = vmatpush1.msra.mxu0 %v417
    %4000 = vmatprep.subr.mxu0 0.0
    %4001 = vmatpush1.msra.mxu0 %v420
    %4002 = vmatprep.subr.mxu0 0.0
    %4003 = vmatpush1.msra.mxu0 %v423
    %4004 = vmatprep.subr.mxu0 0.0
    %4005 = vmatpush1.msra.mxu0 %v426
    %4006 = vmatprep.subr.mxu0 0.0
    %4007 = vmatpush1.msra.mxu0 %v429
    %4008 = vmatprep.subr.mxu0 0.0
    %4009 = vmatpush1.msra.mxu0 %v432
    %4010 = vmatprep.subr.mxu0 0.0
    %4011 = vmatpush1.msra.mxu0 %v435
    %4012 = vmatprep.subr.mxu0 0.0
    %4013 = vmatpush1.msra.mxu0 %v438
    %4014 = vmatprep.subr.mxu0 0.0
    %4015 = vmatpush1.msra.mxu0 %v441
    %4016 = vmatprep.subr.mxu0 0.0
    %4017 = vmatpush1.msra.mxu0 %v444
    %4018 = vmatprep.subr.mxu0 0.0
    %4019 = vmatpush1.msra.mxu0 %v447
    %4020 = vmatprep.subr.mxu0 0.0
    %4021 = vmatpush1.msra.mxu0 %v450
    %4022 = vmatprep.subr.mxu0 0.0
    %4023 = vmatpush1.msra.mxu0 %v453
    %4024 = vmatprep.subr.mxu0 0.0
    %4025 = vmatpush1.msra.mxu0 %v456
    %4026 = vmatprep.subr.mxu0 0.0
    %4027 = vmatpush1.msra.mxu0 %v459
    %4028 = vmatprep.subr.mxu0 0.0
    %4029 = vmatpush1.msra.mxu0 0.0
    %4030 = vmatprep.subr.mxu0 0.0
    %4031 = vmatpush1.msra.mxu0 0.0
    %4032 = vmatprep.subr.mxu0 0.0
    %4033 = vmatpush1.msra.mxu0 0.0
    %4034 = vmatprep.subr.mxu0 0.0
    %4035 = vmatpush1.msra.mxu0 0.0
    %4036 = vmatprep.subr.mxu0 0.0
    %4037 = vmatpush1.msra.mxu0 0.0
    %4038 = vmatprep.subr.mxu0 0.0
    %4039 = vmatpush1.msra.mxu0 0.0
    %4040 = vmatprep.subr.mxu0 0.0
    %4041 = vmatpush1.msra.mxu0 0.0
    %4042 = vmatprep.subr.mxu0 0.0
    %4043 = vmatpush1.msra.mxu0 0.0
    %4044 = vmatprep.subr.mxu0 0.0
    %4045 = vmatpush1.msra.mxu0 0.0
    %4046 = vmatprep.subr.mxu0 0.0
    %4047 = vmatpush1.msra.mxu0 0.0
    %4048 = vmatprep.subr.mxu0 0.0
    %4049 = vmatpush1.msra.mxu0 0.0
    %4050 = vmatprep.subr.mxu0 0.0
    %4051 = vmatpush1.msra.mxu0 0.0
    %4052 = vmatprep.subr.mxu0 0.0
    %4053 = vmatpush1.msra.mxu0 0.0
    %4054 = vmatprep.subr.mxu0 0.0
    %4055 = vmatpush1.msra.mxu0 0.0
    %4056 = vmatprep.subr.mxu0 0.0
    %4057 = vmatpush1.msra.mxu0 0.0
    %4058 = vmatprep.subr.mxu0 0.0
    %4059 = vmatpush1.msra.mxu0 0.0
    %4060 = vmatprep.mubr.f32.mxu0 0.0
    %4061 = vmatmul.mubr.f32.gmra.mrb[0].mxu0 %v3617
    %v4062 = vpop.f32.mrb[0].mxu0
    %v4063 = vadd.f32 %v572, %v4062
    %v4064 = vpop.f32.mrb[0].mxu0
    %4065 = vdwg.mxu0
    %v4066 = vadd.f32 %v3924, %v3992
    %v4067 = vxor.u32 %v4066, 2147483648
    %v4068 = vmul.f32 %v4067, 1.442695
    %v4069 = vpow.pop %v4068
    %v4070 = vadd.f32 %v4069, 1.0
    %v4071 = vrcp.pop %v4070
    %v4072 = vmul.f32 1.0, %v4071
    %v4074 = vrot.slane %v3924, 2
    %v4076 = vadd.f32 %v4074, %v3994
    %v4077 = vxor.u32 %v4076, 2147483648
    %v4078 = vmul.f32 %v4077, 1.442695
    %v4079 = vpow.pop %v4078
    %v4080 = vadd.f32 %v4079, 1.0
    %v4081 = vrcp.pop %v4080
    %v4082 = vmul.f32 1.0, %v4081
    %v4083 = vmul.f32 %v4072, %v4063
    %v4084 = vrot.slane %v3924, 4
    %v4086 = vadd.f32 %v4084, %v4083
    %v4087 = vtanh.pop %v4086
    %v4088 = vsub.f32 1.0, %v4082
    %v4089 = vmul.f32 %v4088, %v4087
    %v4090 = vmul.f32 %v4082, %v3617
    %v4091 = vadd.f32 %v4089, %v4090
    %4092 = vmatprep.subr.mxu0 %v462
    %4093 = vmatpush1.msra.mxu0 %v461
    %4094 = vmatprep.subr.mxu0 %v465
    %4095 = vmatpush1.msra.mxu0 %v464
    %4096 = vmatprep.subr.mxu0 %v468
    %4097 = vmatpush1.msra.mxu0 %v467
    %4098 = vmatprep.subr.mxu0 %v471
    %4099 = vmatpush1.msra.mxu0 %v470
    %4100 = vmatprep.subr.mxu0 %v474
    %4101 = vmatpush1.msra.mxu0 %v473
    %4102 = vmatprep.subr.mxu0 %v477
    %4103 = vmatpush1.msra.mxu0 %v476
    %4104 = vmatprep.subr.mxu0 %v480
    %4105 = vmatpush1.msra.mxu0 %v479
    %4106 = vmatprep.subr.mxu0 %v483
    %4107 = vmatpush1.msra.mxu0 %v482
    %4108 = vmatprep.subr.mxu0 %v486
    %4109 = vmatpush1.msra.mxu0 %v485
    %4110 = vmatprep.subr.mxu0 %v489
    %4111 = vmatpush1.msra.mxu0 %v488
    %4112 = vmatprep.subr.mxu0 %v492
    %4113 = vmatpush1.msra.mxu0 %v491
    %4114 = vmatprep.subr.mxu0 %v495
    %4115 = vmatpush1.msra.mxu0 %v494
    %4116 = vmatprep.subr.mxu0 %v498
    %4117 = vmatpush1.msra.mxu0 %v497
    %4118 = vmatprep.subr.mxu0 %v501
    %4119 = vmatpush1.msra.mxu0 %v500
    %4120 = vmatprep.subr.mxu0 %v504
    %4121 = vmatpush1.msra.mxu0 %v503
    %4122 = vmatprep.subr.mxu0 %v507
    %4123 = vmatpush1.msra.mxu0 %v506
    %4124 = vmatprep.subr.mxu0 0.0
    %4125 = vmatpush1.msra.mxu0 0.0
    %4126 = vmatprep.subr.mxu0 0.0
    %4127 = vmatpush1.msra.mxu0 0.0
    %4128 = vmatprep.subr.mxu0 0.0
    %4129 = vmatpush1.msra.mxu0 0.0
    %4130 = vmatprep.subr.mxu0 0.0
    %4131 = vmatpush1.msra.mxu0 0.0
    %4132 = vmatprep.subr.mxu0 0.0
    %4133 = vmatpush1.msra.mxu0 0.0
    %4134 = vmatprep.subr.mxu0 0.0
    %4135 = vmatpush1.msra.mxu0 0.0
    %4136 = vmatprep.subr.mxu0 0.0
    %4137 = vmatpush1.msra.mxu0 0.0
    %4138 = vmatprep.subr.mxu0 0.0
    %4139 = vmatpush1.msra.mxu0 0.0
    %4140 = vmatprep.subr.mxu0 0.0
    %4141 = vmatpush1.msra.mxu0 0.0
    %4142 = vmatprep.subr.mxu0 0.0
    %4143 = vmatpush1.msra.mxu0 0.0
    %4144 = vmatprep.subr.mxu0 0.0
    %4145 = vmatpush1.msra.mxu0 0.0
    %4146 = vmatprep.subr.mxu0 0.0
    %4147 = vmatpush1.msra.mxu0 0.0
    %4148 = vmatprep.subr.mxu0 0.0
    %4149 = vmatpush1.msra.mxu0 0.0
    %4150 = vmatprep.subr.mxu0 0.0
    %4151 = vmatpush1.msra.mxu0 0.0
    %4152 = vmatprep.subr.mxu0 0.0
    %4153 = vmatpush1.msra.mxu0 0.0
    %4154 = vmatprep.subr.mxu0 0.0
    %4155 = vmatpush1.msra.mxu0 0.0
    %4156 = vmatprep.mubr.f32.mxu0 0.0
    %4157 = vmatmul.mubr.f32.gmra.mrb[0].mxu0 %v4091
    %v4158 = vpop.f32.mrb[0].mxu0
    %v4159 = vadd.f32 %v747, %v4158
    %v4160 = vpop.f32.mrb[0].mxu0
    %v4161 = vadd.f32 %v751, %v4160
    %4162 = vdwg.mxu0
    %4163 = vmatprep.subr.mxu0 0.0
    %4164 = vmatpush1.msra.mxu0 %v463
    %4165 = vmatprep.subr.mxu0 0.0
    %4166 = vmatpush1.msra.mxu0 %v466
    %4167 = vmatprep.subr.mxu0 0.0
    %4168 = vmatpush1.msra.mxu0 %v469
    %4169 = vmatprep.subr.mxu0 0.0
    %4170 = vmatpush1.msra.mxu0 %v472
    %4171 = vmatprep.subr.mxu0 0.0
    %4172 = vmatpush1.msra.mxu0 %v475
    %4173 = vmatprep.subr.mxu0 0.0
    %4174 = vmatpush1.msra.mxu0 %v478
    %4175 = vmatprep.subr.mxu0 0.0
    %4176 = vmatpush1.msra.mxu0 %v481
    %4177 = vmatprep.subr.mxu0 0.0
    %4178 = vmatpush1.msra.mxu0 %v484
    %4179 = vmatprep.subr.mxu0 0.0
    %4180 = vmatpush1.msra.mxu0 %v487
    %4181 = vmatprep.subr.mxu0 0.0
    %4182 = vmatpush1.msra.mxu0 %v490
    %4183 = vmatprep.subr.mxu0 0.0
    %4184 = vmatpush1.msra.mxu0 %v493
    %4185 = vmatprep.subr.mxu0 0.0
    %4186 = vmatpush1.msra.mxu0 %v496
    %4187 = vmatprep.subr.mxu0 0.0
    %4188 = vmatpush1.msra.mxu0 %v499
    %4189 = vmatprep.subr.mxu0 0.0
    %4190 = vmatpush1.msra.mxu0 %v502
    %4191 = vmatprep.subr.mxu0 0.0
    %4192 = vmatpush1.msra.mxu0 %v505
    %4193 = vmatprep.subr.mxu0 0.0
    %4194 = vmatpush1.msra.mxu0 %v508
    %4195 = vmatprep.subr.mxu0 0.0
    %4196 = vmatpush1.msra.mxu0 0.0
    %4197 = vmatprep.subr.mxu0 0.0
    %4198 = vmatpush1.msra.mxu0 0.0
    %4199 = vmatprep.subr.mxu0 0.0
    %4200 = vmatpush1.msra.mxu0 0.0
    %4201 = vmatprep.subr.mxu0 0.0
    %4202 = vmatpush1.msra.mxu0 0.0
    %4203 = vmatprep.subr.mxu0 0.0
    %4204 = vmatpush1.msra.mxu0 0.0
    %4205 = vmatprep.subr.mxu0 0.0
    %4206 = vmatpush1.msra.mxu0 0.0
    %4207 = vmatprep.subr.mxu0 0.0
    %4208 = vmatpush1.msra.mxu0 0.0
    %4209 = vmatprep.subr.mxu0 0.0
    %4210 = vmatpush1.msra.mxu0 0.0
    %4211 = vmatprep.subr.mxu0 0.0
    %4212 = vmatpush1.msra.mxu0 0.0
    %4213 = vmatprep.subr.mxu0 0.0
    %4214 = vmatpush1.msra.mxu0 0.0
    %4215 = vmatprep.subr.mxu0 0.0
    %4216 = vmatpush1.msra.mxu0 0.0
    %4217 = vmatprep.subr.mxu0 0.0
    %4218 = vmatpush1.msra.mxu0 0.0
    %4219 = vmatprep.subr.mxu0 0.0
    %4220 = vmatpush1.msra.mxu0 0.0
    %4221 = vmatprep.subr.mxu0 0.0
    %4222 = vmatpush1.msra.mxu0 0.0
    %4223 = vmatprep.subr.mxu0 0.0
    %4224 = vmatpush1.msra.mxu0 0.0
    %4225 = vmatprep.subr.mxu0 0.0
    %4226 = vmatpush1.msra.mxu0 0.0
    %4227 = vmatprep.mubr.f32.mxu0 0.0
    %4228 = vmatmul.mubr.f32.gmra.mrb[0].mxu0 %v4091
    %v4229 = vpop.f32.mrb[0].mxu0
    %v4230 = vadd.f32 %v755, %v4229
    %v4231 = vpop.f32.mrb[0].mxu0
    %4232 = vdwg.mxu0
    %4233 = vmatprep.subr.mxu0 %v511
    %4234 = vmatpush1.msra.mxu0 %v510
    %4235 = vmatprep.subr.mxu0 %v514
    %4236 = vmatpush1.msra.mxu0 %v513
    %4237 = vmatprep.subr.mxu0 %v517
    %4238 = vmatpush1.msra.mxu0 %v516
    %4239 = vmatprep.subr.mxu0 %v520
    %4240 = vmatpush1.msra.mxu0 %v519
    %4241 = vmatprep.subr.mxu0 %v523
    %4242 = vmatpush1.msra.mxu0 %v522
    %4243 = vmatprep.subr.mxu0 %v526
    %4244 = vmatpush1.msra.mxu0 %v525
    %4245 = vmatprep.subr.mxu0 %v529
    %4246 = vmatpush1.msra.mxu0 %v528
    %4247 = vmatprep.subr.mxu0 %v532
    %4248 = vmatpush1.msra.mxu0 %v531
    %4249 = vmatprep.subr.mxu0 %v535
    %4250 = vmatpush1.msra.mxu0 %v534
    %4251 = vmatprep.subr.mxu0 %v538
    %4252 = vmatpush1.msra.mxu0 %v537
    %4253 = vmatprep.subr.mxu0 %v541
    %4254 = vmatpush1.msra.mxu0 %v540
    %4255 = vmatprep.subr.mxu0 %v544
    %4256 = vmatpush1.msra.mxu0 %v543
    %4257 = vmatprep.subr.mxu0 %v547
    %4258 = vmatpush1.msra.mxu0 %v546
    %4259 = vmatprep.subr.mxu0 %v550
    %4260 = vmatpush1.msra.mxu0 %v549
    %4261 = vmatprep.subr.mxu0 %v553
    %4262 = vmatpush1.msra.mxu0 %v552
    %4263 = vmatprep.subr.mxu0 %v556
    %4264 = vmatpush1.msra.mxu0 %v555
    %4265 = vmatprep.subr.mxu0 0.0
    %4266 = vmatpush1.msra.mxu0 0.0
    %4267 = vmatprep.subr.mxu0 0.0
    %4268 = vmatpush1.msra.mxu0 0.0
    %4269 = vmatprep.subr.mxu0 0.0
    %4270 = vmatpush1.msra.mxu0 0.0
    %4271 = vmatprep.subr.mxu0 0.0
    %4272 = vmatpush1.msra.mxu0 0.0
    %4273 = vmatprep.subr.mxu0 0.0
    %4274 = vmatpush1.msra.mxu0 0.0
    %4275 = vmatprep.subr.mxu0 0.0
    %4276 = vmatpush1.msra.mxu0 0.0
    %4277 = vmatprep.subr.mxu0 0.0
    %4278 = vmatpush1.msra.mxu0 0.0
    %4279 = vmatprep.subr.mxu0 0.0
    %4280 = vmatpush1.msra.mxu0 0.0
    %4281 = vmatprep.subr.mxu0 0.0
    %4282 = vmatpush1.msra.mxu0 0.0
    %4283 = vmatprep.subr.mxu0 0.0
    %4284 = vmatpush1.msra.mxu0 0.0
    %4285 = vmatprep.subr.mxu0 0.0
    %4286 = vmatpush1.msra.mxu0 0.0
    %4287 = vmatprep.subr.mxu0 0.0
    %4288 = vmatpush1.msra.mxu0 0.0
    %4289 = vmatprep.subr.mxu0 0.0
    %4290 = vmatpush1.msra.mxu0 0.0
    %4291 = vmatprep.subr.mxu0 0.0
    %4292 = vmatpush1.msra.mxu0 0.0
    %4293 = vmatprep.subr.mxu0 0.0
    %4294 = vmatpush1.msra.mxu0 0.0
    %4295 = vmatprep.subr.mxu0 0.0
    %4296 = vmatpush1.msra.mxu0 0.0
    %4297 = vmatprep.mubr.f32.mxu0 0.0
    %4298 = vmatmul.mubr.f32.gmra.mrb[0].mxu0 %v3920
    %v4299 = vpop.f32.mrb[0].mxu0
    %v4300 = vadd.f32 %v904, %v4299
    %v4301 = vpop.f32.mrb[0].mxu0
    %v4302 = vadd.f32 %v908, %v4301
    %4303 = vdwg.mxu0
    %4304 = vmatprep.subr.mxu0 0.0
    %4305 = vmatpush1.msra.mxu0 %v512
    %4306 = vmatprep.subr.mxu0 0.0
    %4307 = vmatpush1.msra.mxu0 %v515
    %4308 = vmatprep.subr.mxu0 0.0
    %4309 = vmatpush1.msra.mxu0 %v518
    %4310 = vmatprep.subr.mxu0 0.0
    %4311 = vmatpush1.msra.mxu0 %v521
    %4312 = vmatprep.subr.mxu0 0.0
    %4313 = vmatpush1.msra.mxu0 %v524
    %4314 = vmatprep.subr.mxu0 0.0
    %4315 = vmatpush1.msra.mxu0 %v527
    %4316 = vmatprep.subr.mxu0 0.0
    %4317 = vmatpush1.msra.mxu0 %v530
    %4318 = vmatprep.subr.mxu0 0.0
    %4319 = vmatpush1.msra.mxu0 %v533
    %4320 = vmatprep.subr.mxu0 0.0
    %4321 = vmatpush1.msra.mxu0 %v536
    %4322 = vmatprep.subr.mxu0 0.0
    %4323 = vmatpush1.msra.mxu0 %v539
    %4324 = vmatprep.subr.mxu0 0.0
    %4325 = vmatpush1.msra.mxu0 %v542
    %4326 = vmatprep.subr.mxu0 0.0
    %4327 = vmatpush1.msra.mxu0 %v545
    %4328 = vmatprep.subr.mxu0 0.0
    %4329 = vmatpush1.msra.mxu0 %v548
    %4330 = vmatprep.subr.mxu0 0.0
    %4331 = vmatpush1.msra.mxu0 %v551
    %4332 = vmatprep.subr.mxu0 0.0
    %4333 = vmatpush1.msra.mxu0 %v554
    %4334 = vmatprep.subr.mxu0 0.0
    %4335 = vmatpush1.msra.mxu0 %v557
    %4336 = vmatprep.subr.mxu0 0.0
    %4337 = vmatpush1.msra.mxu0 0.0
    %4338 = vmatprep.subr.mxu0 0.0
    %4339 = vmatpush1.msra.mxu0 0.0
    %4340 = vmatprep.subr.mxu0 0.0
    %4341 = vmatpush1.msra.mxu0 0.0
    %4342 = vmatprep.subr.mxu0 0.0
    %4343 = vmatpush1.msra.mxu0 0.0
    %4344 = vmatprep.subr.mxu0 0.0
    %4345 = vmatpush1.msra.mxu0 0.0
    %4346 = vmatprep.subr.mxu0 0.0
    %4347 = vmatpush1.msra.mxu0 0.0
    %4348 = vmatprep.subr.mxu0 0.0
    %4349 = vmatpush1.msra.mxu0 0.0
    %4350 = vmatprep.subr.mxu0 0.0
    %4351 = vmatpush1.msra.mxu0 0.0
    %4352 = vmatprep.subr.mxu0 0.0
    %4353 = vmatpush1.msra.mxu0 0.0
    %4354 = vmatprep.subr.mxu0 0.0
    %4355 = vmatpush1.msra.mxu0 0.0
    %4356 = vmatprep.subr.mxu0 0.0
    %4357 = vmatpush1.msra.mxu0 0.0
    %4358 = vmatprep.subr.mxu0 0.0
    %4359 = vmatpush1.msra.mxu0 0.0
    %4360 = vmatprep.subr.mxu0 0.0
    %4361 = vmatpush1.msra.mxu0 0.0
    %4362 = vmatprep.subr.mxu0 0.0
    %4363 = vmatpush1.msra.mxu0 0.0
    %4364 = vmatprep.subr.mxu0 0.0
    %4365 = vmatpush1.msra.mxu0 0.0
    %4366 = vmatprep.subr.mxu0 0.0
    %4367 = vmatpush1.msra.mxu0 0.0
    %4368 = vmatprep.mubr.f32.mxu0 0.0
    %4369 = vmatmul.mubr.f32.gmra.mrb[0].mxu0 %v3920
    %v4370 = vpop.f32.mrb[0].mxu0
    %v4371 = vadd.f32 %v912, %v4370
    %v4372 = vpop.f32.mrb[0].mxu0
    %4373 = vdwg.mxu0
    %v4374 = vadd.f32 %v4159, %v4300
    %v4375 = vxor.u32 %v4374, 2147483648
    %v4376 = vmul.f32 %v4375, 1.442695
    %v4377 = vpow.pop %v4376
    %v4378 = vadd.f32 %v4377, 1.0
    %v4379 = vrcp.pop %v4378
    %v4380 = vmul.f32 1.0, %v4379
    %v4381 = vadd.f32 %v4161, %v4302
    %v4382 = vxor.u32 %v4381, 2147483648
    %v4383 = vmul.f32 %v4382, 1.442695
    %v4384 = vpow.pop %v4383
    %v4385 = vadd.f32 %v4384, 1.0
    %v4386 = vrcp.pop %v4385
    %v4387 = vmul.f32 1.0, %v4386
    %v4388 = vmul.f32 %v4380, %v4371
    %v4389 = vadd.f32 %v4230, %v4388
    %v4390 = vtanh.pop %v4389
    %v4391 = vsub.f32 1.0, %v4387
    %v4392 = vmul.f32 %v4391, %v4390
    %v4393 = vmul.f32 %v4387, %v3920
    %v4394 = vadd.f32 %v4392, %v4393
    %s4395 = scalar_lea.vmem [#allocation3], 14
    %4396 = vst [vmem:[%s4395] sm:$0x3] %v4394
    %v4397 = vld [vmem:[#allocation3] sm:$0x3]
    %v4398 = vld [vmem:[#allocation3 + $0x2] sm:$0x3]
    %v4399 = vld [vmem:[#allocation3 + $0x4] sm:$0x3]
    %v4400 = vld [vmem:[#allocation3 + $0x6] sm:$0x3]
    %v4401 = vld [vmem:[#allocation3 + $0x8] sm:$0x3]
    %v4402 = vld [vmem:[#allocation3 + $0xa] sm:$0x3]
    %v4403 = vld [vmem:[#allocation3 + $0xc] sm:$0x3]
    %v4404 = vld [vmem:[#allocation3 + $0xe] sm:$0x3]
    %v4405 = vld [vmem:[%s10] sm:$0xff]
    %v4406 = vld [vmem:[%s10 + $0x8] sm:$0xff]
    %v4407 = vld [vmem:[%s10 + $0x10] sm:$0xff]
    %v4408 = vld [vmem:[%s10 + $0x18] sm:$0xff]
    %v4409 = vld [vmem:[%s10 + $0x20] sm:$0xff]
    %v4410 = vld [vmem:[%s10 + $0x28] sm:$0xff]
    %v4411 = vld [vmem:[%s10 + $0x30] sm:$0xff]
    %v4412 = vld [vmem:[%s10 + $0x38] sm:$0xff]
    %v4413 = vld [vmem:[%s10 + $0x40] sm:$0xff]
    %v4414 = vld [vmem:[%s10 + $0x48] sm:$0xff]
    %v4415 = vld [vmem:[%s10 + $0x50] sm:$0xff]
    %v4416 = vld [vmem:[%s10 + $0x58] sm:$0xff]
    %v4417 = vld [vmem:[%s10 + $0x60] sm:$0xff]
    %v4418 = vld [vmem:[%s10 + $0x68] sm:$0xff]
    %v4419 = vld [vmem:[%s10 + $0x70] sm:$0xff]
    %v4420 = vld [vmem:[%s10 + $0x78] sm:$0xff]
    %v4421 = vld [vmem:[%s11] sm:$0x1]
    %v4423 = vlaneseq
    %v4424 = vshrl.u32 %v4423, 7
    %v4425 = vsub.s32 0, %v4424
    %v4426 = vrot.slane %v4421, %v4425
    %v4436 = vcombine.low %v4397, %v4398
    %v4437 = vcombine.low %v4399, %v4400
    %v4439 = vunpack.c.l.s4 1983009808
    %v4440 = vunpack.c.0.s8 %v4439
    %v4441 = vlaneseq
    %v4442 = vshrl.u32 %v4441, 7
    %v4443 = vsub.s32 %v4440, %v4442
    %v4444 = vrot.slane %v4436, %v4443
    %v4446 = vunpack.c.l.s4 1983009808
    %v4447 = vunpack.c.0.s8 %v4446
    %v4448 = vlaneseq
    %v4449 = vshrl.u32 %v4448, 7
    %v4450 = vsub.s32 %v4447, %v4449
    %v4451 = vrot.slane %v4437, %v4450
    %v4452 = vcombine.low %v4444, %v4451
    %v4453 = vcombine.low %v4401, %v4402
    %v4454 = vcombine.low %v4403, %v4404
    %v4456 = vunpack.c.l.s4 1983009808
    %v4457 = vunpack.c.0.s8 %v4456
    %v4458 = vlaneseq
    %v4459 = vshrl.u32 %v4458, 7
    %v4460 = vsub.s32 %v4457, %v4459
    %v4461 = vrot.slane %v4453, %v4460
    %v4463 = vunpack.c.l.s4 1983009808
    %v4464 = vunpack.c.0.s8 %v4463
    %v4465 = vlaneseq
    %v4466 = vshrl.u32 %v4465, 7
    %v4467 = vsub.s32 %v4464, %v4466
    %v4468 = vrot.slane %v4454, %v4467
    %v4469 = vcombine.low %v4461, %v4468
    %4472 = vmatprep.subr.mxu0 0.0
    %4473 = vmatpush1.msra.mxu0 %v4405
    %4474 = vmatprep.subr.mxu0 0.0
    %4475 = vmatpush1.msra.mxu0 %v4406
    %4476 = vmatprep.subr.mxu0 0.0
    %4477 = vmatpush1.msra.mxu0 %v4407
    %4478 = vmatprep.subr.mxu0 0.0
    %4479 = vmatpush1.msra.mxu0 %v4408
    %4480 = vmatprep.subr.mxu0 0.0
    %4481 = vmatpush1.msra.mxu0 %v4409
    %4482 = vmatprep.subr.mxu0 0.0
    %4483 = vmatpush1.msra.mxu0 %v4410
    %4484 = vmatprep.subr.mxu0 0.0
    %4485 = vmatpush1.msra.mxu0 %v4411
    %4486 = vmatprep.subr.mxu0 0.0
    %4487 = vmatpush1.msra.mxu0 %v4412
    %4488 = vmatprep.subr.mxu0 0.0
    %4489 = vmatpush1.msra.mxu0 %v4413
    %4490 = vmatprep.subr.mxu0 0.0
    %4491 = vmatpush1.msra.mxu0 %v4414
    %4492 = vmatprep.subr.mxu0 0.0
    %4493 = vmatpush1.msra.mxu0 %v4415
    %4494 = vmatprep.subr.mxu0 0.0
    %4495 = vmatpush1.msra.mxu0 %v4416
    %4496 = vmatprep.subr.mxu0 0.0
    %4497 = vmatpush1.msra.mxu0 %v4417
    %4498 = vmatprep.subr.mxu0 0.0
    %4499 = vmatpush1.msra.mxu0 %v4418
    %4500 = vmatprep.subr.mxu0 0.0
    %4501 = vmatpush1.msra.mxu0 %v4419
    %4502 = vmatprep.subr.mxu0 0.0
    %4503 = vmatpush1.msra.mxu0 %v4420
    %4504 = vmatprep.subr.mxu0 0.0
    %4505 = vmatpush1.msra.mxu0 0.0
    %4506 = vmatprep.subr.mxu0 0.0
    %4507 = vmatpush1.msra.mxu0 0.0
    %4508 = vmatprep.subr.mxu0 0.0
    %4509 = vmatpush1.msra.mxu0 0.0
    %4510 = vmatprep.subr.mxu0 0.0
    %4511 = vmatpush1.msra.mxu0 0.0
    %4512 = vmatprep.subr.mxu0 0.0
    %4513 = vmatpush1.msra.mxu0 0.0
    %4514 = vmatprep.subr.mxu0 0.0
    %4515 = vmatpush1.msra.mxu0 0.0
    %4516 = vmatprep.subr.mxu0 0.0
    %4517 = vmatpush1.msra.mxu0 0.0
    %4518 = vmatprep.subr.mxu0 0.0
    %4519 = vmatpush1.msra.mxu0 0.0
    %4520 = vmatprep.subr.mxu0 0.0
    %4521 = vmatpush1.msra.mxu0 0.0
    %4522 = vmatprep.subr.mxu0 0.0
    %4523 = vmatpush1.msra.mxu0 0.0
    %4524 = vmatprep.subr.mxu0 0.0
    %4525 = vmatpush1.msra.mxu0 0.0
    %4526 = vmatprep.subr.mxu0 0.0
    %4527 = vmatpush1.msra.mxu0 0.0
    %4528 = vmatprep.subr.mxu0 0.0
    %4529 = vmatpush1.msra.mxu0 0.0
    %4530 = vmatprep.subr.mxu0 0.0
    %4531 = vmatpush1.msra.mxu0 0.0
    %4532 = vmatprep.subr.mxu0 0.0
    %4533 = vmatpush1.msra.mxu0 0.0
    %4534 = vmatprep.subr.mxu0 0.0
    %4535 = vmatpush1.msra.mxu0 0.0
    %4536 = vmatprep.mubr.f32.mxu0 0.0
    %4537 = vmatmul.mubr.f32.gmra.mrb[0].mxu0 %v4452
    %v4538 = vpop.f32.mrb[0].mxu0
    %v4539 = vadd.f32 %v4426, %v4538
    %v4540 = vpop.f32.mrb[0].mxu0
    %4541 = vmatprep.mubr.f32.mxu0 0.0
    %4542 = vmatmul.mubr.f32.gmra.mrb[0].mxu0 %v4469
    %v4543 = vpop.f32.mrb[0].mxu0
    %v4544 = vadd.f32 %v4426, %v4543
    %v4545 = vpop.f32.mrb[0].mxu0
    %4546 = vdwg.mxu0
    %v4549 = vcombine.high %v4539, %v4539
    %v4551 = vunpack.c.l.s4 1983009808
    %v4552 = vunpack.c.0.s8 %v4551
    %v4553 = vlaneseq
    %v4554 = vshrl.u32 %v4553, 7
    %v4555 = vsub.s32 %v4552, %v4554
    %v4556 = vrot.slane %v4539, %v4555
    %v4558 = vunpack.c.l.s4 1983009808
    %v4559 = vunpack.c.0.s8 %v4558
    %v4560 = vlaneseq
    %v4561 = vshrl.u32 %v4560, 7
    %v4562 = vsub.s32 %v4559, %v4561
    %v4563 = vrot.slane %v4549, %v4562
    %v4564 = vcombine.high %v4556, %v4556
    %v4565 = vcombine.high %v4563, %v4563
    %v4566 = vcombine.high %v4544, %v4544
    %v4568 = vunpack.c.l.s4 1983009808
    %v4569 = vunpack.c.0.s8 %v4568
    %v4570 = vlaneseq
    %v4571 = vshrl.u32 %v4570, 7
    %v4572 = vsub.s32 %v4569, %v4571
    %v4573 = vrot.slane %v4544, %v4572
    %v4575 = vunpack.c.l.s4 1983009808
    %v4576 = vunpack.c.0.s8 %v4575
    %v4577 = vlaneseq
    %v4578 = vshrl.u32 %v4577, 7
    %v4579 = vsub.s32 %v4576, %v4578
    %v4580 = vrot.slane %v4566, %v4579
    %v4581 = vcombine.high %v4573, %v4573
    %v4582 = vcombine.high %v4580, %v4580
    %vm4591 = vcmask 25600
    %4592 = vst.msk [vmem:[%s12] sm:$0x3] %vm4591, %v4556
    %4593 = vst.msk [vmem:[%s12 + $0x2] sm:$0x3] %vm4591, %v4564
    %4594 = vst.msk [vmem:[%s12 + $0x4] sm:$0x3] %vm4591, %v4563
    %4595 = vst.msk [vmem:[%s12 + $0x6] sm:$0x3] %vm4591, %v4565
    %4596 = vst.msk [vmem:[%s12 + $0x8] sm:$0x3] %vm4591, %v4573
    %4597 = vst.msk [vmem:[%s12 + $0xa] sm:$0x3] %vm4591, %v4581
    %4598 = vst.msk [vmem:[%s12 + $0xc] sm:$0x3] %vm4591, %v4580
    %4599 = vst.msk [vmem:[%s12 + $0xe] sm:$0x3] %vm4591, %v4582
    %v4600 = vld [vmem:[%s1] sm:$0x3]
    %v4601 = vld [vmem:[%s1 + $0x2] sm:$0x3]
    %v4602 = vld [vmem:[%s1 + $0x4] sm:$0x3]
    %v4603 = vld [vmem:[%s1 + $0x6] sm:$0x3]
    %v4604 = vld [vmem:[%s1 + $0x8] sm:$0x3]
    %v4605 = vld [vmem:[%s1 + $0xa] sm:$0x3]
    %v4606 = vld [vmem:[%s1 + $0xc] sm:$0x3]
    %v4607 = vld [vmem:[%s1 + $0xe] sm:$0x3]
    %v4608 = vsub.f32 %v4556, %v4600
    %v4609 = vsub.f32 %v4564, %v4601
    %v4610 = vsub.f32 %v4563, %v4602
    %v4611 = vsub.f32 %v4565, %v4603
    %v4612 = vsub.f32 %v4573, %v4604
    %v4613 = vsub.f32 %v4581, %v4605
    %v4614 = vsub.f32 %v4580, %v4606
    %v4615 = vsub.f32 %v4582, %v4607
    %v4616 = vmul.f32 %v4608, %v4608
    %v4617 = vmul.f32 %v4609, %v4609
    %v4618 = vmul.f32 %v4610, %v4610
    %v4619 = vmul.f32 %v4611, %v4611
    %v4620 = vmul.f32 %v4612, %v4612
    %v4621 = vmul.f32 %v4613, %v4613
    %v4622 = vmul.f32 %v4614, %v4614
    %v4623 = vmul.f32 %v4615, %v4615
    %v4624 = vsel %vm4591, %v4616, 0.0
    %4625 = vadd.xlane.f32.xlu0 %v4624
    %v4626 = vpop.xlane.xlu0 %4625
    %v4627 = vsel %vm4591, %v4617, 0.0
    %4628 = vadd.xlane.f32.xlu0 %v4627
    %v4629 = vpop.xlane.xlu0 %4628
    %v4630 = vsel %vm4591, %v4618, 0.0
    %4631 = vadd.xlane.f32.xlu0 %v4630
    %v4632 = vpop.xlane.xlu0 %4631
    %v4633 = vsel %vm4591, %v4619, 0.0
    %4634 = vadd.xlane.f32.xlu0 %v4633
    %v4635 = vpop.xlane.xlu0 %4634
    %v4636 = vsel %vm4591, %v4620, 0.0
    %4637 = vadd.xlane.f32.xlu0 %v4636
    %v4638 = vpop.xlane.xlu0 %4637
    %v4639 = vsel %vm4591, %v4621, 0.0
    %4640 = vadd.xlane.f32.xlu0 %v4639
    %v4641 = vpop.xlane.xlu0 %4640
    %v4642 = vsel %vm4591, %v4622, 0.0
    %4643 = vadd.xlane.f32.xlu0 %v4642
    %v4644 = vpop.xlane.xlu0 %4643
    %v4645 = vsel %vm4591, %v4623, 0.0
    %4646 = vadd.xlane.f32.xlu0 %v4645
    %v4647 = vpop.xlane.xlu0 %4646
    %v4656 = vlaneseq
    %v4657 = vand.u32 %v4656, 127
    %v4658 = vlaneseq
    %v4659 = vshrl.u32 %v4658, 7
    %v4660 = vsub.s32 %v4657, %v4659
    %v4661 = vrot.slane %v4626, %v4660
    %v4662 = vlaneseq
    %v4663 = vshrl.u32 %v4662, 7
    %v4664 = vsub.s32 %v4657, %v4663
    %v4665 = vrot.slane %v4629, %v4664
    %v4666 = vlaneseq
    %v4667 = vshrl.u32 %v4666, 7
    %v4668 = vsub.s32 %v4657, %v4667
    %v4669 = vrot.slane %v4632, %v4668
    %v4670 = vlaneseq
    %v4671 = vshrl.u32 %v4670, 7
    %v4672 = vsub.s32 %v4657, %v4671
    %v4673 = vrot.slane %v4635, %v4672
    %v4674 = vlaneseq
    %v4675 = vshrl.u32 %v4674, 7
    %v4676 = vsub.s32 %v4657, %v4675
    %v4677 = vrot.slane %v4638, %v4676
    %v4678 = vlaneseq
    %v4679 = vshrl.u32 %v4678, 7
    %v4680 = vsub.s32 %v4657, %v4679
    %v4681 = vrot.slane %v4641, %v4680
    %v4682 = vlaneseq
    %v4683 = vshrl.u32 %v4682, 7
    %v4684 = vsub.s32 %v4657, %v4683
    %v4685 = vrot.slane %v4644, %v4684
    %v4686 = vlaneseq
    %v4687 = vshrl.u32 %v4686, 7
    %v4688 = vsub.s32 %v4657, %v4687
    %v4689 = vrot.slane %v4647, %v4688
    %vm4690 = vcmask 1041409
    %v4691 = vsel %vm4690, %v4665, %v4661
    %vm4692 = vcmask 1042434
    %v4693 = vsel %vm4692, %v4669, %v4691
    %vm4694 = vcmask 1043459
    %v4695 = vsel %vm4694, %v4673, %v4693
    %vm4696 = vcmask 1044484
    %v4697 = vsel %vm4696, %v4677, %v4695
    %vm4698 = vcmask 1045509
    %v4699 = vsel %vm4698, %v4681, %v4697
    %vm4700 = vcmask 1046534
    %v4701 = vsel %vm4700, %v4685, %v4699
    %vm4702 = vcmask 1047559
    %v4703 = vsel %vm4702, %v4689, %v4701
    %vm4705 = vcmask 15360
    %4706 = vst.msk [vmem:[%s13] sm:$0xff] %vm4705, %v4703
    // Predicated region
    $region62: #{cm_baseline_recurrent_forward.1} parent=1 // pred_check
      _
    $region63: #{cm_baseline_recurrent_forward.1} parent=1 // pred_check_branch
      %4708 = sbr.rel (0) target = $region65
    $region64: #{cm_baseline_recurrent_forward.1} parent=1 // pred_region
      _
    $region65: #{cm_baseline_recurrent_forward.1} parent=1 // pred_fallthru
      _
    // Predicated region
    $region66: #{cm_baseline_recurrent_forward.1} parent=1 // pred_check
      _
    $region67: #{cm_baseline_recurrent_forward.1} parent=1 // pred_check_branch
      %4710 = sbr.rel (0) target = $region69
    $region68: #{cm_baseline_recurrent_forward.1} parent=1 // pred_region
      _
    $region69: #{cm_baseline_recurrent_forward.1} parent=1 // pred_fallthru
      _
    // Predicated region
    $region70: #{cm_baseline_recurrent_forward.1} parent=1 // pred_check
      _
    $region71: #{cm_baseline_recurrent_forward.1} parent=1 // pred_check_branch
      %4712 = sbr.rel (0) target = $region73
    $region72: #{cm_baseline_recurrent_forward.1} parent=1 // pred_region
      _
    $region73: #{cm_baseline_recurrent_forward.1} parent=1 // pred_fallthru
      _
    // Predicated region
    $region74: #{cm_baseline_recurrent_forward.1} parent=1 // pred_check
      _
    $region75: #{cm_baseline_recurrent_forward.1} parent=1 // pred_check_branch
      %4714 = sbr.rel (0) target = $region77
    $region76: #{cm_baseline_recurrent_forward.1} parent=1 // pred_region
      _
    $region77: #{cm_baseline_recurrent_forward.1} parent=1 // pred_fallthru
      _
    %4715 = vsyncpa [#allocation5], 1
    %4716 = vsyncpa [#allocation7], 1

</llo_original>
